<compile_context>
chip_gen: v7x
topology: tpu7x:2x2x1
jax: 0.10.0
libtpu: 0.0.40
codegen_flags: <defaults>
</compile_context>

<pallas_src>
import math
import functools

import jax
import jax.numpy as jnp
import numpy as np
from jax.experimental import pallas as pl
from jax.experimental.pallas import tpu as pltpu


# ---------------------------------------------------------------------------
# Pallas kernel: all GIN_LCG message-passing iterations, fused
# ---------------------------------------------------------------------------
def gin_lcg_kernel(n_iter, dim,
                   # graph state / structure
                   l_emb_ref, c_emb_ref, adj_ref, perm_ref,
                   # packed first-layer weights
                   wl1_ref,   # [D, 3D]: l2c.W1 | l_update.W1[l_emb block] | l_update.W1[l2l block]
                   wc1_ref,   # [D, 2D]: c2l.W1 | c_update.W1[c_emb block]
                   wca_ref,   # [D, D] : c_update.W1[l2c_aggr block]
                   wla_ref,   # [D, D] : l_update.W1[c2l_aggr block]
                   # second-layer weights
                   wl2c2_ref, wc2l2_ref, wcu2_ref, wlu2_ref,
                   # packed biases [8, D]
                   b_ref,
                   # outputs: lane-dense slabs, one D-wide column block per iteration
                   l_out_ref, c_out_ref):
    dot = lambda a, b: jnp.dot(a, b, preferred_element_type=jnp.float32)
    # TN matmul: contract adj's clause axis (dim 0) with c_msg's row axis.
    dot_tn = lambda a, b: jax.lax.dot_general(
        a, b, dimension_numbers=(((0,), (0,)), ((), ())),
        preferred_element_type=jnp.float32)

    adj = adj_ref[...]          # [C, L]
    perm = perm_ref[...]        # [L, L] pos/neg literal pair swap (permutation)
    wl1 = wl1_ref[...]
    wc1 = wc1_ref[...]
    wca = wca_ref[...]
    wla = wla_ref[...]
    w_l2c2 = wl2c2_ref[...]
    w_c2l2 = wc2l2_ref[...]
    w_cu2 = wcu2_ref[...]
    w_lu2 = wlu2_ref[...]
    b = b_ref[...]              # [8, D]
    b_l2c1, b_l2c2 = b[0:1], b[1:2]
    b_c2l1, b_c2l2 = b[2:3], b[3:4]
    b_cu1, b_cu2 = b[4:5], b[5:6]
    b_lu1, b_lu2 = b[6:7], b[7:8]

    l_emb = l_emb_ref[...]      # [L, D]
    c_emb = c_emb_ref[...]      # [C, D]
    D = dim

    # Short fixed trip count: unrolled statically (weights stay in vregs/VMEM).
    for it in range(n_iter):
        # Packed first-layer matmuls (lane-dense: 3D / 2D wide results).
        g = dot(l_emb, wl1)                       # [L, 3D]
        h = dot(c_emb, wc1)                       # [C, 2D]

        # --- message MLPs (2 layers, ReLU) ---
        l_msg = dot(jnp.maximum(g[:, :D] + b_l2c1, 0.0), w_l2c2) + b_l2c2    # [L, D]
        c_msg = dot(jnp.maximum(h[:, :D] + b_c2l1, 0.0), w_c2l2) + b_c2l2    # [C, D]

        # --- scatter_sum over edges, as dense incidence matmuls (exact) ---
        l2c_aggr = dot(adj, l_msg)                # [C, D] = sum_l A[c,l] * l_msg[l]
        c2l_aggr = dot_tn(adj, c_msg)             # [L, D] = sum_c A[c,l] * c_msg[c]

        # --- clause update: MLP(concat([c_emb, l2c_aggr])) ---
        c_pre = h[:, D:2 * D] + dot(l2c_aggr, wca) + b_cu1
        c_new = dot(jnp.maximum(c_pre, 0.0), w_cu2) + b_cu2                  # [C, D]

        # --- literal update: MLP(concat([l_emb, c2l_aggr, l2l_msg])) ---
        # l2l_msg @ W = perm @ (l_emb @ W); the l_emb @ W part is g[:, 2D:3D].
        l2l_contrib = dot(perm, g[:, 2 * D:3 * D])
        l_pre = g[:, D:2 * D] + dot(c2l_aggr, wla) + l2l_contrib + b_lu1
        l_new = dot(jnp.maximum(l_pre, 0.0), w_lu2) + b_lu2                  # [L, D]

        # lane-dense slab stores
        l_out_ref[:, it * D:(it + 1) * D] = l_new
        c_out_ref[:, it * D:(it + 1) * D] = c_new

        l_emb, c_emb = l_new, c_new


# ---------------------------------------------------------------------------
# Parameters (deterministic init, PyTorch-style U(-1/sqrt(fan_in), 1/sqrt(fan_in)))
# ---------------------------------------------------------------------------
def init_params(key, dim):
    keys = iter(jax.random.split(key, 32))

    def uni(shape, bound):
        return jax.random.uniform(next(keys), shape, jnp.float32, -bound, bound)

    def linear(fin, fout):
        b = 1.0 / math.sqrt(fin)
        return uni((fin, fout), b), uni((1, fout), b)

    def mlp(fin, hid, fout):
        w1, b1 = linear(fin, hid)
        w2, b2 = linear(hid, fout)
        return (w1, b1, w2, b2)

    return {
        "l2c": mlp(dim, dim, dim),            # l2c_msg_func
        "c2l": mlp(dim, dim, dim),            # c2l_msg_func
        "c_update": mlp(2 * dim, dim, dim),   # c_update (input = [c_emb, l2c_aggr])
        "l_update": mlp(3 * dim, dim, dim),   # l_update (input = [l_emb, c2l_aggr, l2l])
    }


def _pack_params(params, dim):
    l2c_w1, l2c_b1, l2c_w2, l2c_b2 = params["l2c"]
    c2l_w1, c2l_b1, c2l_w2, c2l_b2 = params["c2l"]
    cu_w1, cu_b1, cu_w2, cu_b2 = params["c_update"]
    lu_w1, lu_b1, lu_w2, lu_b2 = params["l_update"]

    wl1 = jnp.concatenate([l2c_w1, lu_w1[:dim], lu_w1[2 * dim:]], axis=1)   # [D, 3D]
    wc1 = jnp.concatenate([c2l_w1, cu_w1[:dim]], axis=1)                    # [D, 2D]
    wca = cu_w1[dim:2 * dim]                                                # [D, D]
    wla = lu_w1[dim:2 * dim]                                                # [D, D]
    biases = jnp.concatenate([l2c_b1, l2c_b2, c2l_b1, c2l_b2,
                              cu_b1, cu_b2, lu_b1, lu_b2], axis=0)          # [8, D]
    return [wl1, wc1, wca, wla, l2c_w2, c2l_w2, cu_w2, lu_w2, biases]


# ---------------------------------------------------------------------------
# Forward pass (wrapper: graph preprocessing + single fused pallas_call)
# ---------------------------------------------------------------------------
@functools.partial(jax.jit, static_argnums=(0, 1, 7))
def gin_lcg_forward(l_size, c_size, l_edge_index, c_edge_index,
                    l_emb, c_emb, params, n_iterations):
    dim = l_emb.shape[1]
    # Dense literal-clause incidence matrix (exact scatter_sum reformulation,
    # including edge multiplicities).
    adj = jnp.zeros((c_size, l_size), jnp.float32).at[
        c_edge_index, l_edge_index].add(1.0)
    # pos/neg literal pair-swap as a permutation matrix: row i <- row (i ^ 1).
    idx = jnp.arange(l_size)
    perm = jnp.zeros((l_size, l_size), jnp.float32).at[idx, idx ^ 1].set(1.0)

    packed = _pack_params(params, dim)
    args = [l_emb, c_emb, adj, perm] + packed

    kernel = functools.partial(gin_lcg_kernel, n_iterations, dim)
    vm = pl.BlockSpec(memory_space=pltpu.MemorySpace.VMEM)
    l_slab, c_slab = pl.pallas_call(
        kernel,
        out_shape=(jax.ShapeDtypeStruct((l_size, n_iterations * dim), jnp.float32),
                   jax.ShapeDtypeStruct((c_size, n_iterations * dim), jnp.float32)),
        in_specs=[vm] * len(args),
        out_specs=(vm, vm),
    )(*args)

    l_embs = [l_emb] + [l_slab[:, i * dim:(i + 1) * dim] for i in range(n_iterations)]
    c_embs = [c_emb] + [c_slab[:, i * dim:(i + 1) * dim] for i in range(n_iterations)]
    return l_embs, c_embs


# ---------------------------------------------------------------------------
# Pure-JAX reference (mirrors the PyTorch forward op-for-op) for validation
# ---------------------------------------------------------------------------
_HDOT = functools.partial(jnp.dot, precision=jax.lax.Precision.HIGHEST)


def _mlp_ref(x, w1, b1, w2, b2):
    return _HDOT(jnp.maximum(_HDOT(x, w1) + b1, 0.0), w2) + b2


def reference_forward(l_size, c_size, l_edge_index, c_edge_index,
                      l_emb, c_emb, params, n_iterations):
    dim = l_emb.shape[1]
    l_embs, c_embs = [l_emb], [c_emb]
    for _ in range(n_iterations):
        l_msg_feat = _mlp_ref(l_emb, *params["l2c"])
        l2c_aggr = jax.ops.segment_sum(l_msg_feat[l_edge_index],
                                       c_edge_index, num_segments=c_size)
        c_msg_feat = _mlp_ref(c_emb, *params["c2l"])
        c2l_aggr = jax.ops.segment_sum(c_msg_feat[c_edge_index],
                                       l_edge_index, num_segments=l_size)
        x = l_emb.reshape(l_size // 2, 2 * dim)
        l2l = jnp.concatenate([x[:, dim:], x[:, :dim]], axis=1).reshape(l_size, dim)
        c_emb = _mlp_ref(jnp.concatenate([c_emb, l2c_aggr], axis=1),
                         *params["c_update"])
        l_emb = _mlp_ref(jnp.concatenate([l_emb, c2l_aggr, l2l], axis=1),
                         *params["l_update"])
        l_embs.append(l_emb)
        c_embs.append(c_emb)
    return l_embs, c_embs


def _close(a, b, tol=5e-3):
    a, b = np.asarray(a), np.asarray(b)
    scale = max(1.0, float(np.max(np.abs(b))))
    return float(np.max(np.abs(a - b))) <= tol * scale


# ---------------------------------------------------------------------------
if __name__ == "__main__":
    key = jax.random.PRNGKey(0)
    k_param, k_l, k_c, k_el, k_ec = jax.random.split(key, 5)

    DIM = 32        # opts.dim
    L_SIZE = 16     # number of literals (even: pos/neg pairs)
    C_SIZE = 8      # number of clauses
    N_EDGES = 40    # literal-clause incidences
    N_ITER = 4      # opts.n_iterations

    params = init_params(k_param, DIM)
    l_emb = jax.random.normal(k_l, (L_SIZE, DIM), jnp.float32)
    c_emb = jax.random.normal(k_c, (C_SIZE, DIM), jnp.float32)
    l_edge_index = jax.random.randint(k_el, (N_EDGES,), 0, L_SIZE)
    c_edge_index = jax.random.randint(k_ec, (N_EDGES,), 0, C_SIZE)

    l_embs, c_embs = gin_lcg_forward(L_SIZE, C_SIZE, l_edge_index, c_edge_index,
                                     l_emb, c_emb, params, N_ITER)
    jax.block_until_ready(l_embs[-1])
    jax.block_until_ready(c_embs[-1])

    l_ref, c_ref = reference_forward(L_SIZE, C_SIZE, l_edge_index, c_edge_index,
                                     l_emb, c_emb, params, N_ITER)

    assert len(l_embs) == N_ITER + 1 and len(c_embs) == N_ITER + 1
    for it in range(N_ITER + 1):
        assert _close(l_embs[it], l_ref[it]), f"literal emb mismatch at iter {it}"
        assert _close(c_embs[it], c_ref[it]), f"clause emb mismatch at iter {it}"

    print("KERNEL_OK")
</pallas_src>

<mosaic_0001>
module attributes {stable_mosaic.version = 11 : i64} {
  func.func @gin_lcg_kernel(%arg0: memref<16x32xf32, #tpu.memory_space<vmem>>, %arg1: memref<8x32xf32, #tpu.memory_space<vmem>>, %arg2: memref<8x16xf32, #tpu.memory_space<vmem>>, %arg3: memref<16x16xf32, #tpu.memory_space<vmem>>, %arg4: memref<32x96xf32, #tpu.memory_space<vmem>>, %arg5: memref<32x64xf32, #tpu.memory_space<vmem>>, %arg6: memref<32x32xf32, #tpu.memory_space<vmem>>, %arg7: memref<32x32xf32, #tpu.memory_space<vmem>>, %arg8: memref<32x32xf32, #tpu.memory_space<vmem>>, %arg9: memref<32x32xf32, #tpu.memory_space<vmem>>, %arg10: memref<32x32xf32, #tpu.memory_space<vmem>>, %arg11: memref<32x32xf32, #tpu.memory_space<vmem>>, %arg12: memref<8x32xf32, #tpu.memory_space<vmem>>, %arg13: memref<16x128xf32, #tpu.memory_space<vmem>>, %arg14: memref<8x128xf32, #tpu.memory_space<vmem>>) attributes {dimension_semantics = [], scalar_prefetch = 0 : i64, scratch_operands = 0 : i64, tpu.core_type = #tpu.core_type<tc>} {
    %c0 = arith.constant 0 : index
    %c0_0 = arith.constant 0 : index
    %0 = vector.load %arg2[%c0, %c0_0] : memref<8x16xf32, #tpu.memory_space<vmem>>, vector<8x16xf32>
    %c0_1 = arith.constant 0 : index
    %c0_2 = arith.constant 0 : index
    %1 = vector.load %arg3[%c0_1, %c0_2] : memref<16x16xf32, #tpu.memory_space<vmem>>, vector<16x16xf32>
    %c0_3 = arith.constant 0 : index
    %c0_4 = arith.constant 0 : index
    %2 = vector.load %arg4[%c0_3, %c0_4] : memref<32x96xf32, #tpu.memory_space<vmem>>, vector<32x96xf32>
    %c0_5 = arith.constant 0 : index
    %c0_6 = arith.constant 0 : index
    %3 = vector.load %arg5[%c0_5, %c0_6] : memref<32x64xf32, #tpu.memory_space<vmem>>, vector<32x64xf32>
    %c0_7 = arith.constant 0 : index
    %c0_8 = arith.constant 0 : index
    %4 = vector.load %arg6[%c0_7, %c0_8] : memref<32x32xf32, #tpu.memory_space<vmem>>, vector<32x32xf32>
    %c0_9 = arith.constant 0 : index
    %c0_10 = arith.constant 0 : index
    %5 = vector.load %arg7[%c0_9, %c0_10] : memref<32x32xf32, #tpu.memory_space<vmem>>, vector<32x32xf32>
    %c0_11 = arith.constant 0 : index
    %c0_12 = arith.constant 0 : index
    %6 = vector.load %arg8[%c0_11, %c0_12] : memref<32x32xf32, #tpu.memory_space<vmem>>, vector<32x32xf32>
    %c0_13 = arith.constant 0 : index
    %c0_14 = arith.constant 0 : index
    %7 = vector.load %arg9[%c0_13, %c0_14] : memref<32x32xf32, #tpu.memory_space<vmem>>, vector<32x32xf32>
    %c0_15 = arith.constant 0 : index
    %c0_16 = arith.constant 0 : index
    %8 = vector.load %arg10[%c0_15, %c0_16] : memref<32x32xf32, #tpu.memory_space<vmem>>, vector<32x32xf32>
    %c0_17 = arith.constant 0 : index
    %c0_18 = arith.constant 0 : index
    %9 = vector.load %arg11[%c0_17, %c0_18] : memref<32x32xf32, #tpu.memory_space<vmem>>, vector<32x32xf32>
    %c0_19 = arith.constant 0 : index
    %c0_20 = arith.constant 0 : index
    %10 = vector.load %arg12[%c0_19, %c0_20] : memref<8x32xf32, #tpu.memory_space<vmem>>, vector<8x32xf32>
    %11 = vector.extract_strided_slice %10 {offsets = [0, 0], sizes = [1, 32], strides = [1, 1]} : vector<8x32xf32> to vector<1x32xf32>
    %12 = vector.extract_strided_slice %10 {offsets = [1, 0], sizes = [1, 32], strides = [1, 1]} : vector<8x32xf32> to vector<1x32xf32>
    %13 = vector.extract_strided_slice %10 {offsets = [2, 0], sizes = [1, 32], strides = [1, 1]} : vector<8x32xf32> to vector<1x32xf32>
    %14 = vector.extract_strided_slice %10 {offsets = [3, 0], sizes = [1, 32], strides = [1, 1]} : vector<8x32xf32> to vector<1x32xf32>
    %15 = vector.extract_strided_slice %10 {offsets = [4, 0], sizes = [1, 32], strides = [1, 1]} : vector<8x32xf32> to vector<1x32xf32>
    %16 = vector.extract_strided_slice %10 {offsets = [5, 0], sizes = [1, 32], strides = [1, 1]} : vector<8x32xf32> to vector<1x32xf32>
    %17 = vector.extract_strided_slice %10 {offsets = [6, 0], sizes = [1, 32], strides = [1, 1]} : vector<8x32xf32> to vector<1x32xf32>
    %18 = vector.extract_strided_slice %10 {offsets = [7, 0], sizes = [1, 32], strides = [1, 1]} : vector<8x32xf32> to vector<1x32xf32>
    %c0_21 = arith.constant 0 : index
    %c0_22 = arith.constant 0 : index
    %19 = vector.load %arg0[%c0_21, %c0_22] : memref<16x32xf32, #tpu.memory_space<vmem>>, vector<16x32xf32>
    %c0_23 = arith.constant 0 : index
    %c0_24 = arith.constant 0 : index
    %20 = vector.load %arg1[%c0_23, %c0_24] : memref<8x32xf32, #tpu.memory_space<vmem>>, vector<8x32xf32>
    %cst = arith.constant dense<0.000000e+00> : vector<16x96xf32>
    %21 = tpu.matmul %19, %2, %cst {dimension_numbers = #tpu.dot_dimension_numbers<[1], [0], [0], [1], [0, 0, 1, 1], [], []>} : vector<16x32xf32>, vector<32x96xf32>, vector<16x96xf32> -> vector<16x96xf32>
    %cst_25 = arith.constant dense<0.000000e+00> : vector<8x64xf32>
    %22 = tpu.matmul %20, %3, %cst_25 {dimension_numbers = #tpu.dot_dimension_numbers<[1], [0], [0], [1], [0, 0, 1, 1], [], []>} : vector<8x32xf32>, vector<32x64xf32>, vector<8x64xf32> -> vector<8x64xf32>
    %23 = vector.extract_strided_slice %21 {offsets = [0, 0], sizes = [16, 32], strides = [1, 1]} : vector<16x96xf32> to vector<16x32xf32>
    %24 = vector.broadcast %11 : vector<1x32xf32> to vector<16x32xf32>
    %25 = arith.addf %23, %24 : vector<16x32xf32>
    %cst_26 = arith.constant 0.000000e+00 : f32
    %26 = vector.broadcast %cst_26 : f32 to vector<16x32xf32>
    %27 = arith.maximumf %25, %26 : vector<16x32xf32>
    %cst_27 = arith.constant dense<0.000000e+00> : vector<16x32xf32>
    %28 = tpu.matmul %27, %6, %cst_27 {dimension_numbers = #tpu.dot_dimension_numbers<[1], [0], [0], [1], [0, 0, 1, 1], [], []>} : vector<16x32xf32>, vector<32x32xf32>, vector<16x32xf32> -> vector<16x32xf32>
    %29 = vector.broadcast %12 : vector<1x32xf32> to vector<16x32xf32>
    %30 = arith.addf %28, %29 : vector<16x32xf32>
    %31 = vector.extract_strided_slice %22 {offsets = [0, 0], sizes = [8, 32], strides = [1, 1]} : vector<8x64xf32> to vector<8x32xf32>
    %32 = vector.broadcast %13 : vector<1x32xf32> to vector<8x32xf32>
    %33 = arith.addf %31, %32 : vector<8x32xf32>
    %cst_28 = arith.constant 0.000000e+00 : f32
    %34 = vector.broadcast %cst_28 : f32 to vector<8x32xf32>
    %35 = arith.maximumf %33, %34 : vector<8x32xf32>
    %cst_29 = arith.constant dense<0.000000e+00> : vector<8x32xf32>
    %36 = tpu.matmul %35, %7, %cst_29 {dimension_numbers = #tpu.dot_dimension_numbers<[1], [0], [0], [1], [0, 0, 1, 1], [], []>} : vector<8x32xf32>, vector<32x32xf32>, vector<8x32xf32> -> vector<8x32xf32>
    %37 = vector.broadcast %14 : vector<1x32xf32> to vector<8x32xf32>
    %38 = arith.addf %36, %37 : vector<8x32xf32>
    %cst_30 = arith.constant dense<0.000000e+00> : vector<8x32xf32>
    %39 = tpu.matmul %0, %30, %cst_30 {dimension_numbers = #tpu.dot_dimension_numbers<[1], [0], [0], [1], [0, 0, 1, 1], [], []>} : vector<8x16xf32>, vector<16x32xf32>, vector<8x32xf32> -> vector<8x32xf32>
    %cst_31 = arith.constant dense<0.000000e+00> : vector<16x32xf32>
    %40 = tpu.matmul %0, %38, %cst_31 {dimension_numbers = #tpu.dot_dimension_numbers<[0], [0], [1], [1], [0, 1, 1, 1], [], []>} : vector<8x16xf32>, vector<8x32xf32>, vector<16x32xf32> -> vector<16x32xf32>
    %41 = vector.extract_strided_slice %22 {offsets = [0, 32], sizes = [8, 32], strides = [1, 1]} : vector<8x64xf32> to vector<8x32xf32>
    %cst_32 = arith.constant dense<0.000000e+00> : vector<8x32xf32>
    %42 = tpu.matmul %39, %4, %cst_32 {dimension_numbers = #tpu.dot_dimension_numbers<[1], [0], [0], [1], [0, 0, 1, 1], [], []>} : vector<8x32xf32>, vector<32x32xf32>, vector<8x32xf32> -> vector<8x32xf32>
    %43 = arith.addf %41, %42 : vector<8x32xf32>
    %44 = vector.broadcast %15 : vector<1x32xf32> to vector<8x32xf32>
    %45 = arith.addf %43, %44 : vector<8x32xf32>
    %cst_33 = arith.constant 0.000000e+00 : f32
    %46 = vector.broadcast %cst_33 : f32 to vector<8x32xf32>
    %47 = arith.maximumf %45, %46 : vector<8x32xf32>
    %cst_34 = arith.constant dense<0.000000e+00> : vector<8x32xf32>
    %48 = tpu.matmul %47, %8, %cst_34 {dimension_numbers = #tpu.dot_dimension_numbers<[1], [0], [0], [1], [0, 0, 1, 1], [], []>} : vector<8x32xf32>, vector<32x32xf32>, vector<8x32xf32> -> vector<8x32xf32>
    %49 = vector.broadcast %16 : vector<1x32xf32> to vector<8x32xf32>
    %50 = arith.addf %48, %49 : vector<8x32xf32>
    %51 = vector.extract_strided_slice %21 {offsets = [0, 64], sizes = [16, 32], strides = [1, 1]} : vector<16x96xf32> to vector<16x32xf32>
    %cst_35 = arith.constant dense<0.000000e+00> : vector<16x32xf32>
    %52 = tpu.matmul %1, %51, %cst_35 {dimension_numbers = #tpu.dot_dimension_numbers<[1], [0], [0], [1], [0, 0, 1, 1], [], []>} : vector<16x16xf32>, vector<16x32xf32>, vector<16x32xf32> -> vector<16x32xf32>
    %53 = vector.extract_strided_slice %21 {offsets = [0, 32], sizes = [16, 32], strides = [1, 1]} : vector<16x96xf32> to vector<16x32xf32>
    %cst_36 = arith.constant dense<0.000000e+00> : vector<16x32xf32>
    %54 = tpu.matmul %40, %5, %cst_36 {dimension_numbers = #tpu.dot_dimension_numbers<[1], [0], [0], [1], [0, 0, 1, 1], [], []>} : vector<16x32xf32>, vector<32x32xf32>, vector<16x32xf32> -> vector<16x32xf32>
    %55 = arith.addf %53, %54 : vector<16x32xf32>
    %56 = arith.addf %55, %52 : vector<16x32xf32>
    %57 = vector.broadcast %17 : vector<1x32xf32> to vector<16x32xf32>
    %58 = arith.addf %56, %57 : vector<16x32xf32>
    %cst_37 = arith.constant 0.000000e+00 : f32
    %59 = vector.broadcast %cst_37 : f32 to vector<16x32xf32>
    %60 = arith.maximumf %58, %59 : vector<16x32xf32>
    %cst_38 = arith.constant dense<0.000000e+00> : vector<16x32xf32>
    %61 = tpu.matmul %60, %9, %cst_38 {dimension_numbers = #tpu.dot_dimension_numbers<[1], [0], [0], [1], [0, 0, 1, 1], [], []>} : vector<16x32xf32>, vector<32x32xf32>, vector<16x32xf32> -> vector<16x32xf32>
    %62 = vector.broadcast %18 : vector<1x32xf32> to vector<16x32xf32>
    %63 = arith.addf %61, %62 : vector<16x32xf32>
    %c0_39 = arith.constant 0 : index
    %c0_40 = arith.constant 0 : index
    %64 = vector.load %arg13[%c0_39, %c0_40] : memref<16x128xf32, #tpu.memory_space<vmem>>, vector<16x32xf32>
    tpu.vector_store %arg13[%c0_39, %c0_40], %63 {strides = array<i32>} : memref<16x128xf32, #tpu.memory_space<vmem>>, vector<16x32xf32>,
    %c0_41 = arith.constant 0 : index
    %c0_42 = arith.constant 0 : index
    %65 = vector.load %arg14[%c0_41, %c0_42] : memref<8x128xf32, #tpu.memory_space<vmem>>, vector<8x32xf32>
    tpu.vector_store %arg14[%c0_41, %c0_42], %50 {strides = array<i32>} : memref<8x128xf32, #tpu.memory_space<vmem>>, vector<8x32xf32>,
    %cst_43 = arith.constant dense<0.000000e+00> : vector<16x96xf32>
    %66 = tpu.matmul %63, %2, %cst_43 {dimension_numbers = #tpu.dot_dimension_numbers<[1], [0], [0], [1], [0, 0, 1, 1], [], []>} : vector<16x32xf32>, vector<32x96xf32>, vector<16x96xf32> -> vector<16x96xf32>
    %cst_44 = arith.constant dense<0.000000e+00> : vector<8x64xf32>
    %67 = tpu.matmul %50, %3, %cst_44 {dimension_numbers = #tpu.dot_dimension_numbers<[1], [0], [0], [1], [0, 0, 1, 1], [], []>} : vector<8x32xf32>, vector<32x64xf32>, vector<8x64xf32> -> vector<8x64xf32>
    %68 = vector.extract_strided_slice %66 {offsets = [0, 0], sizes = [16, 32], strides = [1, 1]} : vector<16x96xf32> to vector<16x32xf32>
    %69 = vector.broadcast %11 : vector<1x32xf32> to vector<16x32xf32>
    %70 = arith.addf %68, %69 : vector<16x32xf32>
    %cst_45 = arith.constant 0.000000e+00 : f32
    %71 = vector.broadcast %cst_45 : f32 to vector<16x32xf32>
    %72 = arith.maximumf %70, %71 : vector<16x32xf32>
    %cst_46 = arith.constant dense<0.000000e+00> : vector<16x32xf32>
    %73 = tpu.matmul %72, %6, %cst_46 {dimension_numbers = #tpu.dot_dimension_numbers<[1], [0], [0], [1], [0, 0, 1, 1], [], []>} : vector<16x32xf32>, vector<32x32xf32>, vector<16x32xf32> -> vector<16x32xf32>
    %74 = vector.broadcast %12 : vector<1x32xf32> to vector<16x32xf32>
    %75 = arith.addf %73, %74 : vector<16x32xf32>
    %76 = vector.extract_strided_slice %67 {offsets = [0, 0], sizes = [8, 32], strides = [1, 1]} : vector<8x64xf32> to vector<8x32xf32>
    %77 = vector.broadcast %13 : vector<1x32xf32> to vector<8x32xf32>
    %78 = arith.addf %76, %77 : vector<8x32xf32>
    %cst_47 = arith.constant 0.000000e+00 : f32
    %79 = vector.broadcast %cst_47 : f32 to vector<8x32xf32>
    %80 = arith.maximumf %78, %79 : vector<8x32xf32>
    %cst_48 = arith.constant dense<0.000000e+00> : vector<8x32xf32>
    %81 = tpu.matmul %80, %7, %cst_48 {dimension_numbers = #tpu.dot_dimension_numbers<[1], [0], [0], [1], [0, 0, 1, 1], [], []>} : vector<8x32xf32>, vector<32x32xf32>, vector<8x32xf32> -> vector<8x32xf32>
    %82 = vector.broadcast %14 : vector<1x32xf32> to vector<8x32xf32>
    %83 = arith.addf %81, %82 : vector<8x32xf32>
    %cst_49 = arith.constant dense<0.000000e+00> : vector<8x32xf32>
    %84 = tpu.matmul %0, %75, %cst_49 {dimension_numbers = #tpu.dot_dimension_numbers<[1], [0], [0], [1], [0, 0, 1, 1], [], []>} : vector<8x16xf32>, vector<16x32xf32>, vector<8x32xf32> -> vector<8x32xf32>
    %cst_50 = arith.constant dense<0.000000e+00> : vector<16x32xf32>
    %85 = tpu.matmul %0, %83, %cst_50 {dimension_numbers = #tpu.dot_dimension_numbers<[0], [0], [1], [1], [0, 1, 1, 1], [], []>} : vector<8x16xf32>, vector<8x32xf32>, vector<16x32xf32> -> vector<16x32xf32>
    %86 = vector.extract_strided_slice %67 {offsets = [0, 32], sizes = [8, 32], strides = [1, 1]} : vector<8x64xf32> to vector<8x32xf32>
    %cst_51 = arith.constant dense<0.000000e+00> : vector<8x32xf32>
    %87 = tpu.matmul %84, %4, %cst_51 {dimension_numbers = #tpu.dot_dimension_numbers<[1], [0], [0], [1], [0, 0, 1, 1], [], []>} : vector<8x32xf32>, vector<32x32xf32>, vector<8x32xf32> -> vector<8x32xf32>
    %88 = arith.addf %86, %87 : vector<8x32xf32>
    %89 = vector.broadcast %15 : vector<1x32xf32> to vector<8x32xf32>
    %90 = arith.addf %88, %89 : vector<8x32xf32>
    %cst_52 = arith.constant 0.000000e+00 : f32
    %91 = vector.broadcast %cst_52 : f32 to vector<8x32xf32>
    %92 = arith.maximumf %90, %91 : vector<8x32xf32>
    %cst_53 = arith.constant dense<0.000000e+00> : vector<8x32xf32>
    %93 = tpu.matmul %92, %8, %cst_53 {dimension_numbers = #tpu.dot_dimension_numbers<[1], [0], [0], [1], [0, 0, 1, 1], [], []>} : vector<8x32xf32>, vector<32x32xf32>, vector<8x32xf32> -> vector<8x32xf32>
    %94 = vector.broadcast %16 : vector<1x32xf32> to vector<8x32xf32>
    %95 = arith.addf %93, %94 : vector<8x32xf32>
    %96 = vector.extract_strided_slice %66 {offsets = [0, 64], sizes = [16, 32], strides = [1, 1]} : vector<16x96xf32> to vector<16x32xf32>
    %cst_54 = arith.constant dense<0.000000e+00> : vector<16x32xf32>
    %97 = tpu.matmul %1, %96, %cst_54 {dimension_numbers = #tpu.dot_dimension_numbers<[1], [0], [0], [1], [0, 0, 1, 1], [], []>} : vector<16x16xf32>, vector<16x32xf32>, vector<16x32xf32> -> vector<16x32xf32>
    %98 = vector.extract_strided_slice %66 {offsets = [0, 32], sizes = [16, 32], strides = [1, 1]} : vector<16x96xf32> to vector<16x32xf32>
    %cst_55 = arith.constant dense<0.000000e+00> : vector<16x32xf32>
    %99 = tpu.matmul %85, %5, %cst_55 {dimension_numbers = #tpu.dot_dimension_numbers<[1], [0], [0], [1], [0, 0, 1, 1], [], []>} : vector<16x32xf32>, vector<32x32xf32>, vector<16x32xf32> -> vector<16x32xf32>
    %100 = arith.addf %98, %99 : vector<16x32xf32>
    %101 = arith.addf %100, %97 : vector<16x32xf32>
    %102 = vector.broadcast %17 : vector<1x32xf32> to vector<16x32xf32>
    %103 = arith.addf %101, %102 : vector<16x32xf32>
    %cst_56 = arith.constant 0.000000e+00 : f32
    %104 = vector.broadcast %cst_56 : f32 to vector<16x32xf32>
    %105 = arith.maximumf %103, %104 : vector<16x32xf32>
    %cst_57 = arith.constant dense<0.000000e+00> : vector<16x32xf32>
    %106 = tpu.matmul %105, %9, %cst_57 {dimension_numbers = #tpu.dot_dimension_numbers<[1], [0], [0], [1], [0, 0, 1, 1], [], []>} : vector<16x32xf32>, vector<32x32xf32>, vector<16x32xf32> -> vector<16x32xf32>
    %107 = vector.broadcast %18 : vector<1x32xf32> to vector<16x32xf32>
    %108 = arith.addf %106, %107 : vector<16x32xf32>
    %c0_58 = arith.constant 0 : index
    %c32 = arith.constant 32 : index
    %109 = vector.load %arg13[%c0_58, %c32] : memref<16x128xf32, #tpu.memory_space<vmem>>, vector<16x32xf32>
    tpu.vector_store %arg13[%c0_58, %c32], %108 {strides = array<i32>} : memref<16x128xf32, #tpu.memory_space<vmem>>, vector<16x32xf32>,
    %c0_59 = arith.constant 0 : index
    %c32_60 = arith.constant 32 : index
    %110 = vector.load %arg14[%c0_59, %c32_60] : memref<8x128xf32, #tpu.memory_space<vmem>>, vector<8x32xf32>
    tpu.vector_store %arg14[%c0_59, %c32_60], %95 {strides = array<i32>} : memref<8x128xf32, #tpu.memory_space<vmem>>, vector<8x32xf32>,
    %cst_61 = arith.constant dense<0.000000e+00> : vector<16x96xf32>
    %111 = tpu.matmul %108, %2, %cst_61 {dimension_numbers = #tpu.dot_dimension_numbers<[1], [0], [0], [1], [0, 0, 1, 1], [], []>} : vector<16x32xf32>, vector<32x96xf32>, vector<16x96xf32> -> vector<16x96xf32>
    %cst_62 = arith.constant dense<0.000000e+00> : vector<8x64xf32>
    %112 = tpu.matmul %95, %3, %cst_62 {dimension_numbers = #tpu.dot_dimension_numbers<[1], [0], [0], [1], [0, 0, 1, 1], [], []>} : vector<8x32xf32>, vector<32x64xf32>, vector<8x64xf32> -> vector<8x64xf32>
    %113 = vector.extract_strided_slice %111 {offsets = [0, 0], sizes = [16, 32], strides = [1, 1]} : vector<16x96xf32> to vector<16x32xf32>
    %114 = vector.broadcast %11 : vector<1x32xf32> to vector<16x32xf32>
    %115 = arith.addf %113, %114 : vector<16x32xf32>
    %cst_63 = arith.constant 0.000000e+00 : f32
    %116 = vector.broadcast %cst_63 : f32 to vector<16x32xf32>
    %117 = arith.maximumf %115, %116 : vector<16x32xf32>
    %cst_64 = arith.constant dense<0.000000e+00> : vector<16x32xf32>
    %118 = tpu.matmul %117, %6, %cst_64 {dimension_numbers = #tpu.dot_dimension_numbers<[1], [0], [0], [1], [0, 0, 1, 1], [], []>} : vector<16x32xf32>, vector<32x32xf32>, vector<16x32xf32> -> vector<16x32xf32>
    %119 = vector.broadcast %12 : vector<1x32xf32> to vector<16x32xf32>
    %120 = arith.addf %118, %119 : vector<16x32xf32>
    %121 = vector.extract_strided_slice %112 {offsets = [0, 0], sizes = [8, 32], strides = [1, 1]} : vector<8x64xf32> to vector<8x32xf32>
    %122 = vector.broadcast %13 : vector<1x32xf32> to vector<8x32xf32>
    %123 = arith.addf %121, %122 : vector<8x32xf32>
    %cst_65 = arith.constant 0.000000e+00 : f32
    %124 = vector.broadcast %cst_65 : f32 to vector<8x32xf32>
    %125 = arith.maximumf %123, %124 : vector<8x32xf32>
    %cst_66 = arith.constant dense<0.000000e+00> : vector<8x32xf32>
    %126 = tpu.matmul %125, %7, %cst_66 {dimension_numbers = #tpu.dot_dimension_numbers<[1], [0], [0], [1], [0, 0, 1, 1], [], []>} : vector<8x32xf32>, vector<32x32xf32>, vector<8x32xf32> -> vector<8x32xf32>
    %127 = vector.broadcast %14 : vector<1x32xf32> to vector<8x32xf32>
    %128 = arith.addf %126, %127 : vector<8x32xf32>
    %cst_67 = arith.constant dense<0.000000e+00> : vector<8x32xf32>
    %129 = tpu.matmul %0, %120, %cst_67 {dimension_numbers = #tpu.dot_dimension_numbers<[1], [0], [0], [1], [0, 0, 1, 1], [], []>} : vector<8x16xf32>, vector<16x32xf32>, vector<8x32xf32> -> vector<8x32xf32>
    %cst_68 = arith.constant dense<0.000000e+00> : vector<16x32xf32>
    %130 = tpu.matmul %0, %128, %cst_68 {dimension_numbers = #tpu.dot_dimension_numbers<[0], [0], [1], [1], [0, 1, 1, 1], [], []>} : vector<8x16xf32>, vector<8x32xf32>, vector<16x32xf32> -> vector<16x32xf32>
    %131 = vector.extract_strided_slice %112 {offsets = [0, 32], sizes = [8, 32], strides = [1, 1]} : vector<8x64xf32> to vector<8x32xf32>
    %cst_69 = arith.constant dense<0.000000e+00> : vector<8x32xf32>
    %132 = tpu.matmul %129, %4, %cst_69 {dimension_numbers = #tpu.dot_dimension_numbers<[1], [0], [0], [1], [0, 0, 1, 1], [], []>} : vector<8x32xf32>, vector<32x32xf32>, vector<8x32xf32> -> vector<8x32xf32>
    %133 = arith.addf %131, %132 : vector<8x32xf32>
    %134 = vector.broadcast %15 : vector<1x32xf32> to vector<8x32xf32>
    %135 = arith.addf %133, %134 : vector<8x32xf32>
    %cst_70 = arith.constant 0.000000e+00 : f32
    %136 = vector.broadcast %cst_70 : f32 to vector<8x32xf32>
    %137 = arith.maximumf %135, %136 : vector<8x32xf32>
    %cst_71 = arith.constant dense<0.000000e+00> : vector<8x32xf32>
    %138 = tpu.matmul %137, %8, %cst_71 {dimension_numbers = #tpu.dot_dimension_numbers<[1], [0], [0], [1], [0, 0, 1, 1], [], []>} : vector<8x32xf32>, vector<32x32xf32>, vector<8x32xf32> -> vector<8x32xf32>
    %139 = vector.broadcast %16 : vector<1x32xf32> to vector<8x32xf32>
    %140 = arith.addf %138, %139 : vector<8x32xf32>
    %141 = vector.extract_strided_slice %111 {offsets = [0, 64], sizes = [16, 32], strides = [1, 1]} : vector<16x96xf32> to vector<16x32xf32>
    %cst_72 = arith.constant dense<0.000000e+00> : vector<16x32xf32>
    %142 = tpu.matmul %1, %141, %cst_72 {dimension_numbers = #tpu.dot_dimension_numbers<[1], [0], [0], [1], [0, 0, 1, 1], [], []>} : vector<16x16xf32>, vector<16x32xf32>, vector<16x32xf32> -> vector<16x32xf32>
    %143 = vector.extract_strided_slice %111 {offsets = [0, 32], sizes = [16, 32], strides = [1, 1]} : vector<16x96xf32> to vector<16x32xf32>
    %cst_73 = arith.constant dense<0.000000e+00> : vector<16x32xf32>
    %144 = tpu.matmul %130, %5, %cst_73 {dimension_numbers = #tpu.dot_dimension_numbers<[1], [0], [0], [1], [0, 0, 1, 1], [], []>} : vector<16x32xf32>, vector<32x32xf32>, vector<16x32xf32> -> vector<16x32xf32>
    %145 = arith.addf %143, %144 : vector<16x32xf32>
    %146 = arith.addf %145, %142 : vector<16x32xf32>
    %147 = vector.broadcast %17 : vector<1x32xf32> to vector<16x32xf32>
    %148 = arith.addf %146, %147 : vector<16x32xf32>
    %cst_74 = arith.constant 0.000000e+00 : f32
    %149 = vector.broadcast %cst_74 : f32 to vector<16x32xf32>
    %150 = arith.maximumf %148, %149 : vector<16x32xf32>
    %cst_75 = arith.constant dense<0.000000e+00> : vector<16x32xf32>
    %151 = tpu.matmul %150, %9, %cst_75 {dimension_numbers = #tpu.dot_dimension_numbers<[1], [0], [0], [1], [0, 0, 1, 1], [], []>} : vector<16x32xf32>, vector<32x32xf32>, vector<16x32xf32> -> vector<16x32xf32>
    %152 = vector.broadcast %18 : vector<1x32xf32> to vector<16x32xf32>
    %153 = arith.addf %151, %152 : vector<16x32xf32>
    %c0_76 = arith.constant 0 : index
    %c64 = arith.constant 64 : index
    %154 = vector.load %arg13[%c0_76, %c64] : memref<16x128xf32, #tpu.memory_space<vmem>>, vector<16x32xf32>
    tpu.vector_store %arg13[%c0_76, %c64], %153 {strides = array<i32>} : memref<16x128xf32, #tpu.memory_space<vmem>>, vector<16x32xf32>,
    %c0_77 = arith.constant 0 : index
    %c64_78 = arith.constant 64 : index
    %155 = vector.load %arg14[%c0_77, %c64_78] : memref<8x128xf32, #tpu.memory_space<vmem>>, vector<8x32xf32>
    tpu.vector_store %arg14[%c0_77, %c64_78], %140 {strides = array<i32>} : memref<8x128xf32, #tpu.memory_space<vmem>>, vector<8x32xf32>,
    %cst_79 = arith.constant dense<0.000000e+00> : vector<16x96xf32>
    %156 = tpu.matmul %153, %2, %cst_79 {dimension_numbers = #tpu.dot_dimension_numbers<[1], [0], [0], [1], [0, 0, 1, 1], [], []>} : vector<16x32xf32>, vector<32x96xf32>, vector<16x96xf32> -> vector<16x96xf32>
    %cst_80 = arith.constant dense<0.000000e+00> : vector<8x64xf32>
    %157 = tpu.matmul %140, %3, %cst_80 {dimension_numbers = #tpu.dot_dimension_numbers<[1], [0], [0], [1], [0, 0, 1, 1], [], []>} : vector<8x32xf32>, vector<32x64xf32>, vector<8x64xf32> -> vector<8x64xf32>
    %158 = vector.extract_strided_slice %156 {offsets = [0, 0], sizes = [16, 32], strides = [1, 1]} : vector<16x96xf32> to vector<16x32xf32>
    %159 = vector.broadcast %11 : vector<1x32xf32> to vector<16x32xf32>
    %160 = arith.addf %158, %159 : vector<16x32xf32>
    %cst_81 = arith.constant 0.000000e+00 : f32
    %161 = vector.broadcast %cst_81 : f32 to vector<16x32xf32>
    %162 = arith.maximumf %160, %161 : vector<16x32xf32>
    %cst_82 = arith.constant dense<0.000000e+00> : vector<16x32xf32>
    %163 = tpu.matmul %162, %6, %cst_82 {dimension_numbers = #tpu.dot_dimension_numbers<[1], [0], [0], [1], [0, 0, 1, 1], [], []>} : vector<16x32xf32>, vector<32x32xf32>, vector<16x32xf32> -> vector<16x32xf32>
    %164 = vector.broadcast %12 : vector<1x32xf32> to vector<16x32xf32>
    %165 = arith.addf %163, %164 : vector<16x32xf32>
    %166 = vector.extract_strided_slice %157 {offsets = [0, 0], sizes = [8, 32], strides = [1, 1]} : vector<8x64xf32> to vector<8x32xf32>
    %167 = vector.broadcast %13 : vector<1x32xf32> to vector<8x32xf32>
    %168 = arith.addf %166, %167 : vector<8x32xf32>
    %cst_83 = arith.constant 0.000000e+00 : f32
    %169 = vector.broadcast %cst_83 : f32 to vector<8x32xf32>
    %170 = arith.maximumf %168, %169 : vector<8x32xf32>
    %cst_84 = arith.constant dense<0.000000e+00> : vector<8x32xf32>
    %171 = tpu.matmul %170, %7, %cst_84 {dimension_numbers = #tpu.dot_dimension_numbers<[1], [0], [0], [1], [0, 0, 1, 1], [], []>} : vector<8x32xf32>, vector<32x32xf32>, vector<8x32xf32> -> vector<8x32xf32>
    %172 = vector.broadcast %14 : vector<1x32xf32> to vector<8x32xf32>
    %173 = arith.addf %171, %172 : vector<8x32xf32>
    %cst_85 = arith.constant dense<0.000000e+00> : vector<8x32xf32>
    %174 = tpu.matmul %0, %165, %cst_85 {dimension_numbers = #tpu.dot_dimension_numbers<[1], [0], [0], [1], [0, 0, 1, 1], [], []>} : vector<8x16xf32>, vector<16x32xf32>, vector<8x32xf32> -> vector<8x32xf32>
    %cst_86 = arith.constant dense<0.000000e+00> : vector<16x32xf32>
    %175 = tpu.matmul %0, %173, %cst_86 {dimension_numbers = #tpu.dot_dimension_numbers<[0], [0], [1], [1], [0, 1, 1, 1], [], []>} : vector<8x16xf32>, vector<8x32xf32>, vector<16x32xf32> -> vector<16x32xf32>
    %176 = vector.extract_strided_slice %157 {offsets = [0, 32], sizes = [8, 32], strides = [1, 1]} : vector<8x64xf32> to vector<8x32xf32>
    %cst_87 = arith.constant dense<0.000000e+00> : vector<8x32xf32>
    %177 = tpu.matmul %174, %4, %cst_87 {dimension_numbers = #tpu.dot_dimension_numbers<[1], [0], [0], [1], [0, 0, 1, 1], [], []>} : vector<8x32xf32>, vector<32x32xf32>, vector<8x32xf32> -> vector<8x32xf32>
    %178 = arith.addf %176, %177 : vector<8x32xf32>
    %179 = vector.broadcast %15 : vector<1x32xf32> to vector<8x32xf32>
    %180 = arith.addf %178, %179 : vector<8x32xf32>
    %cst_88 = arith.constant 0.000000e+00 : f32
    %181 = vector.broadcast %cst_88 : f32 to vector<8x32xf32>
    %182 = arith.maximumf %180, %181 : vector<8x32xf32>
    %cst_89 = arith.constant dense<0.000000e+00> : vector<8x32xf32>
    %183 = tpu.matmul %182, %8, %cst_89 {dimension_numbers = #tpu.dot_dimension_numbers<[1], [0], [0], [1], [0, 0, 1, 1], [], []>} : vector<8x32xf32>, vector<32x32xf32>, vector<8x32xf32> -> vector<8x32xf32>
    %184 = vector.broadcast %16 : vector<1x32xf32> to vector<8x32xf32>
    %185 = arith.addf %183, %184 : vector<8x32xf32>
    %186 = vector.extract_strided_slice %156 {offsets = [0, 64], sizes = [16, 32], strides = [1, 1]} : vector<16x96xf32> to vector<16x32xf32>
    %cst_90 = arith.constant dense<0.000000e+00> : vector<16x32xf32>
    %187 = tpu.matmul %1, %186, %cst_90 {dimension_numbers = #tpu.dot_dimension_numbers<[1], [0], [0], [1], [0, 0, 1, 1], [], []>} : vector<16x16xf32>, vector<16x32xf32>, vector<16x32xf32> -> vector<16x32xf32>
    %188 = vector.extract_strided_slice %156 {offsets = [0, 32], sizes = [16, 32], strides = [1, 1]} : vector<16x96xf32> to vector<16x32xf32>
    %cst_91 = arith.constant dense<0.000000e+00> : vector<16x32xf32>
    %189 = tpu.matmul %175, %5, %cst_91 {dimension_numbers = #tpu.dot_dimension_numbers<[1], [0], [0], [1], [0, 0, 1, 1], [], []>} : vector<16x32xf32>, vector<32x32xf32>, vector<16x32xf32> -> vector<16x32xf32>
    %190 = arith.addf %188, %189 : vector<16x32xf32>
    %191 = arith.addf %190, %187 : vector<16x32xf32>
    %192 = vector.broadcast %17 : vector<1x32xf32> to vector<16x32xf32>
    %193 = arith.addf %191, %192 : vector<16x32xf32>
    %cst_92 = arith.constant 0.000000e+00 : f32
    %194 = vector.broadcast %cst_92 : f32 to vector<16x32xf32>
    %195 = arith.maximumf %193, %194 : vector<16x32xf32>
    %cst_93 = arith.constant dense<0.000000e+00> : vector<16x32xf32>
    %196 = tpu.matmul %195, %9, %cst_93 {dimension_numbers = #tpu.dot_dimension_numbers<[1], [0], [0], [1], [0, 0, 1, 1], [], []>} : vector<16x32xf32>, vector<32x32xf32>, vector<16x32xf32> -> vector<16x32xf32>
    %197 = vector.broadcast %18 : vector<1x32xf32> to vector<16x32xf32>
    %198 = arith.addf %196, %197 : vector<16x32xf32>
    %c0_94 = arith.constant 0 : index
    %c96 = arith.constant 96 : index
    %199 = vector.load %arg13[%c0_94, %c96] : memref<16x128xf32, #tpu.memory_space<vmem>>, vector<16x32xf32>
    tpu.vector_store %arg13[%c0_94, %c96], %198 {strides = array<i32>} : memref<16x128xf32, #tpu.memory_space<vmem>>, vector<16x32xf32>,
    %c0_95 = arith.constant 0 : index
    %c96_96 = arith.constant 96 : index
    %200 = vector.load %arg14[%c0_95, %c96_96] : memref<8x128xf32, #tpu.memory_space<vmem>>, vector<8x32xf32>
    tpu.vector_store %arg14[%c0_95, %c96_96], %185 {strides = array<i32>} : memref<8x128xf32, #tpu.memory_space<vmem>>, vector<8x32xf32>,
    return
  }
}

</mosaic_0001>

<llo_original>
// kernel: gin_lcg_forward.1
$region0: #{gin_lcg_forward.1}
  #allocation0 [shape = 'u32[]', space=smem, size = 0x4, offset = 0x4, fixed_abs, tag = 'smem constant byte address 0x4 - core index']
  #allocation1 [shape = 'u32[144,128]{1,0:T(1,128)}', space=vmem, size = 0x12000, scoped, tag = 'internal scratch']
  %s0 = inlined_call_operand.vmem [shape: f32[16,32], index: 0, kind: input, shape index: {}]
  %s1 = inlined_call_operand.vmem [shape: f32[8,32], index: 1, kind: input, shape index: {}]
  %s2 = inlined_call_operand.vmem [shape: f32[8,16], index: 2, kind: input, shape index: {}]
  %s3 = inlined_call_operand.vmem [shape: f32[16,16], index: 3, kind: input, shape index: {}]
  %s4 = inlined_call_operand.vmem [shape: f32[32,96], index: 4, kind: input, shape index: {}]
  %s5 = inlined_call_operand.vmem [shape: f32[32,64], index: 5, kind: input, shape index: {}]
  %s6 = inlined_call_operand.vmem [shape: f32[32,32], index: 6, kind: input, shape index: {}]
  %s7 = inlined_call_operand.vmem [shape: f32[32,32], index: 7, kind: input, shape index: {}]
  %s8 = inlined_call_operand.vmem [shape: f32[32,32], index: 8, kind: input, shape index: {}]
  %s9 = inlined_call_operand.vmem [shape: f32[32,32], index: 9, kind: input, shape index: {}]
  %s10 = inlined_call_operand.vmem [shape: f32[32,32], index: 10, kind: input, shape index: {}]
  %s11 = inlined_call_operand.vmem [shape: f32[32,32], index: 11, kind: input, shape index: {}]
  %s12 = inlined_call_operand.vmem [shape: f32[8,32], index: 12, kind: input, shape index: {}]
  %s13 = inlined_call_operand.vmem [shape: f32[16,128], index: 13, kind: output, shape index: {0}]
  %s14 = inlined_call_operand.vmem [shape: f32[8,128], index: 14, kind: output, shape index: {1}]
  %15 = xla_tuple %s13, %s14
  %s16 = sld [smem:[#allocation0]]
  $region70: #{gin_lcg_forward.1} parent=0
    _
  %s18 = ssub.s32 1, %s16
  %s19 = scalar_select 0, %s18, %s16
  // Predicated region
  $region2: #{gin_lcg_forward.1} parent=0 // pred_check
    _
  $region3: #{gin_lcg_forward.1} parent=0 // pred_check_branch
    %21 = sbr.rel (0) target = $region5
  $region4: #{gin_lcg_forward.1} parent=0 // pred_region
    _
  $region5: #{gin_lcg_forward.1} parent=0 // pred_fallthru
    _
  // Predicated region
  $region6: #{gin_lcg_forward.1} parent=0 // pred_check
    _
  $region7: #{gin_lcg_forward.1} parent=0 // pred_check_branch
    %23 = sbr.rel (0) target = $region9
  $region8: #{gin_lcg_forward.1} parent=0 // pred_region
    _
  $region9: #{gin_lcg_forward.1} parent=0 // pred_fallthru
    _
  // Predicated region
  $region10: #{gin_lcg_forward.1} parent=0 // pred_check
    _
  $region11: #{gin_lcg_forward.1} parent=0 // pred_check_branch
    %25 = sbr.rel (0) target = $region13
  $region12: #{gin_lcg_forward.1} parent=0 // pred_region
    _
  $region13: #{gin_lcg_forward.1} parent=0 // pred_fallthru
    _
  // Predicated region
  $region14: #{gin_lcg_forward.1} parent=0 // pred_check
    _
  $region15: #{gin_lcg_forward.1} parent=0 // pred_check_branch
    %27 = sbr.rel (0) target = $region17
  $region16: #{gin_lcg_forward.1} parent=0 // pred_region
    _
  $region17: #{gin_lcg_forward.1} parent=0 // pred_fallthru
    _
  // Predicated region
  $region18: #{gin_lcg_forward.1} parent=0 // pred_check
    _
  $region19: #{gin_lcg_forward.1} parent=0 // pred_check_branch
    %29 = sbr.rel (0) target = $region21
  $region20: #{gin_lcg_forward.1} parent=0 // pred_region
    _
  $region21: #{gin_lcg_forward.1} parent=0 // pred_fallthru
    _
  // Predicated region
  $region22: #{gin_lcg_forward.1} parent=0 // pred_check
    _
  $region23: #{gin_lcg_forward.1} parent=0 // pred_check_branch
    %31 = sbr.rel (0) target = $region25
  $region24: #{gin_lcg_forward.1} parent=0 // pred_region
    _
  $region25: #{gin_lcg_forward.1} parent=0 // pred_fallthru
    _
  // Predicated region
  $region26: #{gin_lcg_forward.1} parent=0 // pred_check
    _
  $region27: #{gin_lcg_forward.1} parent=0 // pred_check_branch
    %33 = sbr.rel (0) target = $region29
  $region28: #{gin_lcg_forward.1} parent=0 // pred_region
    _
  $region29: #{gin_lcg_forward.1} parent=0 // pred_fallthru
    _
  // Predicated region
  $region30: #{gin_lcg_forward.1} parent=0 // pred_check
    _
  $region31: #{gin_lcg_forward.1} parent=0 // pred_check_branch
    %35 = sbr.rel (0) target = $region33
  $region32: #{gin_lcg_forward.1} parent=0 // pred_region
    _
  $region33: #{gin_lcg_forward.1} parent=0 // pred_fallthru
    _
  // Predicated region
  $region34: #{gin_lcg_forward.1} parent=0 // pred_check
    _
  $region35: #{gin_lcg_forward.1} parent=0 // pred_check_branch
    %37 = sbr.rel (0) target = $region37
  $region36: #{gin_lcg_forward.1} parent=0 // pred_region
    _
  $region37: #{gin_lcg_forward.1} parent=0 // pred_fallthru
    _
  // Predicated region
  $region38: #{gin_lcg_forward.1} parent=0 // pred_check
    _
  $region39: #{gin_lcg_forward.1} parent=0 // pred_check_branch
    %39 = sbr.rel (0) target = $region41
  $region40: #{gin_lcg_forward.1} parent=0 // pred_region
    _
  $region41: #{gin_lcg_forward.1} parent=0 // pred_fallthru
    _
  // Predicated region
  $region42: #{gin_lcg_forward.1} parent=0 // pred_check
    _
  $region43: #{gin_lcg_forward.1} parent=0 // pred_check_branch
    %41 = sbr.rel (0) target = $region45
  $region44: #{gin_lcg_forward.1} parent=0 // pred_region
    _
  $region45: #{gin_lcg_forward.1} parent=0 // pred_fallthru
    _
  // Predicated region
  $region46: #{gin_lcg_forward.1} parent=0 // pred_check
    _
  $region47: #{gin_lcg_forward.1} parent=0 // pred_check_branch
    %43 = sbr.rel (0) target = $region49
  $region48: #{gin_lcg_forward.1} parent=0 // pred_region
    _
  $region49: #{gin_lcg_forward.1} parent=0 // pred_fallthru
    _
  // Predicated region
  $region50: #{gin_lcg_forward.1} parent=0 // pred_check
    _
  $region51: #{gin_lcg_forward.1} parent=0 // pred_check_branch
    %45 = sbr.rel (0) target = $region53
  $region52: #{gin_lcg_forward.1} parent=0 // pred_region
    _
  $region53: #{gin_lcg_forward.1} parent=0 // pred_fallthru
    _
  %v46 = vld [vmem:[%s2] sm:$0xff]
  %v47 = vld [vmem:[%s3] sm:$0xff]
  %v48 = vld [vmem:[%s3 + $0x8] sm:$0xff]
  %v49 = vld [vmem:[%s4] sm:$0xff]
  %v50 = vld [vmem:[%s4 + $0x8] sm:$0xff]
  %v51 = vld [vmem:[%s4 + $0x10] sm:$0xff]
  %v52 = vld [vmem:[%s4 + $0x18] sm:$0xff]
  %v53 = vld [vmem:[%s5] sm:$0xff]
  %v54 = vld [vmem:[%s5 + $0x8] sm:$0xff]
  %v55 = vld [vmem:[%s5 + $0x10] sm:$0xff]
  %v56 = vld [vmem:[%s5 + $0x18] sm:$0xff]
  %v57 = vld [vmem:[%s6] sm:$0xff]
  %v58 = vld [vmem:[%s6 + $0x8] sm:$0xff]
  %v59 = vld [vmem:[%s6 + $0x10] sm:$0xff]
  %v60 = vld [vmem:[%s6 + $0x18] sm:$0xff]
  %v61 = vld [vmem:[%s7] sm:$0xff]
  %v62 = vld [vmem:[%s7 + $0x8] sm:$0xff]
  %v63 = vld [vmem:[%s7 + $0x10] sm:$0xff]
  %v64 = vld [vmem:[%s7 + $0x18] sm:$0xff]
  %v65 = vld [vmem:[%s8] sm:$0xff]
  %v66 = vld [vmem:[%s8 + $0x8] sm:$0xff]
  %v67 = vld [vmem:[%s8 + $0x10] sm:$0xff]
  %v68 = vld [vmem:[%s8 + $0x18] sm:$0xff]
  %v69 = vld [vmem:[%s9] sm:$0xff]
  %v70 = vld [vmem:[%s9 + $0x8] sm:$0xff]
  %v71 = vld [vmem:[%s9 + $0x10] sm:$0xff]
  %v72 = vld [vmem:[%s9 + $0x18] sm:$0xff]
  %v73 = vld [vmem:[%s10] sm:$0xff]
  %v74 = vld [vmem:[%s10 + $0x8] sm:$0xff]
  %v75 = vld [vmem:[%s10 + $0x10] sm:$0xff]
  %v76 = vld [vmem:[%s10 + $0x18] sm:$0xff]
  %v77 = vld [vmem:[%s11] sm:$0xff]
  %v78 = vld [vmem:[%s11 + $0x8] sm:$0xff]
  %v79 = vld [vmem:[%s11 + $0x10] sm:$0xff]
  %v80 = vld [vmem:[%s11 + $0x18] sm:$0xff]
  %v81 = vld [vmem:[%s12] sm:$0xff]
  %v82 = vld [vmem:[%s0] sm:$0xff]
  %v83 = vld [vmem:[%s0 + $0x8] sm:$0xff]
  %v84 = vld [vmem:[%s1] sm:$0xff]
  %vm85 = vcmask 261120
  %v87 = vsel %vm85, %v82, 0
  %v90 = vsel %vm85, %v83, 0
  %92 = vmatprep.subr.mxu0 0.0
  %93 = vmatpush1.msra.mxu0 %v49
  %94 = vmatprep.subr.mxu0 0.0
  %95 = vmatpush1.msra.mxu0 %v50
  %96 = vmatprep.subr.mxu0 0.0
  %97 = vmatpush1.msra.mxu0 %v51
  %98 = vmatprep.subr.mxu0 0.0
  %99 = vmatpush1.msra.mxu0 %v52
  %100 = vmatprep.subr.mxu0 0.0
  %101 = vmatpush1.msra.mxu0 0.0
  %102 = vmatprep.subr.mxu0 0.0
  %103 = vmatpush1.msra.mxu0 0.0
  %104 = vmatprep.subr.mxu0 0.0
  %105 = vmatpush1.msra.mxu0 0.0
  %106 = vmatprep.subr.mxu0 0.0
  %107 = vmatpush1.msra.mxu0 0.0
  %108 = vmatprep.subr.mxu0 0.0
  %109 = vmatpush1.msra.mxu0 0.0
  %110 = vmatprep.subr.mxu0 0.0
  %111 = vmatpush1.msra.mxu0 0.0
  %112 = vmatprep.subr.mxu0 0.0
  %113 = vmatpush1.msra.mxu0 0.0
  %114 = vmatprep.subr.mxu0 0.0
  %115 = vmatpush1.msra.mxu0 0.0
  %116 = vmatprep.subr.mxu0 0.0
  %117 = vmatpush1.msra.mxu0 0.0
  %118 = vmatprep.subr.mxu0 0.0
  %119 = vmatpush1.msra.mxu0 0.0
  %120 = vmatprep.subr.mxu0 0.0
  %121 = vmatpush1.msra.mxu0 0.0
  %122 = vmatprep.subr.mxu0 0.0
  %123 = vmatpush1.msra.mxu0 0.0
  %124 = vmatprep.subr.mxu0 0.0
  %125 = vmatpush1.msra.mxu0 0.0
  %126 = vmatprep.subr.mxu0 0.0
  %127 = vmatpush1.msra.mxu0 0.0
  %128 = vmatprep.subr.mxu0 0.0
  %129 = vmatpush1.msra.mxu0 0.0
  %130 = vmatprep.subr.mxu0 0.0
  %131 = vmatpush1.msra.mxu0 0.0
  %132 = vmatprep.subr.mxu0 0.0
  %133 = vmatpush1.msra.mxu0 0.0
  %134 = vmatprep.subr.mxu0 0.0
  %135 = vmatpush1.msra.mxu0 0.0
  %136 = vmatprep.subr.mxu0 0.0
  %137 = vmatpush1.msra.mxu0 0.0
  %138 = vmatprep.subr.mxu0 0.0
  %139 = vmatpush1.msra.mxu0 0.0
  %140 = vmatprep.subr.mxu0 0.0
  %141 = vmatpush1.msra.mxu0 0.0
  %142 = vmatprep.subr.mxu0 0.0
  %143 = vmatpush1.msra.mxu0 0.0
  %144 = vmatprep.subr.mxu0 0.0
  %145 = vmatpush1.msra.mxu0 0.0
  %146 = vmatprep.subr.mxu0 0.0
  %147 = vmatpush1.msra.mxu0 0.0
  %148 = vmatprep.subr.mxu0 0.0
  %149 = vmatpush1.msra.mxu0 0.0
  %150 = vmatprep.subr.mxu0 0.0
  %151 = vmatpush1.msra.mxu0 0.0
  %152 = vmatprep.subr.mxu0 0.0
  %153 = vmatpush1.msra.mxu0 0.0
  %154 = vmatprep.subr.mxu0 0.0
  %155 = vmatpush1.msra.mxu0 0.0
  %156 = vmatprep.mubr.f32.mxu0 0.0
  %157 = vmatmul.mubr.f32.gmra.mrb[0].mxu0 %v87
  %v158 = vpop.f32.mrb[0].mxu0
  %v159 = vadd.f32 0.0, %v158
  %v160 = vpop.f32.mrb[0].mxu0
  %161 = vmatprep.mubr.f32.mxu0 0.0
  %162 = vmatmul.mubr.f32.gmra.mrb[0].mxu0 %v90
  %v163 = vpop.f32.mrb[0].mxu0
  %v164 = vadd.f32 0.0, %v163
  %v165 = vpop.f32.mrb[0].mxu0
  %166 = vdwg.mxu0
  %v168 = vsel %vm85, %v84, 0
  %170 = vmatprep.subr.mxu0 0.0
  %171 = vmatpush1.msra.mxu0 %v53
  %172 = vmatprep.subr.mxu0 0.0
  %173 = vmatpush1.msra.mxu0 %v54
  %174 = vmatprep.subr.mxu0 0.0
  %175 = vmatpush1.msra.mxu0 %v55
  %176 = vmatprep.subr.mxu0 0.0
  %177 = vmatpush1.msra.mxu0 %v56
  %178 = vmatprep.subr.mxu0 0.0
  %179 = vmatpush1.msra.mxu0 0.0
  %180 = vmatprep.subr.mxu0 0.0
  %181 = vmatpush1.msra.mxu0 0.0
  %182 = vmatprep.subr.mxu0 0.0
  %183 = vmatpush1.msra.mxu0 0.0
  %184 = vmatprep.subr.mxu0 0.0
  %185 = vmatpush1.msra.mxu0 0.0
  %186 = vmatprep.subr.mxu0 0.0
  %187 = vmatpush1.msra.mxu0 0.0
  %188 = vmatprep.subr.mxu0 0.0
  %189 = vmatpush1.msra.mxu0 0.0
  %190 = vmatprep.subr.mxu0 0.0
  %191 = vmatpush1.msra.mxu0 0.0
  %192 = vmatprep.subr.mxu0 0.0
  %193 = vmatpush1.msra.mxu0 0.0
  %194 = vmatprep.subr.mxu0 0.0
  %195 = vmatpush1.msra.mxu0 0.0
  %196 = vmatprep.subr.mxu0 0.0
  %197 = vmatpush1.msra.mxu0 0.0
  %198 = vmatprep.subr.mxu0 0.0
  %199 = vmatpush1.msra.mxu0 0.0
  %200 = vmatprep.subr.mxu0 0.0
  %201 = vmatpush1.msra.mxu0 0.0
  %202 = vmatprep.subr.mxu0 0.0
  %203 = vmatpush1.msra.mxu0 0.0
  %204 = vmatprep.subr.mxu0 0.0
  %205 = vmatpush1.msra.mxu0 0.0
  %206 = vmatprep.subr.mxu0 0.0
  %207 = vmatpush1.msra.mxu0 0.0
  %208 = vmatprep.subr.mxu0 0.0
  %209 = vmatpush1.msra.mxu0 0.0
  %210 = vmatprep.subr.mxu0 0.0
  %211 = vmatpush1.msra.mxu0 0.0
  %212 = vmatprep.subr.mxu0 0.0
  %213 = vmatpush1.msra.mxu0 0.0
  %214 = vmatprep.subr.mxu0 0.0
  %215 = vmatpush1.msra.mxu0 0.0
  %216 = vmatprep.subr.mxu0 0.0
  %217 = vmatpush1.msra.mxu0 0.0
  %218 = vmatprep.subr.mxu0 0.0
  %219 = vmatpush1.msra.mxu0 0.0
  %220 = vmatprep.subr.mxu0 0.0
  %221 = vmatpush1.msra.mxu0 0.0
  %222 = vmatprep.subr.mxu0 0.0
  %223 = vmatpush1.msra.mxu0 0.0
  %224 = vmatprep.subr.mxu0 0.0
  %225 = vmatpush1.msra.mxu0 0.0
  %226 = vmatprep.subr.mxu0 0.0
  %227 = vmatpush1.msra.mxu0 0.0
  %228 = vmatprep.subr.mxu0 0.0
  %229 = vmatpush1.msra.mxu0 0.0
  %230 = vmatprep.subr.mxu0 0.0
  %231 = vmatpush1.msra.mxu0 0.0
  %232 = vmatprep.subr.mxu0 0.0
  %233 = vmatpush1.msra.mxu0 0.0
  %234 = vmatprep.mubr.f32.mxu0 0.0
  %235 = vmatmul.mubr.f32.gmra.mrb[0].mxu0 %v168
  %v236 = vpop.f32.mrb[0].mxu0
  %v237 = vadd.f32 0.0, %v236
  %v238 = vpop.f32.mrb[0].mxu0
  %239 = vdwg.mxu0
  %v240 = vlaneseq
  %v241 = vshrl.u32 %v240, 7
  %v242 = vsub.s32 0, %v241
  %v243 = vrot.slane %v81, %v242
  %v244 = vadd.f32 %v159, %v243
  %v245 = vadd.f32 %v164, %v243
  %v246 = vmax.f32 %v244, 0.0
  %v247 = vmax.f32 %v245, 0.0
  %v248 = vlaneseq
  %v249 = vshrl.u32 %v248, 7
  %v250 = vsub.s32 1, %v249
  %v251 = vrot.slane %v81, %v250
  %v253 = vsel %vm85, %v246, 0
  %v256 = vsel %vm85, %v247, 0
  %258 = vmatprep.subr.mxu0 0.0
  %259 = vmatpush1.msra.mxu0 %v65
  %260 = vmatprep.subr.mxu0 0.0
  %261 = vmatpush1.msra.mxu0 %v66
  %262 = vmatprep.subr.mxu0 0.0
  %263 = vmatpush1.msra.mxu0 %v67
  %264 = vmatprep.subr.mxu0 0.0
  %265 = vmatpush1.msra.mxu0 %v68
  %266 = vmatprep.subr.mxu0 0.0
  %267 = vmatpush1.msra.mxu0 0.0
  %268 = vmatprep.subr.mxu0 0.0
  %269 = vmatpush1.msra.mxu0 0.0
  %270 = vmatprep.subr.mxu0 0.0
  %271 = vmatpush1.msra.mxu0 0.0
  %272 = vmatprep.subr.mxu0 0.0
  %273 = vmatpush1.msra.mxu0 0.0
  %274 = vmatprep.subr.mxu0 0.0
  %275 = vmatpush1.msra.mxu0 0.0
  %276 = vmatprep.subr.mxu0 0.0
  %277 = vmatpush1.msra.mxu0 0.0
  %278 = vmatprep.subr.mxu0 0.0
  %279 = vmatpush1.msra.mxu0 0.0
  %280 = vmatprep.subr.mxu0 0.0
  %281 = vmatpush1.msra.mxu0 0.0
  %282 = vmatprep.subr.mxu0 0.0
  %283 = vmatpush1.msra.mxu0 0.0
  %284 = vmatprep.subr.mxu0 0.0
  %285 = vmatpush1.msra.mxu0 0.0
  %286 = vmatprep.subr.mxu0 0.0
  %287 = vmatpush1.msra.mxu0 0.0
  %288 = vmatprep.subr.mxu0 0.0
  %289 = vmatpush1.msra.mxu0 0.0
  %290 = vmatprep.subr.mxu0 0.0
  %291 = vmatpush1.msra.mxu0 0.0
  %292 = vmatprep.subr.mxu0 0.0
  %293 = vmatpush1.msra.mxu0 0.0
  %294 = vmatprep.subr.mxu0 0.0
  %295 = vmatpush1.msra.mxu0 0.0
  %296 = vmatprep.subr.mxu0 0.0
  %297 = vmatpush1.msra.mxu0 0.0
  %298 = vmatprep.subr.mxu0 0.0
  %299 = vmatpush1.msra.mxu0 0.0
  %300 = vmatprep.subr.mxu0 0.0
  %301 = vmatpush1.msra.mxu0 0.0
  %302 = vmatprep.subr.mxu0 0.0
  %303 = vmatpush1.msra.mxu0 0.0
  %304 = vmatprep.subr.mxu0 0.0
  %305 = vmatpush1.msra.mxu0 0.0
  %306 = vmatprep.subr.mxu0 0.0
  %307 = vmatpush1.msra.mxu0 0.0
  %308 = vmatprep.subr.mxu0 0.0
  %309 = vmatpush1.msra.mxu0 0.0
  %310 = vmatprep.subr.mxu0 0.0
  %311 = vmatpush1.msra.mxu0 0.0
  %312 = vmatprep.subr.mxu0 0.0
  %313 = vmatpush1.msra.mxu0 0.0
  %314 = vmatprep.subr.mxu0 0.0
  %315 = vmatpush1.msra.mxu0 0.0
  %316 = vmatprep.subr.mxu0 0.0
  %317 = vmatpush1.msra.mxu0 0.0
  %318 = vmatprep.subr.mxu0 0.0
  %319 = vmatpush1.msra.mxu0 0.0
  %320 = vmatprep.subr.mxu0 0.0
  %321 = vmatpush1.msra.mxu0 0.0
  %322 = vmatprep.mubr.f32.mxu0 0.0
  %323 = vmatmul.mubr.f32.gmra.mrb[0].mxu0 %v253
  %v324 = vpop.f32.mrb[0].mxu0
  %v325 = vadd.f32 %v251, %v324
  %v326 = vpop.f32.mrb[0].mxu0
  %327 = vmatprep.mubr.f32.mxu0 0.0
  %328 = vmatmul.mubr.f32.gmra.mrb[0].mxu0 %v256
  %v329 = vpop.f32.mrb[0].mxu0
  %v330 = vadd.f32 %v251, %v329
  %v331 = vpop.f32.mrb[0].mxu0
  %332 = vdwg.mxu0
  %v333 = vlaneseq
  %v334 = vshrl.u32 %v333, 7
  %v335 = vsub.s32 2, %v334
  %v336 = vrot.slane %v81, %v335
  %v337 = vadd.f32 %v237, %v336
  %v338 = vmax.f32 %v337, 0.0
  %v339 = vlaneseq
  %v340 = vshrl.u32 %v339, 7
  %v341 = vsub.s32 3, %v340
  %v342 = vrot.slane %v81, %v341
  %v344 = vsel %vm85, %v338, 0
  %346 = vmatprep.subr.mxu0 0.0
  %347 = vmatpush1.msra.mxu0 %v69
  %348 = vmatprep.subr.mxu0 0.0
  %349 = vmatpush1.msra.mxu0 %v70
  %350 = vmatprep.subr.mxu0 0.0
  %351 = vmatpush1.msra.mxu0 %v71
  %352 = vmatprep.subr.mxu0 0.0
  %353 = vmatpush1.msra.mxu0 %v72
  %354 = vmatprep.subr.mxu0 0.0
  %355 = vmatpush1.msra.mxu0 0.0
  %356 = vmatprep.subr.mxu0 0.0
  %357 = vmatpush1.msra.mxu0 0.0
  %358 = vmatprep.subr.mxu0 0.0
  %359 = vmatpush1.msra.mxu0 0.0
  %360 = vmatprep.subr.mxu0 0.0
  %361 = vmatpush1.msra.mxu0 0.0
  %362 = vmatprep.subr.mxu0 0.0
  %363 = vmatpush1.msra.mxu0 0.0
  %364 = vmatprep.subr.mxu0 0.0
  %365 = vmatpush1.msra.mxu0 0.0
  %366 = vmatprep.subr.mxu0 0.0
  %367 = vmatpush1.msra.mxu0 0.0
  %368 = vmatprep.subr.mxu0 0.0
  %369 = vmatpush1.msra.mxu0 0.0
  %370 = vmatprep.subr.mxu0 0.0
  %371 = vmatpush1.msra.mxu0 0.0
  %372 = vmatprep.subr.mxu0 0.0
  %373 = vmatpush1.msra.mxu0 0.0
  %374 = vmatprep.subr.mxu0 0.0
  %375 = vmatpush1.msra.mxu0 0.0
  %376 = vmatprep.subr.mxu0 0.0
  %377 = vmatpush1.msra.mxu0 0.0
  %378 = vmatprep.subr.mxu0 0.0
  %379 = vmatpush1.msra.mxu0 0.0
  %380 = vmatprep.subr.mxu0 0.0
  %381 = vmatpush1.msra.mxu0 0.0
  %382 = vmatprep.subr.mxu0 0.0
  %383 = vmatpush1.msra.mxu0 0.0
  %384 = vmatprep.subr.mxu0 0.0
  %385 = vmatpush1.msra.mxu0 0.0
  %386 = vmatprep.subr.mxu0 0.0
  %387 = vmatpush1.msra.mxu0 0.0
  %388 = vmatprep.subr.mxu0 0.0
  %389 = vmatpush1.msra.mxu0 0.0
  %390 = vmatprep.subr.mxu0 0.0
  %391 = vmatpush1.msra.mxu0 0.0
  %392 = vmatprep.subr.mxu0 0.0
  %393 = vmatpush1.msra.mxu0 0.0
  %394 = vmatprep.subr.mxu0 0.0
  %395 = vmatpush1.msra.mxu0 0.0
  %396 = vmatprep.subr.mxu0 0.0
  %397 = vmatpush1.msra.mxu0 0.0
  %398 = vmatprep.subr.mxu0 0.0
  %399 = vmatpush1.msra.mxu0 0.0
  %400 = vmatprep.subr.mxu0 0.0
  %401 = vmatpush1.msra.mxu0 0.0
  %402 = vmatprep.subr.mxu0 0.0
  %403 = vmatpush1.msra.mxu0 0.0
  %404 = vmatprep.subr.mxu0 0.0
  %405 = vmatpush1.msra.mxu0 0.0
  %406 = vmatprep.subr.mxu0 0.0
  %407 = vmatpush1.msra.mxu0 0.0
  %408 = vmatprep.subr.mxu0 0.0
  %409 = vmatpush1.msra.mxu0 0.0
  %410 = vmatprep.mubr.f32.mxu0 0.0
  %411 = vmatmul.mubr.f32.gmra.mrb[0].mxu0 %v344
  %v412 = vpop.f32.mrb[0].mxu0
  %v413 = vadd.f32 %v342, %v412
  %v414 = vpop.f32.mrb[0].mxu0
  %415 = vdwg.mxu0
  %vm416 = vcmask 130048
  %v418 = vsel %vm416, %v46, 0
  %420 = vmatprep.subr.mxu0 0.0
  %421 = vmatpush1.msra.mxu0 %v325
  %422 = vmatprep.subr.mxu0 0.0
  %423 = vmatpush1.msra.mxu0 %v330
  %424 = vmatprep.subr.mxu0 0.0
  %425 = vmatpush1.msra.mxu0 0.0
  %426 = vmatprep.subr.mxu0 0.0
  %427 = vmatpush1.msra.mxu0 0.0
  %428 = vmatprep.subr.mxu0 0.0
  %429 = vmatpush1.msra.mxu0 0.0
  %430 = vmatprep.subr.mxu0 0.0
  %431 = vmatpush1.msra.mxu0 0.0
  %432 = vmatprep.subr.mxu0 0.0
  %433 = vmatpush1.msra.mxu0 0.0
  %434 = vmatprep.subr.mxu0 0.0
  %435 = vmatpush1.msra.mxu0 0.0
  %436 = vmatprep.subr.mxu0 0.0
  %437 = vmatpush1.msra.mxu0 0.0
  %438 = vmatprep.subr.mxu0 0.0
  %439 = vmatpush1.msra.mxu0 0.0
  %440 = vmatprep.subr.mxu0 0.0
  %441 = vmatpush1.msra.mxu0 0.0
  %442 = vmatprep.subr.mxu0 0.0
  %443 = vmatpush1.msra.mxu0 0.0
  %444 = vmatprep.subr.mxu0 0.0
  %445 = vmatpush1.msra.mxu0 0.0
  %446 = vmatprep.subr.mxu0 0.0
  %447 = vmatpush1.msra.mxu0 0.0
  %448 = vmatprep.subr.mxu0 0.0
  %449 = vmatpush1.msra.mxu0 0.0
  %450 = vmatprep.subr.mxu0 0.0
  %451 = vmatpush1.msra.mxu0 0.0
  %452 = vmatprep.subr.mxu0 0.0
  %453 = vmatpush1.msra.mxu0 0.0
  %454 = vmatprep.subr.mxu0 0.0
  %455 = vmatpush1.msra.mxu0 0.0
  %456 = vmatprep.subr.mxu0 0.0
  %457 = vmatpush1.msra.mxu0 0.0
  %458 = vmatprep.subr.mxu0 0.0
  %459 = vmatpush1.msra.mxu0 0.0
  %460 = vmatprep.subr.mxu0 0.0
  %461 = vmatpush1.msra.mxu0 0.0
  %462 = vmatprep.subr.mxu0 0.0
  %463 = vmatpush1.msra.mxu0 0.0
  %464 = vmatprep.subr.mxu0 0.0
  %465 = vmatpush1.msra.mxu0 0.0
  %466 = vmatprep.subr.mxu0 0.0
  %467 = vmatpush1.msra.mxu0 0.0
  %468 = vmatprep.subr.mxu0 0.0
  %469 = vmatpush1.msra.mxu0 0.0
  %470 = vmatprep.subr.mxu0 0.0
  %471 = vmatpush1.msra.mxu0 0.0
  %472 = vmatprep.subr.mxu0 0.0
  %473 = vmatpush1.msra.mxu0 0.0
  %474 = vmatprep.subr.mxu0 0.0
  %475 = vmatpush1.msra.mxu0 0.0
  %476 = vmatprep.subr.mxu0 0.0
  %477 = vmatpush1.msra.mxu0 0.0
  %478 = vmatprep.subr.mxu0 0.0
  %479 = vmatpush1.msra.mxu0 0.0
  %480 = vmatprep.subr.mxu0 0.0
  %481 = vmatpush1.msra.mxu0 0.0
  %482 = vmatprep.subr.mxu0 0.0
  %483 = vmatpush1.msra.mxu0 0.0
  %484 = vmatprep.mubr.f32.mxu0 0.0
  %485 = vmatmul.mubr.f32.gmra.mrb[0].mxu0 %v418
  %v486 = vpop.f32.mrb[0].mxu0
  %v487 = vadd.f32 0.0, %v486
  %v488 = vpop.f32.mrb[0].mxu0
  %489 = vdwg.mxu0
  %490 = vxpose.xlu0.b32.start [1/16] %v46, 128
  %491 = vxpose.xlu0.b32.cont [2/16] 0.0, 128
  %492 = vxpose.xlu0.b32.cont [3/16] 0.0, 128
  %493 = vxpose.xlu0.b32.cont [4/16] 0.0, 128
  %494 = vxpose.xlu0.b32.cont [5/16] 0.0, 128
  %495 = vxpose.xlu0.b32.cont [6/16] 0.0, 128
  %496 = vxpose.xlu0.b32.cont [7/16] 0.0, 128
  %497 = vxpose.xlu0.b32.cont [8/16] 0.0, 128
  %498 = vxpose.xlu0.b32.cont [9/16] 0.0, 128
  %499 = vxpose.xlu0.b32.cont [10/16] 0.0, 128
  %500 = vxpose.xlu0.b32.cont [11/16] 0.0, 128
  %501 = vxpose.xlu0.b32.cont [12/16] 0.0, 128
  %502 = vxpose.xlu0.b32.cont [13/16] 0.0, 128
  %503 = vxpose.xlu0.b32.cont [14/16] 0.0, 128
  %504 = vxpose.xlu0.b32.cont [15/16] 0.0, 128
  %505 = vxpose.xlu0.b32.end [16/16] 0.0, 128
  %v506 = vpop.trf.xlu0
  %v507 = vpop.trf.xlu0
  %v508 = vpop.trf.xlu0
  %v509 = vpop.trf.xlu0
  %v510 = vpop.trf.xlu0
  %v511 = vpop.trf.xlu0
  %v512 = vpop.trf.xlu0
  %v513 = vpop.trf.xlu0
  %v514 = vpop.trf.xlu0
  %v515 = vpop.trf.xlu0
  %v516 = vpop.trf.xlu0
  %v517 = vpop.trf.xlu0
  %v518 = vpop.trf.xlu0
  %v519 = vpop.trf.xlu0
  %v520 = vpop.trf.xlu0
  %v521 = vpop.trf.xlu0
  %vm522 = vcmask 64512
  %v524 = vsel %vm522, %v506, 0
  %v527 = vsel %vm522, %v507, 0
  %529 = vmatprep.subr.mxu0 0.0
  %530 = vmatpush1.msra.mxu0 %v413
  %531 = vmatprep.subr.mxu0 0.0
  %532 = vmatpush1.msra.mxu0 0.0
  %533 = vmatprep.subr.mxu0 0.0
  %534 = vmatpush1.msra.mxu0 0.0
  %535 = vmatprep.subr.mxu0 0.0
  %536 = vmatpush1.msra.mxu0 0.0
  %537 = vmatprep.subr.mxu0 0.0
  %538 = vmatpush1.msra.mxu0 0.0
  %539 = vmatprep.subr.mxu0 0.0
  %540 = vmatpush1.msra.mxu0 0.0
  %541 = vmatprep.subr.mxu0 0.0
  %542 = vmatpush1.msra.mxu0 0.0
  %543 = vmatprep.subr.mxu0 0.0
  %544 = vmatpush1.msra.mxu0 0.0
  %545 = vmatprep.subr.mxu0 0.0
  %546 = vmatpush1.msra.mxu0 0.0
  %547 = vmatprep.subr.mxu0 0.0
  %548 = vmatpush1.msra.mxu0 0.0
  %549 = vmatprep.subr.mxu0 0.0
  %550 = vmatpush1.msra.mxu0 0.0
  %551 = vmatprep.subr.mxu0 0.0
  %552 = vmatpush1.msra.mxu0 0.0
  %553 = vmatprep.subr.mxu0 0.0
  %554 = vmatpush1.msra.mxu0 0.0
  %555 = vmatprep.subr.mxu0 0.0
  %556 = vmatpush1.msra.mxu0 0.0
  %557 = vmatprep.subr.mxu0 0.0
  %558 = vmatpush1.msra.mxu0 0.0
  %559 = vmatprep.subr.mxu0 0.0
  %560 = vmatpush1.msra.mxu0 0.0
  %561 = vmatprep.subr.mxu0 0.0
  %562 = vmatpush1.msra.mxu0 0.0
  %563 = vmatprep.subr.mxu0 0.0
  %564 = vmatpush1.msra.mxu0 0.0
  %565 = vmatprep.subr.mxu0 0.0
  %566 = vmatpush1.msra.mxu0 0.0
  %567 = vmatprep.subr.mxu0 0.0
  %568 = vmatpush1.msra.mxu0 0.0
  %569 = vmatprep.subr.mxu0 0.0
  %570 = vmatpush1.msra.mxu0 0.0
  %571 = vmatprep.subr.mxu0 0.0
  %572 = vmatpush1.msra.mxu0 0.0
  %573 = vmatprep.subr.mxu0 0.0
  %574 = vmatpush1.msra.mxu0 0.0
  %575 = vmatprep.subr.mxu0 0.0
  %576 = vmatpush1.msra.mxu0 0.0
  %577 = vmatprep.subr.mxu0 0.0
  %578 = vmatpush1.msra.mxu0 0.0
  %579 = vmatprep.subr.mxu0 0.0
  %580 = vmatpush1.msra.mxu0 0.0
  %581 = vmatprep.subr.mxu0 0.0
  %582 = vmatpush1.msra.mxu0 0.0
  %583 = vmatprep.subr.mxu0 0.0
  %584 = vmatpush1.msra.mxu0 0.0
  %585 = vmatprep.subr.mxu0 0.0
  %586 = vmatpush1.msra.mxu0 0.0
  %587 = vmatprep.subr.mxu0 0.0
  %588 = vmatpush1.msra.mxu0 0.0
  %589 = vmatprep.subr.mxu0 0.0
  %590 = vmatpush1.msra.mxu0 0.0
  %591 = vmatprep.subr.mxu0 0.0
  %592 = vmatpush1.msra.mxu0 0.0
  %593 = vmatprep.mubr.f32.mxu0 0.0
  %594 = vmatmul.mubr.f32.gmra.mrb[0].mxu0 %v524
  %v595 = vpop.f32.mrb[0].mxu0
  %v596 = vadd.f32 0.0, %v595
  %v597 = vpop.f32.mrb[0].mxu0
  %598 = vmatprep.mubr.f32.mxu0 0.0
  %599 = vmatmul.mubr.f32.gmra.mrb[0].mxu0 %v527
  %v600 = vpop.f32.mrb[0].mxu0
  %v601 = vadd.f32 0.0, %v600
  %v602 = vpop.f32.mrb[0].mxu0
  %603 = vdwg.mxu0
  %v605 = vsel %vm85, %v487, 0
  %607 = vmatprep.subr.mxu0 0.0
  %608 = vmatpush1.msra.mxu0 %v57
  %609 = vmatprep.subr.mxu0 0.0
  %610 = vmatpush1.msra.mxu0 %v58
  %611 = vmatprep.subr.mxu0 0.0
  %612 = vmatpush1.msra.mxu0 %v59
  %613 = vmatprep.subr.mxu0 0.0
  %614 = vmatpush1.msra.mxu0 %v60
  %615 = vmatprep.subr.mxu0 0.0
  %616 = vmatpush1.msra.mxu0 0.0
  %617 = vmatprep.subr.mxu0 0.0
  %618 = vmatpush1.msra.mxu0 0.0
  %619 = vmatprep.subr.mxu0 0.0
  %620 = vmatpush1.msra.mxu0 0.0
  %621 = vmatprep.subr.mxu0 0.0
  %622 = vmatpush1.msra.mxu0 0.0
  %623 = vmatprep.subr.mxu0 0.0
  %624 = vmatpush1.msra.mxu0 0.0
  %625 = vmatprep.subr.mxu0 0.0
  %626 = vmatpush1.msra.mxu0 0.0
  %627 = vmatprep.subr.mxu0 0.0
  %628 = vmatpush1.msra.mxu0 0.0
  %629 = vmatprep.subr.mxu0 0.0
  %630 = vmatpush1.msra.mxu0 0.0
  %631 = vmatprep.subr.mxu0 0.0
  %632 = vmatpush1.msra.mxu0 0.0
  %633 = vmatprep.subr.mxu0 0.0
  %634 = vmatpush1.msra.mxu0 0.0
  %635 = vmatprep.subr.mxu0 0.0
  %636 = vmatpush1.msra.mxu0 0.0
  %637 = vmatprep.subr.mxu0 0.0
  %638 = vmatpush1.msra.mxu0 0.0
  %639 = vmatprep.subr.mxu0 0.0
  %640 = vmatpush1.msra.mxu0 0.0
  %641 = vmatprep.subr.mxu0 0.0
  %642 = vmatpush1.msra.mxu0 0.0
  %643 = vmatprep.subr.mxu0 0.0
  %644 = vmatpush1.msra.mxu0 0.0
  %645 = vmatprep.subr.mxu0 0.0
  %646 = vmatpush1.msra.mxu0 0.0
  %647 = vmatprep.subr.mxu0 0.0
  %648 = vmatpush1.msra.mxu0 0.0
  %649 = vmatprep.subr.mxu0 0.0
  %650 = vmatpush1.msra.mxu0 0.0
  %651 = vmatprep.subr.mxu0 0.0
  %652 = vmatpush1.msra.mxu0 0.0
  %653 = vmatprep.subr.mxu0 0.0
  %654 = vmatpush1.msra.mxu0 0.0
  %655 = vmatprep.subr.mxu0 0.0
  %656 = vmatpush1.msra.mxu0 0.0
  %657 = vmatprep.subr.mxu0 0.0
  %658 = vmatpush1.msra.mxu0 0.0
  %659 = vmatprep.subr.mxu0 0.0
  %660 = vmatpush1.msra.mxu0 0.0
  %661 = vmatprep.subr.mxu0 0.0
  %662 = vmatpush1.msra.mxu0 0.0
  %663 = vmatprep.subr.mxu0 0.0
  %664 = vmatpush1.msra.mxu0 0.0
  %665 = vmatprep.subr.mxu0 0.0
  %666 = vmatpush1.msra.mxu0 0.0
  %667 = vmatprep.subr.mxu0 0.0
  %668 = vmatpush1.msra.mxu0 0.0
  %669 = vmatprep.subr.mxu0 0.0
  %670 = vmatpush1.msra.mxu0 0.0
  %671 = vmatprep.mubr.f32.mxu0 0.0
  %672 = vmatmul.mubr.f32.gmra.mrb[0].mxu0 %v605
  %v673 = vpop.f32.mrb[0].mxu0
  %v674 = vadd.f32 0.0, %v673
  %v675 = vpop.f32.mrb[0].mxu0
  %676 = vdwg.mxu0
  %678 = vrot.lane.b32.xlu0 %v674, 32
  %v679 = vpop.permute.xlu0 %678
  %v681 = vadd.f32 %v237, %v679
  %v682 = vlaneseq
  %v683 = vshrl.u32 %v682, 7
  %v684 = vsub.s32 4, %v683
  %v685 = vrot.slane %v81, %v684
  %687 = vrot.lane.b32.xlu0 %v685, 32
  %v688 = vpop.permute.xlu0 %687
  %v690 = vadd.f32 %v681, %v688
  %v691 = vmax.f32 %v690, 0.0
  %v692 = vlaneseq
  %v693 = vshrl.u32 %v692, 7
  %v694 = vsub.s32 5, %v693
  %v695 = vrot.slane %v81, %v694
  %697 = vrot.lane.b32.xlu0 %v691, 96
  %v698 = vpop.permute.xlu0 %697
  %v699 = vsel %vm85, %v698, 0
  %701 = vmatprep.subr.mxu0 0.0
  %702 = vmatpush1.msra.mxu0 %v73
  %703 = vmatprep.subr.mxu0 0.0
  %704 = vmatpush1.msra.mxu0 %v74
  %705 = vmatprep.subr.mxu0 0.0
  %706 = vmatpush1.msra.mxu0 %v75
  %707 = vmatprep.subr.mxu0 0.0
  %708 = vmatpush1.msra.mxu0 %v76
  %709 = vmatprep.subr.mxu0 0.0
  %710 = vmatpush1.msra.mxu0 0.0
  %711 = vmatprep.subr.mxu0 0.0
  %712 = vmatpush1.msra.mxu0 0.0
  %713 = vmatprep.subr.mxu0 0.0
  %714 = vmatpush1.msra.mxu0 0.0
  %715 = vmatprep.subr.mxu0 0.0
  %716 = vmatpush1.msra.mxu0 0.0
  %717 = vmatprep.subr.mxu0 0.0
  %718 = vmatpush1.msra.mxu0 0.0
  %719 = vmatprep.subr.mxu0 0.0
  %720 = vmatpush1.msra.mxu0 0.0
  %721 = vmatprep.subr.mxu0 0.0
  %722 = vmatpush1.msra.mxu0 0.0
  %723 = vmatprep.subr.mxu0 0.0
  %724 = vmatpush1.msra.mxu0 0.0
  %725 = vmatprep.subr.mxu0 0.0
  %726 = vmatpush1.msra.mxu0 0.0
  %727 = vmatprep.subr.mxu0 0.0
  %728 = vmatpush1.msra.mxu0 0.0
  %729 = vmatprep.subr.mxu0 0.0
  %730 = vmatpush1.msra.mxu0 0.0
  %731 = vmatprep.subr.mxu0 0.0
  %732 = vmatpush1.msra.mxu0 0.0
  %733 = vmatprep.subr.mxu0 0.0
  %734 = vmatpush1.msra.mxu0 0.0
  %735 = vmatprep.subr.mxu0 0.0
  %736 = vmatpush1.msra.mxu0 0.0
  %737 = vmatprep.subr.mxu0 0.0
  %738 = vmatpush1.msra.mxu0 0.0
  %739 = vmatprep.subr.mxu0 0.0
  %740 = vmatpush1.msra.mxu0 0.0
  %741 = vmatprep.subr.mxu0 0.0
  %742 = vmatpush1.msra.mxu0 0.0
  %743 = vmatprep.subr.mxu0 0.0
  %744 = vmatpush1.msra.mxu0 0.0
  %745 = vmatprep.subr.mxu0 0.0
  %746 = vmatpush1.msra.mxu0 0.0
  %747 = vmatprep.subr.mxu0 0.0
  %748 = vmatpush1.msra.mxu0 0.0
  %749 = vmatprep.subr.mxu0 0.0
  %750 = vmatpush1.msra.mxu0 0.0
  %751 = vmatprep.subr.mxu0 0.0
  %752 = vmatpush1.msra.mxu0 0.0
  %753 = vmatprep.subr.mxu0 0.0
  %754 = vmatpush1.msra.mxu0 0.0
  %755 = vmatprep.subr.mxu0 0.0
  %756 = vmatpush1.msra.mxu0 0.0
  %757 = vmatprep.subr.mxu0 0.0
  %758 = vmatpush1.msra.mxu0 0.0
  %759 = vmatprep.subr.mxu0 0.0
  %760 = vmatpush1.msra.mxu0 0.0
  %761 = vmatprep.subr.mxu0 0.0
  %762 = vmatpush1.msra.mxu0 0.0
  %763 = vmatprep.subr.mxu0 0.0
  %764 = vmatpush1.msra.mxu0 0.0
  %765 = vmatprep.mubr.f32.mxu0 0.0
  %766 = vmatmul.mubr.f32.gmra.mrb[0].mxu0 %v699
  %v767 = vpop.f32.mrb[0].mxu0
  %v768 = vadd.f32 %v695, %v767
  %v769 = vpop.f32.mrb[0].mxu0
  %770 = vdwg.mxu0
  %773 = vrot.lane.b32.xlu0 %v159, 64
  %v774 = vpop.permute.xlu0 %773
  %775 = vrot.lane.b32.xlu0 %v164, 64
  %v776 = vpop.permute.xlu0 %775
  %v780 = vsel %vm416, %v47, 0
  %v783 = vsel %vm416, %v48, 0
  %785 = vmatprep.subr.mxu0 0.0
  %786 = vmatpush1.msra.mxu0 %v774
  %787 = vmatprep.subr.mxu0 0.0
  %788 = vmatpush1.msra.mxu0 %v776
  %789 = vmatprep.subr.mxu0 0.0
  %790 = vmatpush1.msra.mxu0 0.0
  %791 = vmatprep.subr.mxu0 0.0
  %792 = vmatpush1.msra.mxu0 0.0
  %793 = vmatprep.subr.mxu0 0.0
  %794 = vmatpush1.msra.mxu0 0.0
  %795 = vmatprep.subr.mxu0 0.0
  %796 = vmatpush1.msra.mxu0 0.0
  %797 = vmatprep.subr.mxu0 0.0
  %798 = vmatpush1.msra.mxu0 0.0
  %799 = vmatprep.subr.mxu0 0.0
  %800 = vmatpush1.msra.mxu0 0.0
  %801 = vmatprep.subr.mxu0 0.0
  %802 = vmatpush1.msra.mxu0 0.0
  %803 = vmatprep.subr.mxu0 0.0
  %804 = vmatpush1.msra.mxu0 0.0
  %805 = vmatprep.subr.mxu0 0.0
  %806 = vmatpush1.msra.mxu0 0.0
  %807 = vmatprep.subr.mxu0 0.0
  %808 = vmatpush1.msra.mxu0 0.0
  %809 = vmatprep.subr.mxu0 0.0
  %810 = vmatpush1.msra.mxu0 0.0
  %811 = vmatprep.subr.mxu0 0.0
  %812 = vmatpush1.msra.mxu0 0.0
  %813 = vmatprep.subr.mxu0 0.0
  %814 = vmatpush1.msra.mxu0 0.0
  %815 = vmatprep.subr.mxu0 0.0
  %816 = vmatpush1.msra.mxu0 0.0
  %817 = vmatprep.subr.mxu0 0.0
  %818 = vmatpush1.msra.mxu0 0.0
  %819 = vmatprep.subr.mxu0 0.0
  %820 = vmatpush1.msra.mxu0 0.0
  %821 = vmatprep.subr.mxu0 0.0
  %822 = vmatpush1.msra.mxu0 0.0
  %823 = vmatprep.subr.mxu0 0.0
  %824 = vmatpush1.msra.mxu0 0.0
  %825 = vmatprep.subr.mxu0 0.0
  %826 = vmatpush1.msra.mxu0 0.0
  %827 = vmatprep.subr.mxu0 0.0
  %828 = vmatpush1.msra.mxu0 0.0
  %829 = vmatprep.subr.mxu0 0.0
  %830 = vmatpush1.msra.mxu0 0.0
  %831 = vmatprep.subr.mxu0 0.0
  %832 = vmatpush1.msra.mxu0 0.0
  %833 = vmatprep.subr.mxu0 0.0
  %834 = vmatpush1.msra.mxu0 0.0
  %835 = vmatprep.subr.mxu0 0.0
  %836 = vmatpush1.msra.mxu0 0.0
  %837 = vmatprep.subr.mxu0 0.0
  %838 = vmatpush1.msra.mxu0 0.0
  %839 = vmatprep.subr.mxu0 0.0
  %840 = vmatpush1.msra.mxu0 0.0
  %841 = vmatprep.subr.mxu0 0.0
  %842 = vmatpush1.msra.mxu0 0.0
  %843 = vmatprep.subr.mxu0 0.0
  %844 = vmatpush1.msra.mxu0 0.0
  %845 = vmatprep.subr.mxu0 0.0
  %846 = vmatpush1.msra.mxu0 0.0
  %847 = vmatprep.subr.mxu0 0.0
  %848 = vmatpush1.msra.mxu0 0.0
  %849 = vmatprep.mubr.f32.mxu0 0.0
  %850 = vmatmul.mubr.f32.gmra.mrb[0].mxu0 %v780
  %v851 = vpop.f32.mrb[0].mxu0
  %v852 = vadd.f32 0.0, %v851
  %v853 = vpop.f32.mrb[0].mxu0
  %854 = vmatprep.mubr.f32.mxu0 0.0
  %855 = vmatmul.mubr.f32.gmra.mrb[0].mxu0 %v783
  %v856 = vpop.f32.mrb[0].mxu0
  %v857 = vadd.f32 0.0, %v856
  %v858 = vpop.f32.mrb[0].mxu0
  %859 = vdwg.mxu0
  %v861 = vsel %vm85, %v596, 0
  %v864 = vsel %vm85, %v601, 0
  %866 = vmatprep.subr.mxu0 0.0
  %867 = vmatpush1.msra.mxu0 %v61
  %868 = vmatprep.subr.mxu0 0.0
  %869 = vmatpush1.msra.mxu0 %v62
  %870 = vmatprep.subr.mxu0 0.0
  %871 = vmatpush1.msra.mxu0 %v63
  %872 = vmatprep.subr.mxu0 0.0
  %873 = vmatpush1.msra.mxu0 %v64
  %874 = vmatprep.subr.mxu0 0.0
  %875 = vmatpush1.msra.mxu0 0.0
  %876 = vmatprep.subr.mxu0 0.0
  %877 = vmatpush1.msra.mxu0 0.0
  %878 = vmatprep.subr.mxu0 0.0
  %879 = vmatpush1.msra.mxu0 0.0
  %880 = vmatprep.subr.mxu0 0.0
  %881 = vmatpush1.msra.mxu0 0.0
  %882 = vmatprep.subr.mxu0 0.0
  %883 = vmatpush1.msra.mxu0 0.0
  %884 = vmatprep.subr.mxu0 0.0
  %885 = vmatpush1.msra.mxu0 0.0
  %886 = vmatprep.subr.mxu0 0.0
  %887 = vmatpush1.msra.mxu0 0.0
  %888 = vmatprep.subr.mxu0 0.0
  %889 = vmatpush1.msra.mxu0 0.0
  %890 = vmatprep.subr.mxu0 0.0
  %891 = vmatpush1.msra.mxu0 0.0
  %892 = vmatprep.subr.mxu0 0.0
  %893 = vmatpush1.msra.mxu0 0.0
  %894 = vmatprep.subr.mxu0 0.0
  %895 = vmatpush1.msra.mxu0 0.0
  %896 = vmatprep.subr.mxu0 0.0
  %897 = vmatpush1.msra.mxu0 0.0
  %898 = vmatprep.subr.mxu0 0.0
  %899 = vmatpush1.msra.mxu0 0.0
  %900 = vmatprep.subr.mxu0 0.0
  %901 = vmatpush1.msra.mxu0 0.0
  %902 = vmatprep.subr.mxu0 0.0
  %903 = vmatpush1.msra.mxu0 0.0
  %904 = vmatprep.subr.mxu0 0.0
  %905 = vmatpush1.msra.mxu0 0.0
  %906 = vmatprep.subr.mxu0 0.0
  %907 = vmatpush1.msra.mxu0 0.0
  %908 = vmatprep.subr.mxu0 0.0
  %909 = vmatpush1.msra.mxu0 0.0
  %910 = vmatprep.subr.mxu0 0.0
  %911 = vmatpush1.msra.mxu0 0.0
  %912 = vmatprep.subr.mxu0 0.0
  %913 = vmatpush1.msra.mxu0 0.0
  %914 = vmatprep.subr.mxu0 0.0
  %915 = vmatpush1.msra.mxu0 0.0
  %916 = vmatprep.subr.mxu0 0.0
  %917 = vmatpush1.msra.mxu0 0.0
  %918 = vmatprep.subr.mxu0 0.0
  %919 = vmatpush1.msra.mxu0 0.0
  %920 = vmatprep.subr.mxu0 0.0
  %921 = vmatpush1.msra.mxu0 0.0
  %922 = vmatprep.subr.mxu0 0.0
  %923 = vmatpush1.msra.mxu0 0.0
  %924 = vmatprep.subr.mxu0 0.0
  %925 = vmatpush1.msra.mxu0 0.0
  %926 = vmatprep.subr.mxu0 0.0
  %927 = vmatpush1.msra.mxu0 0.0
  %928 = vmatprep.subr.mxu0 0.0
  %929 = vmatpush1.msra.mxu0 0.0
  %930 = vmatprep.mubr.f32.mxu0 0.0
  %931 = vmatmul.mubr.f32.gmra.mrb[0].mxu0 %v861
  %v932 = vpop.f32.mrb[0].mxu0
  %v933 = vadd.f32 0.0, %v932
  %v934 = vpop.f32.mrb[0].mxu0
  %935 = vmatprep.mubr.f32.mxu0 0.0
  %936 = vmatmul.mubr.f32.gmra.mrb[0].mxu0 %v864
  %v937 = vpop.f32.mrb[0].mxu0
  %v938 = vadd.f32 0.0, %v937
  %v939 = vpop.f32.mrb[0].mxu0
  %940 = vdwg.mxu0
  %943 = vrot.lane.b32.xlu0 %v933, 32
  %v944 = vpop.permute.xlu0 %943
  %945 = vrot.lane.b32.xlu0 %v938, 32
  %v946 = vpop.permute.xlu0 %945
  %v949 = vadd.f32 %v159, %v944
  %v950 = vadd.f32 %v164, %v946
  %953 = vrot.lane.b32.xlu0 %v852, 32
  %v954 = vpop.permute.xlu0 %953
  %955 = vrot.lane.b32.xlu0 %v857, 32
  %v956 = vpop.permute.xlu0 %955
  %v959 = vadd.f32 %v949, %v954
  %v960 = vadd.f32 %v950, %v956
  %v961 = vlaneseq
  %v962 = vshrl.u32 %v961, 7
  %v963 = vsub.s32 6, %v962
  %v964 = vrot.slane %v81, %v963
  %966 = vrot.lane.b32.xlu0 %v964, 32
  %v967 = vpop.permute.xlu0 %966
  %v969 = vadd.f32 %v959, %v967
  %v970 = vadd.f32 %v960, %v967
  %v971 = vmax.f32 %v969, 0.0
  %v972 = vmax.f32 %v970, 0.0
  %v973 = vlaneseq
  %v974 = vshrl.u32 %v973, 7
  %v975 = vsub.s32 7, %v974
  %v976 = vrot.slane %v81, %v975
  %979 = vrot.lane.b32.xlu0 %v971, 96
  %v980 = vpop.permute.xlu0 %979
  %981 = vrot.lane.b32.xlu0 %v972, 96
  %v982 = vpop.permute.xlu0 %981
  %v983 = vsel %vm85, %v980, 0
  %v985 = vsel %vm85, %v982, 0
  %987 = vmatprep.subr.mxu0 0.0
  %988 = vmatpush1.msra.mxu0 %v77
  %989 = vmatprep.subr.mxu0 0.0
  %990 = vmatpush1.msra.mxu0 %v78
  %991 = vmatprep.subr.mxu0 0.0
  %992 = vmatpush1.msra.mxu0 %v79
  %993 = vmatprep.subr.mxu0 0.0
  %994 = vmatpush1.msra.mxu0 %v80
  %995 = vmatprep.subr.mxu0 0.0
  %996 = vmatpush1.msra.mxu0 0.0
  %997 = vmatprep.subr.mxu0 0.0
  %998 = vmatpush1.msra.mxu0 0.0
  %999 = vmatprep.subr.mxu0 0.0
  %1000 = vmatpush1.msra.mxu0 0.0
  %1001 = vmatprep.subr.mxu0 0.0
  %1002 = vmatpush1.msra.mxu0 0.0
  %1003 = vmatprep.subr.mxu0 0.0
  %1004 = vmatpush1.msra.mxu0 0.0
  %1005 = vmatprep.subr.mxu0 0.0
  %1006 = vmatpush1.msra.mxu0 0.0
  %1007 = vmatprep.subr.mxu0 0.0
  %1008 = vmatpush1.msra.mxu0 0.0
  %1009 = vmatprep.subr.mxu0 0.0
  %1010 = vmatpush1.msra.mxu0 0.0
  %1011 = vmatprep.subr.mxu0 0.0
  %1012 = vmatpush1.msra.mxu0 0.0
  %1013 = vmatprep.subr.mxu0 0.0
  %1014 = vmatpush1.msra.mxu0 0.0
  %1015 = vmatprep.subr.mxu0 0.0
  %1016 = vmatpush1.msra.mxu0 0.0
  %1017 = vmatprep.subr.mxu0 0.0
  %1018 = vmatpush1.msra.mxu0 0.0
  %1019 = vmatprep.subr.mxu0 0.0
  %1020 = vmatpush1.msra.mxu0 0.0
  %1021 = vmatprep.subr.mxu0 0.0
  %1022 = vmatpush1.msra.mxu0 0.0
  %1023 = vmatprep.subr.mxu0 0.0
  %1024 = vmatpush1.msra.mxu0 0.0
  %1025 = vmatprep.subr.mxu0 0.0
  %1026 = vmatpush1.msra.mxu0 0.0
  %1027 = vmatprep.subr.mxu0 0.0
  %1028 = vmatpush1.msra.mxu0 0.0
  %1029 = vmatprep.subr.mxu0 0.0
  %1030 = vmatpush1.msra.mxu0 0.0
  %1031 = vmatprep.subr.mxu0 0.0
  %1032 = vmatpush1.msra.mxu0 0.0
  %1033 = vmatprep.subr.mxu0 0.0
  %1034 = vmatpush1.msra.mxu0 0.0
  %1035 = vmatprep.subr.mxu0 0.0
  %1036 = vmatpush1.msra.mxu0 0.0
  %1037 = vmatprep.subr.mxu0 0.0
  %1038 = vmatpush1.msra.mxu0 0.0
  %1039 = vmatprep.subr.mxu0 0.0
  %1040 = vmatpush1.msra.mxu0 0.0
  %1041 = vmatprep.subr.mxu0 0.0
  %1042 = vmatpush1.msra.mxu0 0.0
  %1043 = vmatprep.subr.mxu0 0.0
  %1044 = vmatpush1.msra.mxu0 0.0
  %1045 = vmatprep.subr.mxu0 0.0
  %1046 = vmatpush1.msra.mxu0 0.0
  %1047 = vmatprep.subr.mxu0 0.0
  %1048 = vmatpush1.msra.mxu0 0.0
  %1049 = vmatprep.subr.mxu0 0.0
  %1050 = vmatpush1.msra.mxu0 0.0
  %1051 = vmatprep.mubr.f32.mxu0 0.0
  %1052 = vmatmul.mubr.f32.gmra.mrb[0].mxu0 %v983
  %v1053 = vpop.f32.mrb[0].mxu0
  %v1054 = vadd.f32 %v976, %v1053
  %v1055 = vpop.f32.mrb[0].mxu0
  %1056 = vmatprep.mubr.f32.mxu0 0.0
  %1057 = vmatmul.mubr.f32.gmra.mrb[0].mxu0 %v985
  %v1058 = vpop.f32.mrb[0].mxu0
  %v1059 = vadd.f32 %v976, %v1058
  %v1060 = vpop.f32.mrb[0].mxu0
  %1061 = vdwg.mxu0
  %1062 = vst.msk [vmem:[%s13] sm:$0xff] %vm85, %v1054
  %1063 = vst.msk [vmem:[%s13 + $0x8] sm:$0xff] %vm85, %v1059
  %1064 = vst.msk [vmem:[%s14] sm:$0xff] %vm85, %v768
  %v1066 = vsel %vm85, %v1054, 0
  %v1069 = vsel %vm85, %v1059, 0
  %1071 = vmatprep.subr.mxu0 0.0
  %1072 = vmatpush1.msra.mxu0 %v49
  %1073 = vmatprep.subr.mxu0 0.0
  %1074 = vmatpush1.msra.mxu0 %v50
  %1075 = vmatprep.subr.mxu0 0.0
  %1076 = vmatpush1.msra.mxu0 %v51
  %1077 = vmatprep.subr.mxu0 0.0
  %1078 = vmatpush1.msra.mxu0 %v52
  %1079 = vmatprep.subr.mxu0 0.0
  %1080 = vmatpush1.msra.mxu0 0.0
  %1081 = vmatprep.subr.mxu0 0.0
  %1082 = vmatpush1.msra.mxu0 0.0
  %1083 = vmatprep.subr.mxu0 0.0
  %1084 = vmatpush1.msra.mxu0 0.0
  %1085 = vmatprep.subr.mxu0 0.0
  %1086 = vmatpush1.msra.mxu0 0.0
  %1087 = vmatprep.subr.mxu0 0.0
  %1088 = vmatpush1.msra.mxu0 0.0
  %1089 = vmatprep.subr.mxu0 0.0
  %1090 = vmatpush1.msra.mxu0 0.0
  %1091 = vmatprep.subr.mxu0 0.0
  %1092 = vmatpush1.msra.mxu0 0.0
  %1093 = vmatprep.subr.mxu0 0.0
  %1094 = vmatpush1.msra.mxu0 0.0
  %1095 = vmatprep.subr.mxu0 0.0
  %1096 = vmatpush1.msra.mxu0 0.0
  %1097 = vmatprep.subr.mxu0 0.0
  %1098 = vmatpush1.msra.mxu0 0.0
  %1099 = vmatprep.subr.mxu0 0.0
  %1100 = vmatpush1.msra.mxu0 0.0
  %1101 = vmatprep.subr.mxu0 0.0
  %1102 = vmatpush1.msra.mxu0 0.0
  %1103 = vmatprep.subr.mxu0 0.0
  %1104 = vmatpush1.msra.mxu0 0.0
  %1105 = vmatprep.subr.mxu0 0.0
  %1106 = vmatpush1.msra.mxu0 0.0
  %1107 = vmatprep.subr.mxu0 0.0
  %1108 = vmatpush1.msra.mxu0 0.0
  %1109 = vmatprep.subr.mxu0 0.0
  %1110 = vmatpush1.msra.mxu0 0.0
  %1111 = vmatprep.subr.mxu0 0.0
  %1112 = vmatpush1.msra.mxu0 0.0
  %1113 = vmatprep.subr.mxu0 0.0
  %1114 = vmatpush1.msra.mxu0 0.0
  %1115 = vmatprep.subr.mxu0 0.0
  %1116 = vmatpush1.msra.mxu0 0.0
  %1117 = vmatprep.subr.mxu0 0.0
  %1118 = vmatpush1.msra.mxu0 0.0
  %1119 = vmatprep.subr.mxu0 0.0
  %1120 = vmatpush1.msra.mxu0 0.0
  %1121 = vmatprep.subr.mxu0 0.0
  %1122 = vmatpush1.msra.mxu0 0.0
  %1123 = vmatprep.subr.mxu0 0.0
  %1124 = vmatpush1.msra.mxu0 0.0
  %1125 = vmatprep.subr.mxu0 0.0
  %1126 = vmatpush1.msra.mxu0 0.0
  %1127 = vmatprep.subr.mxu0 0.0
  %1128 = vmatpush1.msra.mxu0 0.0
  %1129 = vmatprep.subr.mxu0 0.0
  %1130 = vmatpush1.msra.mxu0 0.0
  %1131 = vmatprep.subr.mxu0 0.0
  %1132 = vmatpush1.msra.mxu0 0.0
  %1133 = vmatprep.subr.mxu0 0.0
  %1134 = vmatpush1.msra.mxu0 0.0
  %1135 = vmatprep.mubr.f32.mxu0 0.0
  %1136 = vmatmul.mubr.f32.gmra.mrb[0].mxu0 %v1066
  %v1137 = vpop.f32.mrb[0].mxu0
  %v1138 = vadd.f32 0.0, %v1137
  %v1139 = vpop.f32.mrb[0].mxu0
  %1140 = vmatprep.mubr.f32.mxu0 0.0
  %1141 = vmatmul.mubr.f32.gmra.mrb[0].mxu0 %v1069
  %v1142 = vpop.f32.mrb[0].mxu0
  %v1143 = vadd.f32 0.0, %v1142
  %v1144 = vpop.f32.mrb[0].mxu0
  %1145 = vdwg.mxu0
  %v1147 = vsel %vm85, %v768, 0
  %1149 = vmatprep.subr.mxu0 0.0
  %1150 = vmatpush1.msra.mxu0 %v53
  %1151 = vmatprep.subr.mxu0 0.0
  %1152 = vmatpush1.msra.mxu0 %v54
  %1153 = vmatprep.subr.mxu0 0.0
  %1154 = vmatpush1.msra.mxu0 %v55
  %1155 = vmatprep.subr.mxu0 0.0
  %1156 = vmatpush1.msra.mxu0 %v56
  %1157 = vmatprep.subr.mxu0 0.0
  %1158 = vmatpush1.msra.mxu0 0.0
  %1159 = vmatprep.subr.mxu0 0.0
  %1160 = vmatpush1.msra.mxu0 0.0
  %1161 = vmatprep.subr.mxu0 0.0
  %1162 = vmatpush1.msra.mxu0 0.0
  %1163 = vmatprep.subr.mxu0 0.0
  %1164 = vmatpush1.msra.mxu0 0.0
  %1165 = vmatprep.subr.mxu0 0.0
  %1166 = vmatpush1.msra.mxu0 0.0
  %1167 = vmatprep.subr.mxu0 0.0
  %1168 = vmatpush1.msra.mxu0 0.0
  %1169 = vmatprep.subr.mxu0 0.0
  %1170 = vmatpush1.msra.mxu0 0.0
  %1171 = vmatprep.subr.mxu0 0.0
  %1172 = vmatpush1.msra.mxu0 0.0
  %1173 = vmatprep.subr.mxu0 0.0
  %1174 = vmatpush1.msra.mxu0 0.0
  %1175 = vmatprep.subr.mxu0 0.0
  %1176 = vmatpush1.msra.mxu0 0.0
  %1177 = vmatprep.subr.mxu0 0.0
  %1178 = vmatpush1.msra.mxu0 0.0
  %1179 = vmatprep.subr.mxu0 0.0
  %1180 = vmatpush1.msra.mxu0 0.0
  %1181 = vmatprep.subr.mxu0 0.0
  %1182 = vmatpush1.msra.mxu0 0.0
  %1183 = vmatprep.subr.mxu0 0.0
  %1184 = vmatpush1.msra.mxu0 0.0
  %1185 = vmatprep.subr.mxu0 0.0
  %1186 = vmatpush1.msra.mxu0 0.0
  %1187 = vmatprep.subr.mxu0 0.0
  %1188 = vmatpush1.msra.mxu0 0.0
  %1189 = vmatprep.subr.mxu0 0.0
  %1190 = vmatpush1.msra.mxu0 0.0
  %1191 = vmatprep.subr.mxu0 0.0
  %1192 = vmatpush1.msra.mxu0 0.0
  %1193 = vmatprep.subr.mxu0 0.0
  %1194 = vmatpush1.msra.mxu0 0.0
  %1195 = vmatprep.subr.mxu0 0.0
  %1196 = vmatpush1.msra.mxu0 0.0
  %1197 = vmatprep.subr.mxu0 0.0
  %1198 = vmatpush1.msra.mxu0 0.0
  %1199 = vmatprep.subr.mxu0 0.0
  %1200 = vmatpush1.msra.mxu0 0.0
  %1201 = vmatprep.subr.mxu0 0.0
  %1202 = vmatpush1.msra.mxu0 0.0
  %1203 = vmatprep.subr.mxu0 0.0
  %1204 = vmatpush1.msra.mxu0 0.0
  %1205 = vmatprep.subr.mxu0 0.0
  %1206 = vmatpush1.msra.mxu0 0.0
  %1207 = vmatprep.subr.mxu0 0.0
  %1208 = vmatpush1.msra.mxu0 0.0
  %1209 = vmatprep.subr.mxu0 0.0
  %1210 = vmatpush1.msra.mxu0 0.0
  %1211 = vmatprep.subr.mxu0 0.0
  %1212 = vmatpush1.msra.mxu0 0.0
  %1213 = vmatprep.mubr.f32.mxu0 0.0
  %1214 = vmatmul.mubr.f32.gmra.mrb[0].mxu0 %v1147
  %v1215 = vpop.f32.mrb[0].mxu0
  %v1216 = vadd.f32 0.0, %v1215
  %v1217 = vpop.f32.mrb[0].mxu0
  %1218 = vdwg.mxu0
  %v1219 = vadd.f32 %v1138, %v243
  %v1220 = vadd.f32 %v1143, %v243
  %v1221 = vmax.f32 %v1219, 0.0
  %v1222 = vmax.f32 %v1220, 0.0
  %v1224 = vsel %vm85, %v1221, 0
  %v1227 = vsel %vm85, %v1222, 0
  %1229 = vmatprep.subr.mxu0 0.0
  %1230 = vmatpush1.msra.mxu0 %v65
  %1231 = vmatprep.subr.mxu0 0.0
  %1232 = vmatpush1.msra.mxu0 %v66
  %1233 = vmatprep.subr.mxu0 0.0
  %1234 = vmatpush1.msra.mxu0 %v67
  %1235 = vmatprep.subr.mxu0 0.0
  %1236 = vmatpush1.msra.mxu0 %v68
  %1237 = vmatprep.subr.mxu0 0.0
  %1238 = vmatpush1.msra.mxu0 0.0
  %1239 = vmatprep.subr.mxu0 0.0
  %1240 = vmatpush1.msra.mxu0 0.0
  %1241 = vmatprep.subr.mxu0 0.0
  %1242 = vmatpush1.msra.mxu0 0.0
  %1243 = vmatprep.subr.mxu0 0.0
  %1244 = vmatpush1.msra.mxu0 0.0
  %1245 = vmatprep.subr.mxu0 0.0
  %1246 = vmatpush1.msra.mxu0 0.0
  %1247 = vmatprep.subr.mxu0 0.0
  %1248 = vmatpush1.msra.mxu0 0.0
  %1249 = vmatprep.subr.mxu0 0.0
  %1250 = vmatpush1.msra.mxu0 0.0
  %1251 = vmatprep.subr.mxu0 0.0
  %1252 = vmatpush1.msra.mxu0 0.0
  %1253 = vmatprep.subr.mxu0 0.0
  %1254 = vmatpush1.msra.mxu0 0.0
  %1255 = vmatprep.subr.mxu0 0.0
  %1256 = vmatpush1.msra.mxu0 0.0
  %1257 = vmatprep.subr.mxu0 0.0
  %1258 = vmatpush1.msra.mxu0 0.0
  %1259 = vmatprep.subr.mxu0 0.0
  %1260 = vmatpush1.msra.mxu0 0.0
  %1261 = vmatprep.subr.mxu0 0.0
  %1262 = vmatpush1.msra.mxu0 0.0
  %1263 = vmatprep.subr.mxu0 0.0
  %1264 = vmatpush1.msra.mxu0 0.0
  %1265 = vmatprep.subr.mxu0 0.0
  %1266 = vmatpush1.msra.mxu0 0.0
  %1267 = vmatprep.subr.mxu0 0.0
  %1268 = vmatpush1.msra.mxu0 0.0
  %1269 = vmatprep.subr.mxu0 0.0
  %1270 = vmatpush1.msra.mxu0 0.0
  %1271 = vmatprep.subr.mxu0 0.0
  %1272 = vmatpush1.msra.mxu0 0.0
  %1273 = vmatprep.subr.mxu0 0.0
  %1274 = vmatpush1.msra.mxu0 0.0
  %1275 = vmatprep.subr.mxu0 0.0
  %1276 = vmatpush1.msra.mxu0 0.0
  %1277 = vmatprep.subr.mxu0 0.0
  %1278 = vmatpush1.msra.mxu0 0.0
  %1279 = vmatprep.subr.mxu0 0.0
  %1280 = vmatpush1.msra.mxu0 0.0
  %1281 = vmatprep.subr.mxu0 0.0
  %1282 = vmatpush1.msra.mxu0 0.0
  %1283 = vmatprep.subr.mxu0 0.0
  %1284 = vmatpush1.msra.mxu0 0.0
  %1285 = vmatprep.subr.mxu0 0.0
  %1286 = vmatpush1.msra.mxu0 0.0
  %1287 = vmatprep.subr.mxu0 0.0
  %1288 = vmatpush1.msra.mxu0 0.0
  %1289 = vmatprep.subr.mxu0 0.0
  %1290 = vmatpush1.msra.mxu0 0.0
  %1291 = vmatprep.subr.mxu0 0.0
  %1292 = vmatpush1.msra.mxu0 0.0
  %1293 = vmatprep.mubr.f32.mxu0 0.0
  %1294 = vmatmul.mubr.f32.gmra.mrb[0].mxu0 %v1224
  %v1295 = vpop.f32.mrb[0].mxu0
  %v1296 = vadd.f32 %v251, %v1295
  %v1297 = vpop.f32.mrb[0].mxu0
  %1298 = vmatprep.mubr.f32.mxu0 0.0
  %1299 = vmatmul.mubr.f32.gmra.mrb[0].mxu0 %v1227
  %v1300 = vpop.f32.mrb[0].mxu0
  %v1301 = vadd.f32 %v251, %v1300
  %v1302 = vpop.f32.mrb[0].mxu0
  %1303 = vdwg.mxu0
  %v1304 = vadd.f32 %v1216, %v336
  %v1305 = vmax.f32 %v1304, 0.0
  %v1307 = vsel %vm85, %v1305, 0
  %1309 = vmatprep.subr.mxu0 0.0
  %1310 = vmatpush1.msra.mxu0 %v69
  %1311 = vmatprep.subr.mxu0 0.0
  %1312 = vmatpush1.msra.mxu0 %v70
  %1313 = vmatprep.subr.mxu0 0.0
  %1314 = vmatpush1.msra.mxu0 %v71
  %1315 = vmatprep.subr.mxu0 0.0
  %1316 = vmatpush1.msra.mxu0 %v72
  %1317 = vmatprep.subr.mxu0 0.0
  %1318 = vmatpush1.msra.mxu0 0.0
  %1319 = vmatprep.subr.mxu0 0.0
  %1320 = vmatpush1.msra.mxu0 0.0
  %1321 = vmatprep.subr.mxu0 0.0
  %1322 = vmatpush1.msra.mxu0 0.0
  %1323 = vmatprep.subr.mxu0 0.0
  %1324 = vmatpush1.msra.mxu0 0.0
  %1325 = vmatprep.subr.mxu0 0.0
  %1326 = vmatpush1.msra.mxu0 0.0
  %1327 = vmatprep.subr.mxu0 0.0
  %1328 = vmatpush1.msra.mxu0 0.0
  %1329 = vmatprep.subr.mxu0 0.0
  %1330 = vmatpush1.msra.mxu0 0.0
  %1331 = vmatprep.subr.mxu0 0.0
  %1332 = vmatpush1.msra.mxu0 0.0
  %1333 = vmatprep.subr.mxu0 0.0
  %1334 = vmatpush1.msra.mxu0 0.0
  %1335 = vmatprep.subr.mxu0 0.0
  %1336 = vmatpush1.msra.mxu0 0.0
  %1337 = vmatprep.subr.mxu0 0.0
  %1338 = vmatpush1.msra.mxu0 0.0
  %1339 = vmatprep.subr.mxu0 0.0
  %1340 = vmatpush1.msra.mxu0 0.0
  %1341 = vmatprep.subr.mxu0 0.0
  %1342 = vmatpush1.msra.mxu0 0.0
  %1343 = vmatprep.subr.mxu0 0.0
  %1344 = vmatpush1.msra.mxu0 0.0
  %1345 = vmatprep.subr.mxu0 0.0
  %1346 = vmatpush1.msra.mxu0 0.0
  %1347 = vmatprep.subr.mxu0 0.0
  %1348 = vmatpush1.msra.mxu0 0.0
  %1349 = vmatprep.subr.mxu0 0.0
  %1350 = vmatpush1.msra.mxu0 0.0
  %1351 = vmatprep.subr.mxu0 0.0
  %1352 = vmatpush1.msra.mxu0 0.0
  %1353 = vmatprep.subr.mxu0 0.0
  %1354 = vmatpush1.msra.mxu0 0.0
  %1355 = vmatprep.subr.mxu0 0.0
  %1356 = vmatpush1.msra.mxu0 0.0
  %1357 = vmatprep.subr.mxu0 0.0
  %1358 = vmatpush1.msra.mxu0 0.0
  %1359 = vmatprep.subr.mxu0 0.0
  %1360 = vmatpush1.msra.mxu0 0.0
  %1361 = vmatprep.subr.mxu0 0.0
  %1362 = vmatpush1.msra.mxu0 0.0
  %1363 = vmatprep.subr.mxu0 0.0
  %1364 = vmatpush1.msra.mxu0 0.0
  %1365 = vmatprep.subr.mxu0 0.0
  %1366 = vmatpush1.msra.mxu0 0.0
  %1367 = vmatprep.subr.mxu0 0.0
  %1368 = vmatpush1.msra.mxu0 0.0
  %1369 = vmatprep.subr.mxu0 0.0
  %1370 = vmatpush1.msra.mxu0 0.0
  %1371 = vmatprep.subr.mxu0 0.0
  %1372 = vmatpush1.msra.mxu0 0.0
  %1373 = vmatprep.mubr.f32.mxu0 0.0
  %1374 = vmatmul.mubr.f32.gmra.mrb[0].mxu0 %v1307
  %v1375 = vpop.f32.mrb[0].mxu0
  %v1376 = vadd.f32 %v342, %v1375
  %v1377 = vpop.f32.mrb[0].mxu0
  %1378 = vdwg.mxu0
  %1379 = vmatprep.subr.mxu0 0.0
  %1380 = vmatpush1.msra.mxu0 %v1296
  %1381 = vmatprep.subr.mxu0 0.0
  %1382 = vmatpush1.msra.mxu0 %v1301
  %1383 = vmatprep.subr.mxu0 0.0
  %1384 = vmatpush1.msra.mxu0 0.0
  %1385 = vmatprep.subr.mxu0 0.0
  %1386 = vmatpush1.msra.mxu0 0.0
  %1387 = vmatprep.subr.mxu0 0.0
  %1388 = vmatpush1.msra.mxu0 0.0
  %1389 = vmatprep.subr.mxu0 0.0
  %1390 = vmatpush1.msra.mxu0 0.0
  %1391 = vmatprep.subr.mxu0 0.0
  %1392 = vmatpush1.msra.mxu0 0.0
  %1393 = vmatprep.subr.mxu0 0.0
  %1394 = vmatpush1.msra.mxu0 0.0
  %1395 = vmatprep.subr.mxu0 0.0
  %1396 = vmatpush1.msra.mxu0 0.0
  %1397 = vmatprep.subr.mxu0 0.0
  %1398 = vmatpush1.msra.mxu0 0.0
  %1399 = vmatprep.subr.mxu0 0.0
  %1400 = vmatpush1.msra.mxu0 0.0
  %1401 = vmatprep.subr.mxu0 0.0
  %1402 = vmatpush1.msra.mxu0 0.0
  %1403 = vmatprep.subr.mxu0 0.0
  %1404 = vmatpush1.msra.mxu0 0.0
  %1405 = vmatprep.subr.mxu0 0.0
  %1406 = vmatpush1.msra.mxu0 0.0
  %1407 = vmatprep.subr.mxu0 0.0
  %1408 = vmatpush1.msra.mxu0 0.0
  %1409 = vmatprep.subr.mxu0 0.0
  %1410 = vmatpush1.msra.mxu0 0.0
  %1411 = vmatprep.subr.mxu0 0.0
  %1412 = vmatpush1.msra.mxu0 0.0
  %1413 = vmatprep.subr.mxu0 0.0
  %1414 = vmatpush1.msra.mxu0 0.0
  %1415 = vmatprep.subr.mxu0 0.0
  %1416 = vmatpush1.msra.mxu0 0.0
  %1417 = vmatprep.subr.mxu0 0.0
  %1418 = vmatpush1.msra.mxu0 0.0
  %1419 = vmatprep.subr.mxu0 0.0
  %1420 = vmatpush1.msra.mxu0 0.0
  %1421 = vmatprep.subr.mxu0 0.0
  %1422 = vmatpush1.msra.mxu0 0.0
  %1423 = vmatprep.subr.mxu0 0.0
  %1424 = vmatpush1.msra.mxu0 0.0
  %1425 = vmatprep.subr.mxu0 0.0
  %1426 = vmatpush1.msra.mxu0 0.0
  %1427 = vmatprep.subr.mxu0 0.0
  %1428 = vmatpush1.msra.mxu0 0.0
  %1429 = vmatprep.subr.mxu0 0.0
  %1430 = vmatpush1.msra.mxu0 0.0
  %1431 = vmatprep.subr.mxu0 0.0
  %1432 = vmatpush1.msra.mxu0 0.0
  %1433 = vmatprep.subr.mxu0 0.0
  %1434 = vmatpush1.msra.mxu0 0.0
  %1435 = vmatprep.subr.mxu0 0.0
  %1436 = vmatpush1.msra.mxu0 0.0
  %1437 = vmatprep.subr.mxu0 0.0
  %1438 = vmatpush1.msra.mxu0 0.0
  %1439 = vmatprep.subr.mxu0 0.0
  %1440 = vmatpush1.msra.mxu0 0.0
  %1441 = vmatprep.subr.mxu0 0.0
  %1442 = vmatpush1.msra.mxu0 0.0
  %1443 = vmatprep.mubr.f32.mxu0 0.0
  %1444 = vmatmul.mubr.f32.gmra.mrb[0].mxu0 %v418
  %v1445 = vpop.f32.mrb[0].mxu0
  %v1446 = vadd.f32 0.0, %v1445
  %v1447 = vpop.f32.mrb[0].mxu0
  %1448 = vdwg.mxu0
  %1449 = vmatprep.subr.mxu0 0.0
  %1450 = vmatpush1.msra.mxu0 %v1376
  %1451 = vmatprep.subr.mxu0 0.0
  %1452 = vmatpush1.msra.mxu0 0.0
  %1453 = vmatprep.subr.mxu0 0.0
  %1454 = vmatpush1.msra.mxu0 0.0
  %1455 = vmatprep.subr.mxu0 0.0
  %1456 = vmatpush1.msra.mxu0 0.0
  %1457 = vmatprep.subr.mxu0 0.0
  %1458 = vmatpush1.msra.mxu0 0.0
  %1459 = vmatprep.subr.mxu0 0.0
  %1460 = vmatpush1.msra.mxu0 0.0
  %1461 = vmatprep.subr.mxu0 0.0
  %1462 = vmatpush1.msra.mxu0 0.0
  %1463 = vmatprep.subr.mxu0 0.0
  %1464 = vmatpush1.msra.mxu0 0.0
  %1465 = vmatprep.subr.mxu0 0.0
  %1466 = vmatpush1.msra.mxu0 0.0
  %1467 = vmatprep.subr.mxu0 0.0
  %1468 = vmatpush1.msra.mxu0 0.0
  %1469 = vmatprep.subr.mxu0 0.0
  %1470 = vmatpush1.msra.mxu0 0.0
  %1471 = vmatprep.subr.mxu0 0.0
  %1472 = vmatpush1.msra.mxu0 0.0
  %1473 = vmatprep.subr.mxu0 0.0
  %1474 = vmatpush1.msra.mxu0 0.0
  %1475 = vmatprep.subr.mxu0 0.0
  %1476 = vmatpush1.msra.mxu0 0.0
  %1477 = vmatprep.subr.mxu0 0.0
  %1478 = vmatpush1.msra.mxu0 0.0
  %1479 = vmatprep.subr.mxu0 0.0
  %1480 = vmatpush1.msra.mxu0 0.0
  %1481 = vmatprep.subr.mxu0 0.0
  %1482 = vmatpush1.msra.mxu0 0.0
  %1483 = vmatprep.subr.mxu0 0.0
  %1484 = vmatpush1.msra.mxu0 0.0
  %1485 = vmatprep.subr.mxu0 0.0
  %1486 = vmatpush1.msra.mxu0 0.0
  %1487 = vmatprep.subr.mxu0 0.0
  %1488 = vmatpush1.msra.mxu0 0.0
  %1489 = vmatprep.subr.mxu0 0.0
  %1490 = vmatpush1.msra.mxu0 0.0
  %1491 = vmatprep.subr.mxu0 0.0
  %1492 = vmatpush1.msra.mxu0 0.0
  %1493 = vmatprep.subr.mxu0 0.0
  %1494 = vmatpush1.msra.mxu0 0.0
  %1495 = vmatprep.subr.mxu0 0.0
  %1496 = vmatpush1.msra.mxu0 0.0
  %1497 = vmatprep.subr.mxu0 0.0
  %1498 = vmatpush1.msra.mxu0 0.0
  %1499 = vmatprep.subr.mxu0 0.0
  %1500 = vmatpush1.msra.mxu0 0.0
  %1501 = vmatprep.subr.mxu0 0.0
  %1502 = vmatpush1.msra.mxu0 0.0
  %1503 = vmatprep.subr.mxu0 0.0
  %1504 = vmatpush1.msra.mxu0 0.0
  %1505 = vmatprep.subr.mxu0 0.0
  %1506 = vmatpush1.msra.mxu0 0.0
  %1507 = vmatprep.subr.mxu0 0.0
  %1508 = vmatpush1.msra.mxu0 0.0
  %1509 = vmatprep.subr.mxu0 0.0
  %1510 = vmatpush1.msra.mxu0 0.0
  %1511 = vmatprep.subr.mxu0 0.0
  %1512 = vmatpush1.msra.mxu0 0.0
  %1513 = vmatprep.mubr.f32.mxu0 0.0
  %1514 = vmatmul.mubr.f32.gmra.mrb[0].mxu0 %v524
  %v1515 = vpop.f32.mrb[0].mxu0
  %v1516 = vadd.f32 0.0, %v1515
  %v1517 = vpop.f32.mrb[0].mxu0
  %1518 = vmatprep.mubr.f32.mxu0 0.0
  %1519 = vmatmul.mubr.f32.gmra.mrb[0].mxu0 %v527
  %v1520 = vpop.f32.mrb[0].mxu0
  %v1521 = vadd.f32 0.0, %v1520
  %v1522 = vpop.f32.mrb[0].mxu0
  %1523 = vdwg.mxu0
  %v1525 = vsel %vm85, %v1446, 0
  %1527 = vmatprep.subr.mxu0 0.0
  %1528 = vmatpush1.msra.mxu0 %v57
  %1529 = vmatprep.subr.mxu0 0.0
  %1530 = vmatpush1.msra.mxu0 %v58
  %1531 = vmatprep.subr.mxu0 0.0
  %1532 = vmatpush1.msra.mxu0 %v59
  %1533 = vmatprep.subr.mxu0 0.0
  %1534 = vmatpush1.msra.mxu0 %v60
  %1535 = vmatprep.subr.mxu0 0.0
  %1536 = vmatpush1.msra.mxu0 0.0
  %1537 = vmatprep.subr.mxu0 0.0
  %1538 = vmatpush1.msra.mxu0 0.0
  %1539 = vmatprep.subr.mxu0 0.0
  %1540 = vmatpush1.msra.mxu0 0.0
  %1541 = vmatprep.subr.mxu0 0.0
  %1542 = vmatpush1.msra.mxu0 0.0
  %1543 = vmatprep.subr.mxu0 0.0
  %1544 = vmatpush1.msra.mxu0 0.0
  %1545 = vmatprep.subr.mxu0 0.0
  %1546 = vmatpush1.msra.mxu0 0.0
  %1547 = vmatprep.subr.mxu0 0.0
  %1548 = vmatpush1.msra.mxu0 0.0
  %1549 = vmatprep.subr.mxu0 0.0
  %1550 = vmatpush1.msra.mxu0 0.0
  %1551 = vmatprep.subr.mxu0 0.0
  %1552 = vmatpush1.msra.mxu0 0.0
  %1553 = vmatprep.subr.mxu0 0.0
  %1554 = vmatpush1.msra.mxu0 0.0
  %1555 = vmatprep.subr.mxu0 0.0
  %1556 = vmatpush1.msra.mxu0 0.0
  %1557 = vmatprep.subr.mxu0 0.0
  %1558 = vmatpush1.msra.mxu0 0.0
  %1559 = vmatprep.subr.mxu0 0.0
  %1560 = vmatpush1.msra.mxu0 0.0
  %1561 = vmatprep.subr.mxu0 0.0
  %1562 = vmatpush1.msra.mxu0 0.0
  %1563 = vmatprep.subr.mxu0 0.0
  %1564 = vmatpush1.msra.mxu0 0.0
  %1565 = vmatprep.subr.mxu0 0.0
  %1566 = vmatpush1.msra.mxu0 0.0
  %1567 = vmatprep.subr.mxu0 0.0
  %1568 = vmatpush1.msra.mxu0 0.0
  %1569 = vmatprep.subr.mxu0 0.0
  %1570 = vmatpush1.msra.mxu0 0.0
  %1571 = vmatprep.subr.mxu0 0.0
  %1572 = vmatpush1.msra.mxu0 0.0
  %1573 = vmatprep.subr.mxu0 0.0
  %1574 = vmatpush1.msra.mxu0 0.0
  %1575 = vmatprep.subr.mxu0 0.0
  %1576 = vmatpush1.msra.mxu0 0.0
  %1577 = vmatprep.subr.mxu0 0.0
  %1578 = vmatpush1.msra.mxu0 0.0
  %1579 = vmatprep.subr.mxu0 0.0
  %1580 = vmatpush1.msra.mxu0 0.0
  %1581 = vmatprep.subr.mxu0 0.0
  %1582 = vmatpush1.msra.mxu0 0.0
  %1583 = vmatprep.subr.mxu0 0.0
  %1584 = vmatpush1.msra.mxu0 0.0
  %1585 = vmatprep.subr.mxu0 0.0
  %1586 = vmatpush1.msra.mxu0 0.0
  %1587 = vmatprep.subr.mxu0 0.0
  %1588 = vmatpush1.msra.mxu0 0.0
  %1589 = vmatprep.subr.mxu0 0.0
  %1590 = vmatpush1.msra.mxu0 0.0
  %1591 = vmatprep.mubr.f32.mxu0 0.0
  %1592 = vmatmul.mubr.f32.gmra.mrb[0].mxu0 %v1525
  %v1593 = vpop.f32.mrb[0].mxu0
  %v1594 = vadd.f32 0.0, %v1593
  %v1595 = vpop.f32.mrb[0].mxu0
  %1596 = vdwg.mxu0
  %1598 = vrot.lane.b32.xlu0 %v1594, 32
  %v1599 = vpop.permute.xlu0 %1598
  %v1601 = vadd.f32 %v1216, %v1599
  %v1602 = vadd.f32 %v1601, %v688
  %v1603 = vmax.f32 %v1602, 0.0
  %1605 = vrot.lane.b32.xlu0 %v1603, 96
  %v1606 = vpop.permute.xlu0 %1605
  %v1607 = vsel %vm85, %v1606, 0
  %1609 = vmatprep.subr.mxu0 0.0
  %1610 = vmatpush1.msra.mxu0 %v73
  %1611 = vmatprep.subr.mxu0 0.0
  %1612 = vmatpush1.msra.mxu0 %v74
  %1613 = vmatprep.subr.mxu0 0.0
  %1614 = vmatpush1.msra.mxu0 %v75
  %1615 = vmatprep.subr.mxu0 0.0
  %1616 = vmatpush1.msra.mxu0 %v76
  %1617 = vmatprep.subr.mxu0 0.0
  %1618 = vmatpush1.msra.mxu0 0.0
  %1619 = vmatprep.subr.mxu0 0.0
  %1620 = vmatpush1.msra.mxu0 0.0
  %1621 = vmatprep.subr.mxu0 0.0
  %1622 = vmatpush1.msra.mxu0 0.0
  %1623 = vmatprep.subr.mxu0 0.0
  %1624 = vmatpush1.msra.mxu0 0.0
  %1625 = vmatprep.subr.mxu0 0.0
  %1626 = vmatpush1.msra.mxu0 0.0
  %1627 = vmatprep.subr.mxu0 0.0
  %1628 = vmatpush1.msra.mxu0 0.0
  %1629 = vmatprep.subr.mxu0 0.0
  %1630 = vmatpush1.msra.mxu0 0.0
  %1631 = vmatprep.subr.mxu0 0.0
  %1632 = vmatpush1.msra.mxu0 0.0
  %1633 = vmatprep.subr.mxu0 0.0
  %1634 = vmatpush1.msra.mxu0 0.0
  %1635 = vmatprep.subr.mxu0 0.0
  %1636 = vmatpush1.msra.mxu0 0.0
  %1637 = vmatprep.subr.mxu0 0.0
  %1638 = vmatpush1.msra.mxu0 0.0
  %1639 = vmatprep.subr.mxu0 0.0
  %1640 = vmatpush1.msra.mxu0 0.0
  %1641 = vmatprep.subr.mxu0 0.0
  %1642 = vmatpush1.msra.mxu0 0.0
  %1643 = vmatprep.subr.mxu0 0.0
  %1644 = vmatpush1.msra.mxu0 0.0
  %1645 = vmatprep.subr.mxu0 0.0
  %1646 = vmatpush1.msra.mxu0 0.0
  %1647 = vmatprep.subr.mxu0 0.0
  %1648 = vmatpush1.msra.mxu0 0.0
  %1649 = vmatprep.subr.mxu0 0.0
  %1650 = vmatpush1.msra.mxu0 0.0
  %1651 = vmatprep.subr.mxu0 0.0
  %1652 = vmatpush1.msra.mxu0 0.0
  %1653 = vmatprep.subr.mxu0 0.0
  %1654 = vmatpush1.msra.mxu0 0.0
  %1655 = vmatprep.subr.mxu0 0.0
  %1656 = vmatpush1.msra.mxu0 0.0
  %1657 = vmatprep.subr.mxu0 0.0
  %1658 = vmatpush1.msra.mxu0 0.0
  %1659 = vmatprep.subr.mxu0 0.0
  %1660 = vmatpush1.msra.mxu0 0.0
  %1661 = vmatprep.subr.mxu0 0.0
  %1662 = vmatpush1.msra.mxu0 0.0
  %1663 = vmatprep.subr.mxu0 0.0
  %1664 = vmatpush1.msra.mxu0 0.0
  %1665 = vmatprep.subr.mxu0 0.0
  %1666 = vmatpush1.msra.mxu0 0.0
  %1667 = vmatprep.subr.mxu0 0.0
  %1668 = vmatpush1.msra.mxu0 0.0
  %1669 = vmatprep.subr.mxu0 0.0
  %1670 = vmatpush1.msra.mxu0 0.0
  %1671 = vmatprep.subr.mxu0 0.0
  %1672 = vmatpush1.msra.mxu0 0.0
  %1673 = vmatprep.mubr.f32.mxu0 0.0
  %1674 = vmatmul.mubr.f32.gmra.mrb[0].mxu0 %v1607
  %v1675 = vpop.f32.mrb[0].mxu0
  %v1676 = vadd.f32 %v695, %v1675
  %v1677 = vpop.f32.mrb[0].mxu0
  %1678 = vdwg.mxu0
  %1681 = vrot.lane.b32.xlu0 %v1138, 64
  %v1682 = vpop.permute.xlu0 %1681
  %1683 = vrot.lane.b32.xlu0 %v1143, 64
  %v1684 = vpop.permute.xlu0 %1683
  %1687 = vmatprep.subr.mxu0 0.0
  %1688 = vmatpush1.msra.mxu0 %v1682
  %1689 = vmatprep.subr.mxu0 0.0
  %1690 = vmatpush1.msra.mxu0 %v1684
  %1691 = vmatprep.subr.mxu0 0.0
  %1692 = vmatpush1.msra.mxu0 0.0
  %1693 = vmatprep.subr.mxu0 0.0
  %1694 = vmatpush1.msra.mxu0 0.0
  %1695 = vmatprep.subr.mxu0 0.0
  %1696 = vmatpush1.msra.mxu0 0.0
  %1697 = vmatprep.subr.mxu0 0.0
  %1698 = vmatpush1.msra.mxu0 0.0
  %1699 = vmatprep.subr.mxu0 0.0
  %1700 = vmatpush1.msra.mxu0 0.0
  %1701 = vmatprep.subr.mxu0 0.0
  %1702 = vmatpush1.msra.mxu0 0.0
  %1703 = vmatprep.subr.mxu0 0.0
  %1704 = vmatpush1.msra.mxu0 0.0
  %1705 = vmatprep.subr.mxu0 0.0
  %1706 = vmatpush1.msra.mxu0 0.0
  %1707 = vmatprep.subr.mxu0 0.0
  %1708 = vmatpush1.msra.mxu0 0.0
  %1709 = vmatprep.subr.mxu0 0.0
  %1710 = vmatpush1.msra.mxu0 0.0
  %1711 = vmatprep.subr.mxu0 0.0
  %1712 = vmatpush1.msra.mxu0 0.0
  %1713 = vmatprep.subr.mxu0 0.0
  %1714 = vmatpush1.msra.mxu0 0.0
  %1715 = vmatprep.subr.mxu0 0.0
  %1716 = vmatpush1.msra.mxu0 0.0
  %1717 = vmatprep.subr.mxu0 0.0
  %1718 = vmatpush1.msra.mxu0 0.0
  %1719 = vmatprep.subr.mxu0 0.0
  %1720 = vmatpush1.msra.mxu0 0.0
  %1721 = vmatprep.subr.mxu0 0.0
  %1722 = vmatpush1.msra.mxu0 0.0
  %1723 = vmatprep.subr.mxu0 0.0
  %1724 = vmatpush1.msra.mxu0 0.0
  %1725 = vmatprep.subr.mxu0 0.0
  %1726 = vmatpush1.msra.mxu0 0.0
  %1727 = vmatprep.subr.mxu0 0.0
  %1728 = vmatpush1.msra.mxu0 0.0
  %1729 = vmatprep.subr.mxu0 0.0
  %1730 = vmatpush1.msra.mxu0 0.0
  %1731 = vmatprep.subr.mxu0 0.0
  %1732 = vmatpush1.msra.mxu0 0.0
  %1733 = vmatprep.subr.mxu0 0.0
  %1734 = vmatpush1.msra.mxu0 0.0
  %1735 = vmatprep.subr.mxu0 0.0
  %1736 = vmatpush1.msra.mxu0 0.0
  %1737 = vmatprep.subr.mxu0 0.0
  %1738 = vmatpush1.msra.mxu0 0.0
  %1739 = vmatprep.subr.mxu0 0.0
  %1740 = vmatpush1.msra.mxu0 0.0
  %1741 = vmatprep.subr.mxu0 0.0
  %1742 = vmatpush1.msra.mxu0 0.0
  %1743 = vmatprep.subr.mxu0 0.0
  %1744 = vmatpush1.msra.mxu0 0.0
  %1745 = vmatprep.subr.mxu0 0.0
  %1746 = vmatpush1.msra.mxu0 0.0
  %1747 = vmatprep.subr.mxu0 0.0
  %1748 = vmatpush1.msra.mxu0 0.0
  %1749 = vmatprep.subr.mxu0 0.0
  %1750 = vmatpush1.msra.mxu0 0.0
  %1751 = vmatprep.mubr.f32.mxu0 0.0
  %1752 = vmatmul.mubr.f32.gmra.mrb[0].mxu0 %v780
  %v1753 = vpop.f32.mrb[0].mxu0
  %v1754 = vadd.f32 0.0, %v1753
  %v1755 = vpop.f32.mrb[0].mxu0
  %1756 = vmatprep.mubr.f32.mxu0 0.0
  %1757 = vmatmul.mubr.f32.gmra.mrb[0].mxu0 %v783
  %v1758 = vpop.f32.mrb[0].mxu0
  %v1759 = vadd.f32 0.0, %v1758
  %v1760 = vpop.f32.mrb[0].mxu0
  %1761 = vdwg.mxu0
  %v1763 = vsel %vm85, %v1516, 0
  %v1766 = vsel %vm85, %v1521, 0
  %1768 = vmatprep.subr.mxu0 0.0
  %1769 = vmatpush1.msra.mxu0 %v61
  %1770 = vmatprep.subr.mxu0 0.0
  %1771 = vmatpush1.msra.mxu0 %v62
  %1772 = vmatprep.subr.mxu0 0.0
  %1773 = vmatpush1.msra.mxu0 %v63
  %1774 = vmatprep.subr.mxu0 0.0
  %1775 = vmatpush1.msra.mxu0 %v64
  %1776 = vmatprep.subr.mxu0 0.0
  %1777 = vmatpush1.msra.mxu0 0.0
  %1778 = vmatprep.subr.mxu0 0.0
  %1779 = vmatpush1.msra.mxu0 0.0
  %1780 = vmatprep.subr.mxu0 0.0
  %1781 = vmatpush1.msra.mxu0 0.0
  %1782 = vmatprep.subr.mxu0 0.0
  %1783 = vmatpush1.msra.mxu0 0.0
  %1784 = vmatprep.subr.mxu0 0.0
  %1785 = vmatpush1.msra.mxu0 0.0
  %1786 = vmatprep.subr.mxu0 0.0
  %1787 = vmatpush1.msra.mxu0 0.0
  %1788 = vmatprep.subr.mxu0 0.0
  %1789 = vmatpush1.msra.mxu0 0.0
  %1790 = vmatprep.subr.mxu0 0.0
  %1791 = vmatpush1.msra.mxu0 0.0
  %1792 = vmatprep.subr.mxu0 0.0
  %1793 = vmatpush1.msra.mxu0 0.0
  %1794 = vmatprep.subr.mxu0 0.0
  %1795 = vmatpush1.msra.mxu0 0.0
  %1796 = vmatprep.subr.mxu0 0.0
  %1797 = vmatpush1.msra.mxu0 0.0
  %1798 = vmatprep.subr.mxu0 0.0
  %1799 = vmatpush1.msra.mxu0 0.0
  %1800 = vmatprep.subr.mxu0 0.0
  %1801 = vmatpush1.msra.mxu0 0.0
  %1802 = vmatprep.subr.mxu0 0.0
  %1803 = vmatpush1.msra.mxu0 0.0
  %1804 = vmatprep.subr.mxu0 0.0
  %1805 = vmatpush1.msra.mxu0 0.0
  %1806 = vmatprep.subr.mxu0 0.0
  %1807 = vmatpush1.msra.mxu0 0.0
  %1808 = vmatprep.subr.mxu0 0.0
  %1809 = vmatpush1.msra.mxu0 0.0
  %1810 = vmatprep.subr.mxu0 0.0
  %1811 = vmatpush1.msra.mxu0 0.0
  %1812 = vmatprep.subr.mxu0 0.0
  %1813 = vmatpush1.msra.mxu0 0.0
  %1814 = vmatprep.subr.mxu0 0.0
  %1815 = vmatpush1.msra.mxu0 0.0
  %1816 = vmatprep.subr.mxu0 0.0
  %1817 = vmatpush1.msra.mxu0 0.0
  %1818 = vmatprep.subr.mxu0 0.0
  %1819 = vmatpush1.msra.mxu0 0.0
  %1820 = vmatprep.subr.mxu0 0.0
  %1821 = vmatpush1.msra.mxu0 0.0
  %1822 = vmatprep.subr.mxu0 0.0
  %1823 = vmatpush1.msra.mxu0 0.0
  %1824 = vmatprep.subr.mxu0 0.0
  %1825 = vmatpush1.msra.mxu0 0.0
  %1826 = vmatprep.subr.mxu0 0.0
  %1827 = vmatpush1.msra.mxu0 0.0
  %1828 = vmatprep.subr.mxu0 0.0
  %1829 = vmatpush1.msra.mxu0 0.0
  %1830 = vmatprep.subr.mxu0 0.0
  %1831 = vmatpush1.msra.mxu0 0.0
  %1832 = vmatprep.mubr.f32.mxu0 0.0
  %1833 = vmatmul.mubr.f32.gmra.mrb[0].mxu0 %v1763
  %v1834 = vpop.f32.mrb[0].mxu0
  %v1835 = vadd.f32 0.0, %v1834
  %v1836 = vpop.f32.mrb[0].mxu0
  %1837 = vmatprep.mubr.f32.mxu0 0.0
  %1838 = vmatmul.mubr.f32.gmra.mrb[0].mxu0 %v1766
  %v1839 = vpop.f32.mrb[0].mxu0
  %v1840 = vadd.f32 0.0, %v1839
  %v1841 = vpop.f32.mrb[0].mxu0
  %1842 = vdwg.mxu0
  %1845 = vrot.lane.b32.xlu0 %v1835, 32
  %v1846 = vpop.permute.xlu0 %1845
  %1847 = vrot.lane.b32.xlu0 %v1840, 32
  %v1848 = vpop.permute.xlu0 %1847
  %v1851 = vadd.f32 %v1138, %v1846
  %v1852 = vadd.f32 %v1143, %v1848
  %1855 = vrot.lane.b32.xlu0 %v1754, 32
  %v1856 = vpop.permute.xlu0 %1855
  %1857 = vrot.lane.b32.xlu0 %v1759, 32
  %v1858 = vpop.permute.xlu0 %1857
  %v1861 = vadd.f32 %v1851, %v1856
  %v1862 = vadd.f32 %v1852, %v1858
  %v1863 = vadd.f32 %v1861, %v967
  %v1864 = vadd.f32 %v1862, %v967
  %v1865 = vmax.f32 %v1863, 0.0
  %v1866 = vmax.f32 %v1864, 0.0
  %1869 = vrot.lane.b32.xlu0 %v1865, 96
  %v1870 = vpop.permute.xlu0 %1869
  %1871 = vrot.lane.b32.xlu0 %v1866, 96
  %v1872 = vpop.permute.xlu0 %1871
  %v1873 = vsel %vm85, %v1870, 0
  %v1875 = vsel %vm85, %v1872, 0
  %1877 = vmatprep.subr.mxu0 0.0
  %1878 = vmatpush1.msra.mxu0 %v77
  %1879 = vmatprep.subr.mxu0 0.0
  %1880 = vmatpush1.msra.mxu0 %v78
  %1881 = vmatprep.subr.mxu0 0.0
  %1882 = vmatpush1.msra.mxu0 %v79
  %1883 = vmatprep.subr.mxu0 0.0
  %1884 = vmatpush1.msra.mxu0 %v80
  %1885 = vmatprep.subr.mxu0 0.0
  %1886 = vmatpush1.msra.mxu0 0.0
  %1887 = vmatprep.subr.mxu0 0.0
  %1888 = vmatpush1.msra.mxu0 0.0
  %1889 = vmatprep.subr.mxu0 0.0
  %1890 = vmatpush1.msra.mxu0 0.0
  %1891 = vmatprep.subr.mxu0 0.0
  %1892 = vmatpush1.msra.mxu0 0.0
  %1893 = vmatprep.subr.mxu0 0.0
  %1894 = vmatpush1.msra.mxu0 0.0
  %1895 = vmatprep.subr.mxu0 0.0
  %1896 = vmatpush1.msra.mxu0 0.0
  %1897 = vmatprep.subr.mxu0 0.0
  %1898 = vmatpush1.msra.mxu0 0.0
  %1899 = vmatprep.subr.mxu0 0.0
  %1900 = vmatpush1.msra.mxu0 0.0
  %1901 = vmatprep.subr.mxu0 0.0
  %1902 = vmatpush1.msra.mxu0 0.0
  %1903 = vmatprep.subr.mxu0 0.0
  %1904 = vmatpush1.msra.mxu0 0.0
  %1905 = vmatprep.subr.mxu0 0.0
  %1906 = vmatpush1.msra.mxu0 0.0
  %1907 = vmatprep.subr.mxu0 0.0
  %1908 = vmatpush1.msra.mxu0 0.0
  %1909 = vmatprep.subr.mxu0 0.0
  %1910 = vmatpush1.msra.mxu0 0.0
  %1911 = vmatprep.subr.mxu0 0.0
  %1912 = vmatpush1.msra.mxu0 0.0
  %1913 = vmatprep.subr.mxu0 0.0
  %1914 = vmatpush1.msra.mxu0 0.0
  %1915 = vmatprep.subr.mxu0 0.0
  %1916 = vmatpush1.msra.mxu0 0.0
  %1917 = vmatprep.subr.mxu0 0.0
  %1918 = vmatpush1.msra.mxu0 0.0
  %1919 = vmatprep.subr.mxu0 0.0
  %1920 = vmatpush1.msra.mxu0 0.0
  %1921 = vmatprep.subr.mxu0 0.0
  %1922 = vmatpush1.msra.mxu0 0.0
  %1923 = vmatprep.subr.mxu0 0.0
  %1924 = vmatpush1.msra.mxu0 0.0
  %1925 = vmatprep.subr.mxu0 0.0
  %1926 = vmatpush1.msra.mxu0 0.0
  %1927 = vmatprep.subr.mxu0 0.0
  %1928 = vmatpush1.msra.mxu0 0.0
  %1929 = vmatprep.subr.mxu0 0.0
  %1930 = vmatpush1.msra.mxu0 0.0
  %1931 = vmatprep.subr.mxu0 0.0
  %1932 = vmatpush1.msra.mxu0 0.0
  %1933 = vmatprep.subr.mxu0 0.0
  %1934 = vmatpush1.msra.mxu0 0.0
  %1935 = vmatprep.subr.mxu0 0.0
  %1936 = vmatpush1.msra.mxu0 0.0
  %1937 = vmatprep.subr.mxu0 0.0
  %1938 = vmatpush1.msra.mxu0 0.0
  %1939 = vmatprep.subr.mxu0 0.0
  %1940 = vmatpush1.msra.mxu0 0.0
  %1941 = vmatprep.mubr.f32.mxu0 0.0
  %1942 = vmatmul.mubr.f32.gmra.mrb[0].mxu0 %v1873
  %v1943 = vpop.f32.mrb[0].mxu0
  %v1944 = vadd.f32 %v976, %v1943
  %v1945 = vpop.f32.mrb[0].mxu0
  %1946 = vmatprep.mubr.f32.mxu0 0.0
  %1947 = vmatmul.mubr.f32.gmra.mrb[0].mxu0 %v1875
  %v1948 = vpop.f32.mrb[0].mxu0
  %v1949 = vadd.f32 %v976, %v1948
  %v1950 = vpop.f32.mrb[0].mxu0
  %1951 = vdwg.mxu0
  %1954 = vrot.lane.b32.xlu0 %v1944, 32
  %v1955 = vpop.permute.xlu0 %1954
  %1956 = vrot.lane.b32.xlu0 %v1949, 32
  %v1957 = vpop.permute.xlu0 %1956
  %vm1960 = vcmask 523520
  %1961 = vst.msk [vmem:[%s13] sm:$0xff] %vm1960, %v1955
  %1962 = vst.msk [vmem:[%s13 + $0x8] sm:$0xff] %vm1960, %v1957
  %1964 = vrot.lane.b32.xlu0 %v1676, 32
  %v1965 = vpop.permute.xlu0 %1964
  %1967 = vst.msk [vmem:[%s14] sm:$0xff] %vm1960, %v1965
  %v1968 = vsel %vm85, %v1944, 0
  %v1970 = vsel %vm85, %v1949, 0
  %1972 = vmatprep.subr.mxu0 0.0
  %1973 = vmatpush1.msra.mxu0 %v49
  %1974 = vmatprep.subr.mxu0 0.0
  %1975 = vmatpush1.msra.mxu0 %v50
  %1976 = vmatprep.subr.mxu0 0.0
  %1977 = vmatpush1.msra.mxu0 %v51
  %1978 = vmatprep.subr.mxu0 0.0
  %1979 = vmatpush1.msra.mxu0 %v52
  %1980 = vmatprep.subr.mxu0 0.0
  %1981 = vmatpush1.msra.mxu0 0.0
  %1982 = vmatprep.subr.mxu0 0.0
  %1983 = vmatpush1.msra.mxu0 0.0
  %1984 = vmatprep.subr.mxu0 0.0
  %1985 = vmatpush1.msra.mxu0 0.0
  %1986 = vmatprep.subr.mxu0 0.0
  %1987 = vmatpush1.msra.mxu0 0.0
  %1988 = vmatprep.subr.mxu0 0.0
  %1989 = vmatpush1.msra.mxu0 0.0
  %1990 = vmatprep.subr.mxu0 0.0
  %1991 = vmatpush1.msra.mxu0 0.0
  %1992 = vmatprep.subr.mxu0 0.0
  %1993 = vmatpush1.msra.mxu0 0.0
  %1994 = vmatprep.subr.mxu0 0.0
  %1995 = vmatpush1.msra.mxu0 0.0
  %1996 = vmatprep.subr.mxu0 0.0
  %1997 = vmatpush1.msra.mxu0 0.0
  %1998 = vmatprep.subr.mxu0 0.0
  %1999 = vmatpush1.msra.mxu0 0.0
  %2000 = vmatprep.subr.mxu0 0.0
  %2001 = vmatpush1.msra.mxu0 0.0
  %2002 = vmatprep.subr.mxu0 0.0
  %2003 = vmatpush1.msra.mxu0 0.0
  %2004 = vmatprep.subr.mxu0 0.0
  %2005 = vmatpush1.msra.mxu0 0.0
  %2006 = vmatprep.subr.mxu0 0.0
  %2007 = vmatpush1.msra.mxu0 0.0
  %2008 = vmatprep.subr.mxu0 0.0
  %2009 = vmatpush1.msra.mxu0 0.0
  %2010 = vmatprep.subr.mxu0 0.0
  %2011 = vmatpush1.msra.mxu0 0.0
  %2012 = vmatprep.subr.mxu0 0.0
  %2013 = vmatpush1.msra.mxu0 0.0
  %2014 = vmatprep.subr.mxu0 0.0
  %2015 = vmatpush1.msra.mxu0 0.0
  %2016 = vmatprep.subr.mxu0 0.0
  %2017 = vmatpush1.msra.mxu0 0.0
  %2018 = vmatprep.subr.mxu0 0.0
  %2019 = vmatpush1.msra.mxu0 0.0
  %2020 = vmatprep.subr.mxu0 0.0
  %2021 = vmatpush1.msra.mxu0 0.0
  %2022 = vmatprep.subr.mxu0 0.0
  %2023 = vmatpush1.msra.mxu0 0.0
  %2024 = vmatprep.subr.mxu0 0.0
  %2025 = vmatpush1.msra.mxu0 0.0
  %2026 = vmatprep.subr.mxu0 0.0
  %2027 = vmatpush1.msra.mxu0 0.0
  %2028 = vmatprep.subr.mxu0 0.0
  %2029 = vmatpush1.msra.mxu0 0.0
  %2030 = vmatprep.subr.mxu0 0.0
  %2031 = vmatpush1.msra.mxu0 0.0
  %2032 = vmatprep.subr.mxu0 0.0
  %2033 = vmatpush1.msra.mxu0 0.0
  %2034 = vmatprep.subr.mxu0 0.0
  %2035 = vmatpush1.msra.mxu0 0.0
  %2036 = vmatprep.mubr.f32.mxu0 0.0
  %2037 = vmatmul.mubr.f32.gmra.mrb[0].mxu0 %v1968
  %v2038 = vpop.f32.mrb[0].mxu0
  %v2039 = vadd.f32 0.0, %v2038
  %v2040 = vpop.f32.mrb[0].mxu0
  %2041 = vmatprep.mubr.f32.mxu0 0.0
  %2042 = vmatmul.mubr.f32.gmra.mrb[0].mxu0 %v1970
  %v2043 = vpop.f32.mrb[0].mxu0
  %v2044 = vadd.f32 0.0, %v2043
  %v2045 = vpop.f32.mrb[0].mxu0
  %2046 = vdwg.mxu0
  %v2047 = vsel %vm85, %v1676, 0
  %2049 = vmatprep.subr.mxu0 0.0
  %2050 = vmatpush1.msra.mxu0 %v53
  %2051 = vmatprep.subr.mxu0 0.0
  %2052 = vmatpush1.msra.mxu0 %v54
  %2053 = vmatprep.subr.mxu0 0.0
  %2054 = vmatpush1.msra.mxu0 %v55
  %2055 = vmatprep.subr.mxu0 0.0
  %2056 = vmatpush1.msra.mxu0 %v56
  %2057 = vmatprep.subr.mxu0 0.0
  %2058 = vmatpush1.msra.mxu0 0.0
  %2059 = vmatprep.subr.mxu0 0.0
  %2060 = vmatpush1.msra.mxu0 0.0
  %2061 = vmatprep.subr.mxu0 0.0
  %2062 = vmatpush1.msra.mxu0 0.0
  %2063 = vmatprep.subr.mxu0 0.0
  %2064 = vmatpush1.msra.mxu0 0.0
  %2065 = vmatprep.subr.mxu0 0.0
  %2066 = vmatpush1.msra.mxu0 0.0
  %2067 = vmatprep.subr.mxu0 0.0
  %2068 = vmatpush1.msra.mxu0 0.0
  %2069 = vmatprep.subr.mxu0 0.0
  %2070 = vmatpush1.msra.mxu0 0.0
  %2071 = vmatprep.subr.mxu0 0.0
  %2072 = vmatpush1.msra.mxu0 0.0
  %2073 = vmatprep.subr.mxu0 0.0
  %2074 = vmatpush1.msra.mxu0 0.0
  %2075 = vmatprep.subr.mxu0 0.0
  %2076 = vmatpush1.msra.mxu0 0.0
  %2077 = vmatprep.subr.mxu0 0.0
  %2078 = vmatpush1.msra.mxu0 0.0
  %2079 = vmatprep.subr.mxu0 0.0
  %2080 = vmatpush1.msra.mxu0 0.0
  %2081 = vmatprep.subr.mxu0 0.0
  %2082 = vmatpush1.msra.mxu0 0.0
  %2083 = vmatprep.subr.mxu0 0.0
  %2084 = vmatpush1.msra.mxu0 0.0
  %2085 = vmatprep.subr.mxu0 0.0
  %2086 = vmatpush1.msra.mxu0 0.0
  %2087 = vmatprep.subr.mxu0 0.0
  %2088 = vmatpush1.msra.mxu0 0.0
  %2089 = vmatprep.subr.mxu0 0.0
  %2090 = vmatpush1.msra.mxu0 0.0
  %2091 = vmatprep.subr.mxu0 0.0
  %2092 = vmatpush1.msra.mxu0 0.0
  %2093 = vmatprep.subr.mxu0 0.0
  %2094 = vmatpush1.msra.mxu0 0.0
  %2095 = vmatprep.subr.mxu0 0.0
  %2096 = vmatpush1.msra.mxu0 0.0
  %2097 = vmatprep.subr.mxu0 0.0
  %2098 = vmatpush1.msra.mxu0 0.0
  %2099 = vmatprep.subr.mxu0 0.0
  %2100 = vmatpush1.msra.mxu0 0.0
  %2101 = vmatprep.subr.mxu0 0.0
  %2102 = vmatpush1.msra.mxu0 0.0
  %2103 = vmatprep.subr.mxu0 0.0
  %2104 = vmatpush1.msra.mxu0 0.0
  %2105 = vmatprep.subr.mxu0 0.0
  %2106 = vmatpush1.msra.mxu0 0.0
  %2107 = vmatprep.subr.mxu0 0.0
  %2108 = vmatpush1.msra.mxu0 0.0
  %2109 = vmatprep.subr.mxu0 0.0
  %2110 = vmatpush1.msra.mxu0 0.0
  %2111 = vmatprep.subr.mxu0 0.0
  %2112 = vmatpush1.msra.mxu0 0.0
  %2113 = vmatprep.mubr.f32.mxu0 0.0
  %2114 = vmatmul.mubr.f32.gmra.mrb[0].mxu0 %v2047
  %v2115 = vpop.f32.mrb[0].mxu0
  %v2116 = vadd.f32 0.0, %v2115
  %v2117 = vpop.f32.mrb[0].mxu0
  %2118 = vdwg.mxu0
  %v2119 = vadd.f32 %v2039, %v243
  %v2120 = vadd.f32 %v2044, %v243
  %v2121 = vmax.f32 %v2119, 0.0
  %v2122 = vmax.f32 %v2120, 0.0
  %v2124 = vsel %vm85, %v2121, 0
  %v2127 = vsel %vm85, %v2122, 0
  %2129 = vmatprep.subr.mxu0 0.0
  %2130 = vmatpush1.msra.mxu0 %v65
  %2131 = vmatprep.subr.mxu0 0.0
  %2132 = vmatpush1.msra.mxu0 %v66
  %2133 = vmatprep.subr.mxu0 0.0
  %2134 = vmatpush1.msra.mxu0 %v67
  %2135 = vmatprep.subr.mxu0 0.0
  %2136 = vmatpush1.msra.mxu0 %v68
  %2137 = vmatprep.subr.mxu0 0.0
  %2138 = vmatpush1.msra.mxu0 0.0
  %2139 = vmatprep.subr.mxu0 0.0
  %2140 = vmatpush1.msra.mxu0 0.0
  %2141 = vmatprep.subr.mxu0 0.0
  %2142 = vmatpush1.msra.mxu0 0.0
  %2143 = vmatprep.subr.mxu0 0.0
  %2144 = vmatpush1.msra.mxu0 0.0
  %2145 = vmatprep.subr.mxu0 0.0
  %2146 = vmatpush1.msra.mxu0 0.0
  %2147 = vmatprep.subr.mxu0 0.0
  %2148 = vmatpush1.msra.mxu0 0.0
  %2149 = vmatprep.subr.mxu0 0.0
  %2150 = vmatpush1.msra.mxu0 0.0
  %2151 = vmatprep.subr.mxu0 0.0
  %2152 = vmatpush1.msra.mxu0 0.0
  %2153 = vmatprep.subr.mxu0 0.0
  %2154 = vmatpush1.msra.mxu0 0.0
  %2155 = vmatprep.subr.mxu0 0.0
  %2156 = vmatpush1.msra.mxu0 0.0
  %2157 = vmatprep.subr.mxu0 0.0
  %2158 = vmatpush1.msra.mxu0 0.0
  %2159 = vmatprep.subr.mxu0 0.0
  %2160 = vmatpush1.msra.mxu0 0.0
  %2161 = vmatprep.subr.mxu0 0.0
  %2162 = vmatpush1.msra.mxu0 0.0
  %2163 = vmatprep.subr.mxu0 0.0
  %2164 = vmatpush1.msra.mxu0 0.0
  %2165 = vmatprep.subr.mxu0 0.0
  %2166 = vmatpush1.msra.mxu0 0.0
  %2167 = vmatprep.subr.mxu0 0.0
  %2168 = vmatpush1.msra.mxu0 0.0
  %2169 = vmatprep.subr.mxu0 0.0
  %2170 = vmatpush1.msra.mxu0 0.0
  %2171 = vmatprep.subr.mxu0 0.0
  %2172 = vmatpush1.msra.mxu0 0.0
  %2173 = vmatprep.subr.mxu0 0.0
  %2174 = vmatpush1.msra.mxu0 0.0
  %2175 = vmatprep.subr.mxu0 0.0
  %2176 = vmatpush1.msra.mxu0 0.0
  %2177 = vmatprep.subr.mxu0 0.0
  %2178 = vmatpush1.msra.mxu0 0.0
  %2179 = vmatprep.subr.mxu0 0.0
  %2180 = vmatpush1.msra.mxu0 0.0
  %2181 = vmatprep.subr.mxu0 0.0
  %2182 = vmatpush1.msra.mxu0 0.0
  %2183 = vmatprep.subr.mxu0 0.0
  %2184 = vmatpush1.msra.mxu0 0.0
  %2185 = vmatprep.subr.mxu0 0.0
  %2186 = vmatpush1.msra.mxu0 0.0
  %2187 = vmatprep.subr.mxu0 0.0
  %2188 = vmatpush1.msra.mxu0 0.0
  %2189 = vmatprep.subr.mxu0 0.0
  %2190 = vmatpush1.msra.mxu0 0.0
  %2191 = vmatprep.subr.mxu0 0.0
  %2192 = vmatpush1.msra.mxu0 0.0
  %2193 = vmatprep.mubr.f32.mxu0 0.0
  %2194 = vmatmul.mubr.f32.gmra.mrb[0].mxu0 %v2124
  %v2195 = vpop.f32.mrb[0].mxu0
  %v2196 = vadd.f32 %v251, %v2195
  %v2197 = vpop.f32.mrb[0].mxu0
  %2198 = vmatprep.mubr.f32.mxu0 0.0
  %2199 = vmatmul.mubr.f32.gmra.mrb[0].mxu0 %v2127
  %v2200 = vpop.f32.mrb[0].mxu0
  %v2201 = vadd.f32 %v251, %v2200
  %v2202 = vpop.f32.mrb[0].mxu0
  %2203 = vdwg.mxu0
  %v2204 = vadd.f32 %v2116, %v336
  %v2205 = vmax.f32 %v2204, 0.0
  %v2207 = vsel %vm85, %v2205, 0
  %2209 = vmatprep.subr.mxu0 0.0
  %2210 = vmatpush1.msra.mxu0 %v69
  %2211 = vmatprep.subr.mxu0 0.0
  %2212 = vmatpush1.msra.mxu0 %v70
  %2213 = vmatprep.subr.mxu0 0.0
  %2214 = vmatpush1.msra.mxu0 %v71
  %2215 = vmatprep.subr.mxu0 0.0
  %2216 = vmatpush1.msra.mxu0 %v72
  %2217 = vmatprep.subr.mxu0 0.0
  %2218 = vmatpush1.msra.mxu0 0.0
  %2219 = vmatprep.subr.mxu0 0.0
  %2220 = vmatpush1.msra.mxu0 0.0
  %2221 = vmatprep.subr.mxu0 0.0
  %2222 = vmatpush1.msra.mxu0 0.0
  %2223 = vmatprep.subr.mxu0 0.0
  %2224 = vmatpush1.msra.mxu0 0.0
  %2225 = vmatprep.subr.mxu0 0.0
  %2226 = vmatpush1.msra.mxu0 0.0
  %2227 = vmatprep.subr.mxu0 0.0
  %2228 = vmatpush1.msra.mxu0 0.0
  %2229 = vmatprep.subr.mxu0 0.0
  %2230 = vmatpush1.msra.mxu0 0.0
  %2231 = vmatprep.subr.mxu0 0.0
  %2232 = vmatpush1.msra.mxu0 0.0
  %2233 = vmatprep.subr.mxu0 0.0
  %2234 = vmatpush1.msra.mxu0 0.0
  %2235 = vmatprep.subr.mxu0 0.0
  %2236 = vmatpush1.msra.mxu0 0.0
  %2237 = vmatprep.subr.mxu0 0.0
  %2238 = vmatpush1.msra.mxu0 0.0
  %2239 = vmatprep.subr.mxu0 0.0
  %2240 = vmatpush1.msra.mxu0 0.0
  %2241 = vmatprep.subr.mxu0 0.0
  %2242 = vmatpush1.msra.mxu0 0.0
  %2243 = vmatprep.subr.mxu0 0.0
  %2244 = vmatpush1.msra.mxu0 0.0
  %2245 = vmatprep.subr.mxu0 0.0
  %2246 = vmatpush1.msra.mxu0 0.0
  %2247 = vmatprep.subr.mxu0 0.0
  %2248 = vmatpush1.msra.mxu0 0.0
  %2249 = vmatprep.subr.mxu0 0.0
  %2250 = vmatpush1.msra.mxu0 0.0
  %2251 = vmatprep.subr.mxu0 0.0
  %2252 = vmatpush1.msra.mxu0 0.0
  %2253 = vmatprep.subr.mxu0 0.0
  %2254 = vmatpush1.msra.mxu0 0.0
  %2255 = vmatprep.subr.mxu0 0.0
  %2256 = vmatpush1.msra.mxu0 0.0
  %2257 = vmatprep.subr.mxu0 0.0
  %2258 = vmatpush1.msra.mxu0 0.0
  %2259 = vmatprep.subr.mxu0 0.0
  %2260 = vmatpush1.msra.mxu0 0.0
  %2261 = vmatprep.subr.mxu0 0.0
  %2262 = vmatpush1.msra.mxu0 0.0
  %2263 = vmatprep.subr.mxu0 0.0
  %2264 = vmatpush1.msra.mxu0 0.0
  %2265 = vmatprep.subr.mxu0 0.0
  %2266 = vmatpush1.msra.mxu0 0.0
  %2267 = vmatprep.subr.mxu0 0.0
  %2268 = vmatpush1.msra.mxu0 0.0
  %2269 = vmatprep.subr.mxu0 0.0
  %2270 = vmatpush1.msra.mxu0 0.0
  %2271 = vmatprep.subr.mxu0 0.0
  %2272 = vmatpush1.msra.mxu0 0.0
  %2273 = vmatprep.mubr.f32.mxu0 0.0
  %2274 = vmatmul.mubr.f32.gmra.mrb[0].mxu0 %v2207
  %v2275 = vpop.f32.mrb[0].mxu0
  %v2276 = vadd.f32 %v342, %v2275
  %v2277 = vpop.f32.mrb[0].mxu0
  %2278 = vdwg.mxu0
  %2279 = vmatprep.subr.mxu0 0.0
  %2280 = vmatpush1.msra.mxu0 %v2196
  %2281 = vmatprep.subr.mxu0 0.0
  %2282 = vmatpush1.msra.mxu0 %v2201
  %2283 = vmatprep.subr.mxu0 0.0
  %2284 = vmatpush1.msra.mxu0 0.0
  %2285 = vmatprep.subr.mxu0 0.0
  %2286 = vmatpush1.msra.mxu0 0.0
  %2287 = vmatprep.subr.mxu0 0.0
  %2288 = vmatpush1.msra.mxu0 0.0
  %2289 = vmatprep.subr.mxu0 0.0
  %2290 = vmatpush1.msra.mxu0 0.0
  %2291 = vmatprep.subr.mxu0 0.0
  %2292 = vmatpush1.msra.mxu0 0.0
  %2293 = vmatprep.subr.mxu0 0.0
  %2294 = vmatpush1.msra.mxu0 0.0
  %2295 = vmatprep.subr.mxu0 0.0
  %2296 = vmatpush1.msra.mxu0 0.0
  %2297 = vmatprep.subr.mxu0 0.0
  %2298 = vmatpush1.msra.mxu0 0.0
  %2299 = vmatprep.subr.mxu0 0.0
  %2300 = vmatpush1.msra.mxu0 0.0
  %2301 = vmatprep.subr.mxu0 0.0
  %2302 = vmatpush1.msra.mxu0 0.0
  %2303 = vmatprep.subr.mxu0 0.0
  %2304 = vmatpush1.msra.mxu0 0.0
  %2305 = vmatprep.subr.mxu0 0.0
  %2306 = vmatpush1.msra.mxu0 0.0
  %2307 = vmatprep.subr.mxu0 0.0
  %2308 = vmatpush1.msra.mxu0 0.0
  %2309 = vmatprep.subr.mxu0 0.0
  %2310 = vmatpush1.msra.mxu0 0.0
  %2311 = vmatprep.subr.mxu0 0.0
  %2312 = vmatpush1.msra.mxu0 0.0
  %2313 = vmatprep.subr.mxu0 0.0
  %2314 = vmatpush1.msra.mxu0 0.0
  %2315 = vmatprep.subr.mxu0 0.0
  %2316 = vmatpush1.msra.mxu0 0.0
  %2317 = vmatprep.subr.mxu0 0.0
  %2318 = vmatpush1.msra.mxu0 0.0
  %2319 = vmatprep.subr.mxu0 0.0
  %2320 = vmatpush1.msra.mxu0 0.0
  %2321 = vmatprep.subr.mxu0 0.0
  %2322 = vmatpush1.msra.mxu0 0.0
  %2323 = vmatprep.subr.mxu0 0.0
  %2324 = vmatpush1.msra.mxu0 0.0
  %2325 = vmatprep.subr.mxu0 0.0
  %2326 = vmatpush1.msra.mxu0 0.0
  %2327 = vmatprep.subr.mxu0 0.0
  %2328 = vmatpush1.msra.mxu0 0.0
  %2329 = vmatprep.subr.mxu0 0.0
  %2330 = vmatpush1.msra.mxu0 0.0
  %2331 = vmatprep.subr.mxu0 0.0
  %2332 = vmatpush1.msra.mxu0 0.0
  %2333 = vmatprep.subr.mxu0 0.0
  %2334 = vmatpush1.msra.mxu0 0.0
  %2335 = vmatprep.subr.mxu0 0.0
  %2336 = vmatpush1.msra.mxu0 0.0
  %2337 = vmatprep.subr.mxu0 0.0
  %2338 = vmatpush1.msra.mxu0 0.0
  %2339 = vmatprep.subr.mxu0 0.0
  %2340 = vmatpush1.msra.mxu0 0.0
  %2341 = vmatprep.subr.mxu0 0.0
  %2342 = vmatpush1.msra.mxu0 0.0
  %2343 = vmatprep.mubr.f32.mxu0 0.0
  %2344 = vmatmul.mubr.f32.gmra.mrb[0].mxu0 %v418
  %v2345 = vpop.f32.mrb[0].mxu0
  %v2346 = vadd.f32 0.0, %v2345
  %v2347 = vpop.f32.mrb[0].mxu0
  %2348 = vdwg.mxu0
  %2349 = vmatprep.subr.mxu0 0.0
  %2350 = vmatpush1.msra.mxu0 %v2276
  %2351 = vmatprep.subr.mxu0 0.0
  %2352 = vmatpush1.msra.mxu0 0.0
  %2353 = vmatprep.subr.mxu0 0.0
  %2354 = vmatpush1.msra.mxu0 0.0
  %2355 = vmatprep.subr.mxu0 0.0
  %2356 = vmatpush1.msra.mxu0 0.0
  %2357 = vmatprep.subr.mxu0 0.0
  %2358 = vmatpush1.msra.mxu0 0.0
  %2359 = vmatprep.subr.mxu0 0.0
  %2360 = vmatpush1.msra.mxu0 0.0
  %2361 = vmatprep.subr.mxu0 0.0
  %2362 = vmatpush1.msra.mxu0 0.0
  %2363 = vmatprep.subr.mxu0 0.0
  %2364 = vmatpush1.msra.mxu0 0.0
  %2365 = vmatprep.subr.mxu0 0.0
  %2366 = vmatpush1.msra.mxu0 0.0
  %2367 = vmatprep.subr.mxu0 0.0
  %2368 = vmatpush1.msra.mxu0 0.0
  %2369 = vmatprep.subr.mxu0 0.0
  %2370 = vmatpush1.msra.mxu0 0.0
  %2371 = vmatprep.subr.mxu0 0.0
  %2372 = vmatpush1.msra.mxu0 0.0
  %2373 = vmatprep.subr.mxu0 0.0
  %2374 = vmatpush1.msra.mxu0 0.0
  %2375 = vmatprep.subr.mxu0 0.0
  %2376 = vmatpush1.msra.mxu0 0.0
  %2377 = vmatprep.subr.mxu0 0.0
  %2378 = vmatpush1.msra.mxu0 0.0
  %2379 = vmatprep.subr.mxu0 0.0
  %2380 = vmatpush1.msra.mxu0 0.0
  %2381 = vmatprep.subr.mxu0 0.0
  %2382 = vmatpush1.msra.mxu0 0.0
  %2383 = vmatprep.subr.mxu0 0.0
  %2384 = vmatpush1.msra.mxu0 0.0
  %2385 = vmatprep.subr.mxu0 0.0
  %2386 = vmatpush1.msra.mxu0 0.0
  %2387 = vmatprep.subr.mxu0 0.0
  %2388 = vmatpush1.msra.mxu0 0.0
  %2389 = vmatprep.subr.mxu0 0.0
  %2390 = vmatpush1.msra.mxu0 0.0
  %2391 = vmatprep.subr.mxu0 0.0
  %2392 = vmatpush1.msra.mxu0 0.0
  %2393 = vmatprep.subr.mxu0 0.0
  %2394 = vmatpush1.msra.mxu0 0.0
  %2395 = vmatprep.subr.mxu0 0.0
  %2396 = vmatpush1.msra.mxu0 0.0
  %2397 = vmatprep.subr.mxu0 0.0
  %2398 = vmatpush1.msra.mxu0 0.0
  %2399 = vmatprep.subr.mxu0 0.0
  %2400 = vmatpush1.msra.mxu0 0.0
  %2401 = vmatprep.subr.mxu0 0.0
  %2402 = vmatpush1.msra.mxu0 0.0
  %2403 = vmatprep.subr.mxu0 0.0
  %2404 = vmatpush1.msra.mxu0 0.0
  %2405 = vmatprep.subr.mxu0 0.0
  %2406 = vmatpush1.msra.mxu0 0.0
  %2407 = vmatprep.subr.mxu0 0.0
  %2408 = vmatpush1.msra.mxu0 0.0
  %2409 = vmatprep.subr.mxu0 0.0
  %2410 = vmatpush1.msra.mxu0 0.0
  %2411 = vmatprep.subr.mxu0 0.0
  %2412 = vmatpush1.msra.mxu0 0.0
  %2413 = vmatprep.mubr.f32.mxu0 0.0
  %2414 = vmatmul.mubr.f32.gmra.mrb[0].mxu0 %v524
  %v2415 = vpop.f32.mrb[0].mxu0
  %v2416 = vadd.f32 0.0, %v2415
  %v2417 = vpop.f32.mrb[0].mxu0
  %2418 = vmatprep.mubr.f32.mxu0 0.0
  %2419 = vmatmul.mubr.f32.gmra.mrb[0].mxu0 %v527
  %v2420 = vpop.f32.mrb[0].mxu0
  %v2421 = vadd.f32 0.0, %v2420
  %v2422 = vpop.f32.mrb[0].mxu0
  %2423 = vdwg.mxu0
  %v2425 = vsel %vm85, %v2346, 0
  %2427 = vmatprep.subr.mxu0 0.0
  %2428 = vmatpush1.msra.mxu0 %v57
  %2429 = vmatprep.subr.mxu0 0.0
  %2430 = vmatpush1.msra.mxu0 %v58
  %2431 = vmatprep.subr.mxu0 0.0
  %2432 = vmatpush1.msra.mxu0 %v59
  %2433 = vmatprep.subr.mxu0 0.0
  %2434 = vmatpush1.msra.mxu0 %v60
  %2435 = vmatprep.subr.mxu0 0.0
  %2436 = vmatpush1.msra.mxu0 0.0
  %2437 = vmatprep.subr.mxu0 0.0
  %2438 = vmatpush1.msra.mxu0 0.0
  %2439 = vmatprep.subr.mxu0 0.0
  %2440 = vmatpush1.msra.mxu0 0.0
  %2441 = vmatprep.subr.mxu0 0.0
  %2442 = vmatpush1.msra.mxu0 0.0
  %2443 = vmatprep.subr.mxu0 0.0
  %2444 = vmatpush1.msra.mxu0 0.0
  %2445 = vmatprep.subr.mxu0 0.0
  %2446 = vmatpush1.msra.mxu0 0.0
  %2447 = vmatprep.subr.mxu0 0.0
  %2448 = vmatpush1.msra.mxu0 0.0
  %2449 = vmatprep.subr.mxu0 0.0
  %2450 = vmatpush1.msra.mxu0 0.0
  %2451 = vmatprep.subr.mxu0 0.0
  %2452 = vmatpush1.msra.mxu0 0.0
  %2453 = vmatprep.subr.mxu0 0.0
  %2454 = vmatpush1.msra.mxu0 0.0
  %2455 = vmatprep.subr.mxu0 0.0
  %2456 = vmatpush1.msra.mxu0 0.0
  %2457 = vmatprep.subr.mxu0 0.0
  %2458 = vmatpush1.msra.mxu0 0.0
  %2459 = vmatprep.subr.mxu0 0.0
  %2460 = vmatpush1.msra.mxu0 0.0
  %2461 = vmatprep.subr.mxu0 0.0
  %2462 = vmatpush1.msra.mxu0 0.0
  %2463 = vmatprep.subr.mxu0 0.0
  %2464 = vmatpush1.msra.mxu0 0.0
  %2465 = vmatprep.subr.mxu0 0.0
  %2466 = vmatpush1.msra.mxu0 0.0
  %2467 = vmatprep.subr.mxu0 0.0
  %2468 = vmatpush1.msra.mxu0 0.0
  %2469 = vmatprep.subr.mxu0 0.0
  %2470 = vmatpush1.msra.mxu0 0.0
  %2471 = vmatprep.subr.mxu0 0.0
  %2472 = vmatpush1.msra.mxu0 0.0
  %2473 = vmatprep.subr.mxu0 0.0
  %2474 = vmatpush1.msra.mxu0 0.0
  %2475 = vmatprep.subr.mxu0 0.0
  %2476 = vmatpush1.msra.mxu0 0.0
  %2477 = vmatprep.subr.mxu0 0.0
  %2478 = vmatpush1.msra.mxu0 0.0
  %2479 = vmatprep.subr.mxu0 0.0
  %2480 = vmatpush1.msra.mxu0 0.0
  %2481 = vmatprep.subr.mxu0 0.0
  %2482 = vmatpush1.msra.mxu0 0.0
  %2483 = vmatprep.subr.mxu0 0.0
  %2484 = vmatpush1.msra.mxu0 0.0
  %2485 = vmatprep.subr.mxu0 0.0
  %2486 = vmatpush1.msra.mxu0 0.0
  %2487 = vmatprep.subr.mxu0 0.0
  %2488 = vmatpush1.msra.mxu0 0.0
  %2489 = vmatprep.subr.mxu0 0.0
  %2490 = vmatpush1.msra.mxu0 0.0
  %2491 = vmatprep.mubr.f32.mxu0 0.0
  %2492 = vmatmul.mubr.f32.gmra.mrb[0].mxu0 %v2425
  %v2493 = vpop.f32.mrb[0].mxu0
  %v2494 = vadd.f32 0.0, %v2493
  %v2495 = vpop.f32.mrb[0].mxu0
  %2496 = vdwg.mxu0
  %2498 = vrot.lane.b32.xlu0 %v2494, 32
  %v2499 = vpop.permute.xlu0 %2498
  %v2501 = vadd.f32 %v2116, %v2499
  %v2502 = vadd.f32 %v2501, %v688
  %v2503 = vmax.f32 %v2502, 0.0
  %2505 = vrot.lane.b32.xlu0 %v2503, 96
  %v2506 = vpop.permute.xlu0 %2505
  %v2507 = vsel %vm85, %v2506, 0
  %2509 = vmatprep.subr.mxu0 0.0
  %2510 = vmatpush1.msra.mxu0 %v73
  %2511 = vmatprep.subr.mxu0 0.0
  %2512 = vmatpush1.msra.mxu0 %v74
  %2513 = vmatprep.subr.mxu0 0.0
  %2514 = vmatpush1.msra.mxu0 %v75
  %2515 = vmatprep.subr.mxu0 0.0
  %2516 = vmatpush1.msra.mxu0 %v76
  %2517 = vmatprep.subr.mxu0 0.0
  %2518 = vmatpush1.msra.mxu0 0.0
  %2519 = vmatprep.subr.mxu0 0.0
  %2520 = vmatpush1.msra.mxu0 0.0
  %2521 = vmatprep.subr.mxu0 0.0
  %2522 = vmatpush1.msra.mxu0 0.0
  %2523 = vmatprep.subr.mxu0 0.0
  %2524 = vmatpush1.msra.mxu0 0.0
  %2525 = vmatprep.subr.mxu0 0.0
  %2526 = vmatpush1.msra.mxu0 0.0
  %2527 = vmatprep.subr.mxu0 0.0
  %2528 = vmatpush1.msra.mxu0 0.0
  %2529 = vmatprep.subr.mxu0 0.0
  %2530 = vmatpush1.msra.mxu0 0.0
  %2531 = vmatprep.subr.mxu0 0.0
  %2532 = vmatpush1.msra.mxu0 0.0
  %2533 = vmatprep.subr.mxu0 0.0
  %2534 = vmatpush1.msra.mxu0 0.0
  %2535 = vmatprep.subr.mxu0 0.0
  %2536 = vmatpush1.msra.mxu0 0.0
  %2537 = vmatprep.subr.mxu0 0.0
  %2538 = vmatpush1.msra.mxu0 0.0
  %2539 = vmatprep.subr.mxu0 0.0
  %2540 = vmatpush1.msra.mxu0 0.0
  %2541 = vmatprep.subr.mxu0 0.0
  %2542 = vmatpush1.msra.mxu0 0.0
  %2543 = vmatprep.subr.mxu0 0.0
  %2544 = vmatpush1.msra.mxu0 0.0
  %2545 = vmatprep.subr.mxu0 0.0
  %2546 = vmatpush1.msra.mxu0 0.0
  %2547 = vmatprep.subr.mxu0 0.0
  %2548 = vmatpush1.msra.mxu0 0.0
  %2549 = vmatprep.subr.mxu0 0.0
  %2550 = vmatpush1.msra.mxu0 0.0
  %2551 = vmatprep.subr.mxu0 0.0
  %2552 = vmatpush1.msra.mxu0 0.0
  %2553 = vmatprep.subr.mxu0 0.0
  %2554 = vmatpush1.msra.mxu0 0.0
  %2555 = vmatprep.subr.mxu0 0.0
  %2556 = vmatpush1.msra.mxu0 0.0
  %2557 = vmatprep.subr.mxu0 0.0
  %2558 = vmatpush1.msra.mxu0 0.0
  %2559 = vmatprep.subr.mxu0 0.0
  %2560 = vmatpush1.msra.mxu0 0.0
  %2561 = vmatprep.subr.mxu0 0.0
  %2562 = vmatpush1.msra.mxu0 0.0
  %2563 = vmatprep.subr.mxu0 0.0
  %2564 = vmatpush1.msra.mxu0 0.0
  %2565 = vmatprep.subr.mxu0 0.0
  %2566 = vmatpush1.msra.mxu0 0.0
  %2567 = vmatprep.subr.mxu0 0.0
  %2568 = vmatpush1.msra.mxu0 0.0
  %2569 = vmatprep.subr.mxu0 0.0
  %2570 = vmatpush1.msra.mxu0 0.0
  %2571 = vmatprep.subr.mxu0 0.0
  %2572 = vmatpush1.msra.mxu0 0.0
  %2573 = vmatprep.mubr.f32.mxu0 0.0
  %2574 = vmatmul.mubr.f32.gmra.mrb[0].mxu0 %v2507
  %v2575 = vpop.f32.mrb[0].mxu0
  %v2576 = vadd.f32 %v695, %v2575
  %v2577 = vpop.f32.mrb[0].mxu0
  %2578 = vdwg.mxu0
  %2581 = vrot.lane.b32.xlu0 %v2039, 64
  %v2582 = vpop.permute.xlu0 %2581
  %2583 = vrot.lane.b32.xlu0 %v2044, 64
  %v2584 = vpop.permute.xlu0 %2583
  %2587 = vmatprep.subr.mxu0 0.0
  %2588 = vmatpush1.msra.mxu0 %v2582
  %2589 = vmatprep.subr.mxu0 0.0
  %2590 = vmatpush1.msra.mxu0 %v2584
  %2591 = vmatprep.subr.mxu0 0.0
  %2592 = vmatpush1.msra.mxu0 0.0
  %2593 = vmatprep.subr.mxu0 0.0
  %2594 = vmatpush1.msra.mxu0 0.0
  %2595 = vmatprep.subr.mxu0 0.0
  %2596 = vmatpush1.msra.mxu0 0.0
  %2597 = vmatprep.subr.mxu0 0.0
  %2598 = vmatpush1.msra.mxu0 0.0
  %2599 = vmatprep.subr.mxu0 0.0
  %2600 = vmatpush1.msra.mxu0 0.0
  %2601 = vmatprep.subr.mxu0 0.0
  %2602 = vmatpush1.msra.mxu0 0.0
  %2603 = vmatprep.subr.mxu0 0.0
  %2604 = vmatpush1.msra.mxu0 0.0
  %2605 = vmatprep.subr.mxu0 0.0
  %2606 = vmatpush1.msra.mxu0 0.0
  %2607 = vmatprep.subr.mxu0 0.0
  %2608 = vmatpush1.msra.mxu0 0.0
  %2609 = vmatprep.subr.mxu0 0.0
  %2610 = vmatpush1.msra.mxu0 0.0
  %2611 = vmatprep.subr.mxu0 0.0
  %2612 = vmatpush1.msra.mxu0 0.0
  %2613 = vmatprep.subr.mxu0 0.0
  %2614 = vmatpush1.msra.mxu0 0.0
  %2615 = vmatprep.subr.mxu0 0.0
  %2616 = vmatpush1.msra.mxu0 0.0
  %2617 = vmatprep.subr.mxu0 0.0
  %2618 = vmatpush1.msra.mxu0 0.0
  %2619 = vmatprep.subr.mxu0 0.0
  %2620 = vmatpush1.msra.mxu0 0.0
  %2621 = vmatprep.subr.mxu0 0.0
  %2622 = vmatpush1.msra.mxu0 0.0
  %2623 = vmatprep.subr.mxu0 0.0
  %2624 = vmatpush1.msra.mxu0 0.0
  %2625 = vmatprep.subr.mxu0 0.0
  %2626 = vmatpush1.msra.mxu0 0.0
  %2627 = vmatprep.subr.mxu0 0.0
  %2628 = vmatpush1.msra.mxu0 0.0
  %2629 = vmatprep.subr.mxu0 0.0
  %2630 = vmatpush1.msra.mxu0 0.0
  %2631 = vmatprep.subr.mxu0 0.0
  %2632 = vmatpush1.msra.mxu0 0.0
  %2633 = vmatprep.subr.mxu0 0.0
  %2634 = vmatpush1.msra.mxu0 0.0
  %2635 = vmatprep.subr.mxu0 0.0
  %2636 = vmatpush1.msra.mxu0 0.0
  %2637 = vmatprep.subr.mxu0 0.0
  %2638 = vmatpush1.msra.mxu0 0.0
  %2639 = vmatprep.subr.mxu0 0.0
  %2640 = vmatpush1.msra.mxu0 0.0
  %2641 = vmatprep.subr.mxu0 0.0
  %2642 = vmatpush1.msra.mxu0 0.0
  %2643 = vmatprep.subr.mxu0 0.0
  %2644 = vmatpush1.msra.mxu0 0.0
  %2645 = vmatprep.subr.mxu0 0.0
  %2646 = vmatpush1.msra.mxu0 0.0
  %2647 = vmatprep.subr.mxu0 0.0
  %2648 = vmatpush1.msra.mxu0 0.0
  %2649 = vmatprep.subr.mxu0 0.0
  %2650 = vmatpush1.msra.mxu0 0.0
  %2651 = vmatprep.mubr.f32.mxu0 0.0
  %2652 = vmatmul.mubr.f32.gmra.mrb[0].mxu0 %v780
  %v2653 = vpop.f32.mrb[0].mxu0
  %v2654 = vadd.f32 0.0, %v2653
  %v2655 = vpop.f32.mrb[0].mxu0
  %2656 = vmatprep.mubr.f32.mxu0 0.0
  %2657 = vmatmul.mubr.f32.gmra.mrb[0].mxu0 %v783
  %v2658 = vpop.f32.mrb[0].mxu0
  %v2659 = vadd.f32 0.0, %v2658
  %v2660 = vpop.f32.mrb[0].mxu0
  %2661 = vdwg.mxu0
  %v2663 = vsel %vm85, %v2416, 0
  %v2666 = vsel %vm85, %v2421, 0
  %2668 = vmatprep.subr.mxu0 0.0
  %2669 = vmatpush1.msra.mxu0 %v61
  %2670 = vmatprep.subr.mxu0 0.0
  %2671 = vmatpush1.msra.mxu0 %v62
  %2672 = vmatprep.subr.mxu0 0.0
  %2673 = vmatpush1.msra.mxu0 %v63
  %2674 = vmatprep.subr.mxu0 0.0
  %2675 = vmatpush1.msra.mxu0 %v64
  %2676 = vmatprep.subr.mxu0 0.0
  %2677 = vmatpush1.msra.mxu0 0.0
  %2678 = vmatprep.subr.mxu0 0.0
  %2679 = vmatpush1.msra.mxu0 0.0
  %2680 = vmatprep.subr.mxu0 0.0
  %2681 = vmatpush1.msra.mxu0 0.0
  %2682 = vmatprep.subr.mxu0 0.0
  %2683 = vmatpush1.msra.mxu0 0.0
  %2684 = vmatprep.subr.mxu0 0.0
  %2685 = vmatpush1.msra.mxu0 0.0
  %2686 = vmatprep.subr.mxu0 0.0
  %2687 = vmatpush1.msra.mxu0 0.0
  %2688 = vmatprep.subr.mxu0 0.0
  %2689 = vmatpush1.msra.mxu0 0.0
  %2690 = vmatprep.subr.mxu0 0.0
  %2691 = vmatpush1.msra.mxu0 0.0
  %2692 = vmatprep.subr.mxu0 0.0
  %2693 = vmatpush1.msra.mxu0 0.0
  %2694 = vmatprep.subr.mxu0 0.0
  %2695 = vmatpush1.msra.mxu0 0.0
  %2696 = vmatprep.subr.mxu0 0.0
  %2697 = vmatpush1.msra.mxu0 0.0
  %2698 = vmatprep.subr.mxu0 0.0
  %2699 = vmatpush1.msra.mxu0 0.0
  %2700 = vmatprep.subr.mxu0 0.0
  %2701 = vmatpush1.msra.mxu0 0.0
  %2702 = vmatprep.subr.mxu0 0.0
  %2703 = vmatpush1.msra.mxu0 0.0
  %2704 = vmatprep.subr.mxu0 0.0
  %2705 = vmatpush1.msra.mxu0 0.0
  %2706 = vmatprep.subr.mxu0 0.0
  %2707 = vmatpush1.msra.mxu0 0.0
  %2708 = vmatprep.subr.mxu0 0.0
  %2709 = vmatpush1.msra.mxu0 0.0
  %2710 = vmatprep.subr.mxu0 0.0
  %2711 = vmatpush1.msra.mxu0 0.0
  %2712 = vmatprep.subr.mxu0 0.0
  %2713 = vmatpush1.msra.mxu0 0.0
  %2714 = vmatprep.subr.mxu0 0.0
  %2715 = vmatpush1.msra.mxu0 0.0
  %2716 = vmatprep.subr.mxu0 0.0
  %2717 = vmatpush1.msra.mxu0 0.0
  %2718 = vmatprep.subr.mxu0 0.0
  %2719 = vmatpush1.msra.mxu0 0.0
  %2720 = vmatprep.subr.mxu0 0.0
  %2721 = vmatpush1.msra.mxu0 0.0
  %2722 = vmatprep.subr.mxu0 0.0
  %2723 = vmatpush1.msra.mxu0 0.0
  %2724 = vmatprep.subr.mxu0 0.0
  %2725 = vmatpush1.msra.mxu0 0.0
  %2726 = vmatprep.subr.mxu0 0.0
  %2727 = vmatpush1.msra.mxu0 0.0
  %2728 = vmatprep.subr.mxu0 0.0
  %2729 = vmatpush1.msra.mxu0 0.0
  %2730 = vmatprep.subr.mxu0 0.0
  %2731 = vmatpush1.msra.mxu0 0.0
  %2732 = vmatprep.mubr.f32.mxu0 0.0
  %2733 = vmatmul.mubr.f32.gmra.mrb[0].mxu0 %v2663
  %v2734 = vpop.f32.mrb[0].mxu0
  %v2735 = vadd.f32 0.0, %v2734
  %v2736 = vpop.f32.mrb[0].mxu0
  %2737 = vmatprep.mubr.f32.mxu0 0.0
  %2738 = vmatmul.mubr.f32.gmra.mrb[0].mxu0 %v2666
  %v2739 = vpop.f32.mrb[0].mxu0
  %v2740 = vadd.f32 0.0, %v2739
  %v2741 = vpop.f32.mrb[0].mxu0
  %2742 = vdwg.mxu0
  %2745 = vrot.lane.b32.xlu0 %v2735, 32
  %v2746 = vpop.permute.xlu0 %2745
  %2747 = vrot.lane.b32.xlu0 %v2740, 32
  %v2748 = vpop.permute.xlu0 %2747
  %v2751 = vadd.f32 %v2039, %v2746
  %v2752 = vadd.f32 %v2044, %v2748
  %2755 = vrot.lane.b32.xlu0 %v2654, 32
  %v2756 = vpop.permute.xlu0 %2755
  %2757 = vrot.lane.b32.xlu0 %v2659, 32
  %v2758 = vpop.permute.xlu0 %2757
  %v2761 = vadd.f32 %v2751, %v2756
  %v2762 = vadd.f32 %v2752, %v2758
  %v2763 = vadd.f32 %v2761, %v967
  %v2764 = vadd.f32 %v2762, %v967
  %v2765 = vmax.f32 %v2763, 0.0
  %v2766 = vmax.f32 %v2764, 0.0
  %2769 = vrot.lane.b32.xlu0 %v2765, 96
  %v2770 = vpop.permute.xlu0 %2769
  %2771 = vrot.lane.b32.xlu0 %v2766, 96
  %v2772 = vpop.permute.xlu0 %2771
  %v2773 = vsel %vm85, %v2770, 0
  %v2775 = vsel %vm85, %v2772, 0
  %2777 = vmatprep.subr.mxu0 0.0
  %2778 = vmatpush1.msra.mxu0 %v77
  %2779 = vmatprep.subr.mxu0 0.0
  %2780 = vmatpush1.msra.mxu0 %v78
  %2781 = vmatprep.subr.mxu0 0.0
  %2782 = vmatpush1.msra.mxu0 %v79
  %2783 = vmatprep.subr.mxu0 0.0
  %2784 = vmatpush1.msra.mxu0 %v80
  %2785 = vmatprep.subr.mxu0 0.0
  %2786 = vmatpush1.msra.mxu0 0.0
  %2787 = vmatprep.subr.mxu0 0.0
  %2788 = vmatpush1.msra.mxu0 0.0
  %2789 = vmatprep.subr.mxu0 0.0
  %2790 = vmatpush1.msra.mxu0 0.0
  %2791 = vmatprep.subr.mxu0 0.0
  %2792 = vmatpush1.msra.mxu0 0.0
  %2793 = vmatprep.subr.mxu0 0.0
  %2794 = vmatpush1.msra.mxu0 0.0
  %2795 = vmatprep.subr.mxu0 0.0
  %2796 = vmatpush1.msra.mxu0 0.0
  %2797 = vmatprep.subr.mxu0 0.0
  %2798 = vmatpush1.msra.mxu0 0.0
  %2799 = vmatprep.subr.mxu0 0.0
  %2800 = vmatpush1.msra.mxu0 0.0
  %2801 = vmatprep.subr.mxu0 0.0
  %2802 = vmatpush1.msra.mxu0 0.0
  %2803 = vmatprep.subr.mxu0 0.0
  %2804 = vmatpush1.msra.mxu0 0.0
  %2805 = vmatprep.subr.mxu0 0.0
  %2806 = vmatpush1.msra.mxu0 0.0
  %2807 = vmatprep.subr.mxu0 0.0
  %2808 = vmatpush1.msra.mxu0 0.0
  %2809 = vmatprep.subr.mxu0 0.0
  %2810 = vmatpush1.msra.mxu0 0.0
  %2811 = vmatprep.subr.mxu0 0.0
  %2812 = vmatpush1.msra.mxu0 0.0
  %2813 = vmatprep.subr.mxu0 0.0
  %2814 = vmatpush1.msra.mxu0 0.0
  %2815 = vmatprep.subr.mxu0 0.0
  %2816 = vmatpush1.msra.mxu0 0.0
  %2817 = vmatprep.subr.mxu0 0.0
  %2818 = vmatpush1.msra.mxu0 0.0
  %2819 = vmatprep.subr.mxu0 0.0
  %2820 = vmatpush1.msra.mxu0 0.0
  %2821 = vmatprep.subr.mxu0 0.0
  %2822 = vmatpush1.msra.mxu0 0.0
  %2823 = vmatprep.subr.mxu0 0.0
  %2824 = vmatpush1.msra.mxu0 0.0
  %2825 = vmatprep.subr.mxu0 0.0
  %2826 = vmatpush1.msra.mxu0 0.0
  %2827 = vmatprep.subr.mxu0 0.0
  %2828 = vmatpush1.msra.mxu0 0.0
  %2829 = vmatprep.subr.mxu0 0.0
  %2830 = vmatpush1.msra.mxu0 0.0
  %2831 = vmatprep.subr.mxu0 0.0
  %2832 = vmatpush1.msra.mxu0 0.0
  %2833 = vmatprep.subr.mxu0 0.0
  %2834 = vmatpush1.msra.mxu0 0.0
  %2835 = vmatprep.subr.mxu0 0.0
  %2836 = vmatpush1.msra.mxu0 0.0
  %2837 = vmatprep.subr.mxu0 0.0
  %2838 = vmatpush1.msra.mxu0 0.0
  %2839 = vmatprep.subr.mxu0 0.0
  %2840 = vmatpush1.msra.mxu0 0.0
  %2841 = vmatprep.mubr.f32.mxu0 0.0
  %2842 = vmatmul.mubr.f32.gmra.mrb[0].mxu0 %v2773
  %v2843 = vpop.f32.mrb[0].mxu0
  %v2844 = vadd.f32 %v976, %v2843
  %v2845 = vpop.f32.mrb[0].mxu0
  %2846 = vmatprep.mubr.f32.mxu0 0.0
  %2847 = vmatmul.mubr.f32.gmra.mrb[0].mxu0 %v2775
  %v2848 = vpop.f32.mrb[0].mxu0
  %v2849 = vadd.f32 %v976, %v2848
  %v2850 = vpop.f32.mrb[0].mxu0
  %2851 = vdwg.mxu0
  %2854 = vrot.lane.b32.xlu0 %v2844, 64
  %v2855 = vpop.permute.xlu0 %2854
  %2856 = vrot.lane.b32.xlu0 %v2849, 64
  %v2857 = vpop.permute.xlu0 %2856
  %vm2860 = vcmask 785920
  %2861 = vst.msk [vmem:[%s13] sm:$0xff] %vm2860, %v2855
  %2862 = vst.msk [vmem:[%s13 + $0x8] sm:$0xff] %vm2860, %v2857
  %2864 = vrot.lane.b32.xlu0 %v2576, 64
  %v2865 = vpop.permute.xlu0 %2864
  %2867 = vst.msk [vmem:[%s14] sm:$0xff] %vm2860, %v2865
  %v2868 = vsel %vm85, %v2844, 0
  %v2870 = vsel %vm85, %v2849, 0
  %2872 = vmatprep.subr.mxu0 0.0
  %2873 = vmatpush1.msra.mxu0 %v49
  %2874 = vmatprep.subr.mxu0 0.0
  %2875 = vmatpush1.msra.mxu0 %v50
  %2876 = vmatprep.subr.mxu0 0.0
  %2877 = vmatpush1.msra.mxu0 %v51
  %2878 = vmatprep.subr.mxu0 0.0
  %2879 = vmatpush1.msra.mxu0 %v52
  %2880 = vmatprep.subr.mxu0 0.0
  %2881 = vmatpush1.msra.mxu0 0.0
  %2882 = vmatprep.subr.mxu0 0.0
  %2883 = vmatpush1.msra.mxu0 0.0
  %2884 = vmatprep.subr.mxu0 0.0
  %2885 = vmatpush1.msra.mxu0 0.0
  %2886 = vmatprep.subr.mxu0 0.0
  %2887 = vmatpush1.msra.mxu0 0.0
  %2888 = vmatprep.subr.mxu0 0.0
  %2889 = vmatpush1.msra.mxu0 0.0
  %2890 = vmatprep.subr.mxu0 0.0
  %2891 = vmatpush1.msra.mxu0 0.0
  %2892 = vmatprep.subr.mxu0 0.0
  %2893 = vmatpush1.msra.mxu0 0.0
  %2894 = vmatprep.subr.mxu0 0.0
  %2895 = vmatpush1.msra.mxu0 0.0
  %2896 = vmatprep.subr.mxu0 0.0
  %2897 = vmatpush1.msra.mxu0 0.0
  %2898 = vmatprep.subr.mxu0 0.0
  %2899 = vmatpush1.msra.mxu0 0.0
  %2900 = vmatprep.subr.mxu0 0.0
  %2901 = vmatpush1.msra.mxu0 0.0
  %2902 = vmatprep.subr.mxu0 0.0
  %2903 = vmatpush1.msra.mxu0 0.0
  %2904 = vmatprep.subr.mxu0 0.0
  %2905 = vmatpush1.msra.mxu0 0.0
  %2906 = vmatprep.subr.mxu0 0.0
  %2907 = vmatpush1.msra.mxu0 0.0
  %2908 = vmatprep.subr.mxu0 0.0
  %2909 = vmatpush1.msra.mxu0 0.0
  %2910 = vmatprep.subr.mxu0 0.0
  %2911 = vmatpush1.msra.mxu0 0.0
  %2912 = vmatprep.subr.mxu0 0.0
  %2913 = vmatpush1.msra.mxu0 0.0
  %2914 = vmatprep.subr.mxu0 0.0
  %2915 = vmatpush1.msra.mxu0 0.0
  %2916 = vmatprep.subr.mxu0 0.0
  %2917 = vmatpush1.msra.mxu0 0.0
  %2918 = vmatprep.subr.mxu0 0.0
  %2919 = vmatpush1.msra.mxu0 0.0
  %2920 = vmatprep.subr.mxu0 0.0
  %2921 = vmatpush1.msra.mxu0 0.0
  %2922 = vmatprep.subr.mxu0 0.0
  %2923 = vmatpush1.msra.mxu0 0.0
  %2924 = vmatprep.subr.mxu0 0.0
  %2925 = vmatpush1.msra.mxu0 0.0
  %2926 = vmatprep.subr.mxu0 0.0
  %2927 = vmatpush1.msra.mxu0 0.0
  %2928 = vmatprep.subr.mxu0 0.0
  %2929 = vmatpush1.msra.mxu0 0.0
  %2930 = vmatprep.subr.mxu0 0.0
  %2931 = vmatpush1.msra.mxu0 0.0
  %2932 = vmatprep.subr.mxu0 0.0
  %2933 = vmatpush1.msra.mxu0 0.0
  %2934 = vmatprep.subr.mxu0 0.0
  %2935 = vmatpush1.msra.mxu0 0.0
  %2936 = vmatprep.mubr.f32.mxu0 0.0
  %2937 = vmatmul.mubr.f32.gmra.mrb[0].mxu0 %v2868
  %v2938 = vpop.f32.mrb[0].mxu0
  %v2939 = vadd.f32 0.0, %v2938
  %v2940 = vpop.f32.mrb[0].mxu0
  %2941 = vmatprep.mubr.f32.mxu0 0.0
  %2942 = vmatmul.mubr.f32.gmra.mrb[0].mxu0 %v2870
  %v2943 = vpop.f32.mrb[0].mxu0
  %v2944 = vadd.f32 0.0, %v2943
  %v2945 = vpop.f32.mrb[0].mxu0
  %2946 = vdwg.mxu0
  %v2947 = vsel %vm85, %v2576, 0
  %2949 = vmatprep.subr.mxu0 0.0
  %2950 = vmatpush1.msra.mxu0 %v53
  %2951 = vmatprep.subr.mxu0 0.0
  %2952 = vmatpush1.msra.mxu0 %v54
  %2953 = vmatprep.subr.mxu0 0.0
  %2954 = vmatpush1.msra.mxu0 %v55
  %2955 = vmatprep.subr.mxu0 0.0
  %2956 = vmatpush1.msra.mxu0 %v56
  %2957 = vmatprep.subr.mxu0 0.0
  %2958 = vmatpush1.msra.mxu0 0.0
  %2959 = vmatprep.subr.mxu0 0.0
  %2960 = vmatpush1.msra.mxu0 0.0
  %2961 = vmatprep.subr.mxu0 0.0
  %2962 = vmatpush1.msra.mxu0 0.0
  %2963 = vmatprep.subr.mxu0 0.0
  %2964 = vmatpush1.msra.mxu0 0.0
  %2965 = vmatprep.subr.mxu0 0.0
  %2966 = vmatpush1.msra.mxu0 0.0
  %2967 = vmatprep.subr.mxu0 0.0
  %2968 = vmatpush1.msra.mxu0 0.0
  %2969 = vmatprep.subr.mxu0 0.0
  %2970 = vmatpush1.msra.mxu0 0.0
  %2971 = vmatprep.subr.mxu0 0.0
  %2972 = vmatpush1.msra.mxu0 0.0
  %2973 = vmatprep.subr.mxu0 0.0
  %2974 = vmatpush1.msra.mxu0 0.0
  %2975 = vmatprep.subr.mxu0 0.0
  %2976 = vmatpush1.msra.mxu0 0.0
  %2977 = vmatprep.subr.mxu0 0.0
  %2978 = vmatpush1.msra.mxu0 0.0
  %2979 = vmatprep.subr.mxu0 0.0
  %2980 = vmatpush1.msra.mxu0 0.0
  %2981 = vmatprep.subr.mxu0 0.0
  %2982 = vmatpush1.msra.mxu0 0.0
  %2983 = vmatprep.subr.mxu0 0.0
  %2984 = vmatpush1.msra.mxu0 0.0
  %2985 = vmatprep.subr.mxu0 0.0
  %2986 = vmatpush1.msra.mxu0 0.0
  %2987 = vmatprep.subr.mxu0 0.0
  %2988 = vmatpush1.msra.mxu0 0.0
  %2989 = vmatprep.subr.mxu0 0.0
  %2990 = vmatpush1.msra.mxu0 0.0
  %2991 = vmatprep.subr.mxu0 0.0
  %2992 = vmatpush1.msra.mxu0 0.0
  %2993 = vmatprep.subr.mxu0 0.0
  %2994 = vmatpush1.msra.mxu0 0.0
  %2995 = vmatprep.subr.mxu0 0.0
  %2996 = vmatpush1.msra.mxu0 0.0
  %2997 = vmatprep.subr.mxu0 0.0
  %2998 = vmatpush1.msra.mxu0 0.0
  %2999 = vmatprep.subr.mxu0 0.0
  %3000 = vmatpush1.msra.mxu0 0.0
  %3001 = vmatprep.subr.mxu0 0.0
  %3002 = vmatpush1.msra.mxu0 0.0
  %3003 = vmatprep.subr.mxu0 0.0
  %3004 = vmatpush1.msra.mxu0 0.0
  %3005 = vmatprep.subr.mxu0 0.0
  %3006 = vmatpush1.msra.mxu0 0.0
  %3007 = vmatprep.subr.mxu0 0.0
  %3008 = vmatpush1.msra.mxu0 0.0
  %3009 = vmatprep.subr.mxu0 0.0
  %3010 = vmatpush1.msra.mxu0 0.0
  %3011 = vmatprep.subr.mxu0 0.0
  %3012 = vmatpush1.msra.mxu0 0.0
  %3013 = vmatprep.mubr.f32.mxu0 0.0
  %3014 = vmatmul.mubr.f32.gmra.mrb[0].mxu0 %v2947
  %v3015 = vpop.f32.mrb[0].mxu0
  %v3016 = vadd.f32 0.0, %v3015
  %v3017 = vpop.f32.mrb[0].mxu0
  %3018 = vdwg.mxu0
  %v3019 = vadd.f32 %v2939, %v243
  %v3020 = vadd.f32 %v2944, %v243
  %v3021 = vmax.f32 %v3019, 0.0
  %v3022 = vmax.f32 %v3020, 0.0
  %v3024 = vsel %vm85, %v3021, 0
  %v3027 = vsel %vm85, %v3022, 0
  %3029 = vmatprep.subr.mxu0 0.0
  %3030 = vmatpush1.msra.mxu0 %v65
  %3031 = vmatprep.subr.mxu0 0.0
  %3032 = vmatpush1.msra.mxu0 %v66
  %3033 = vmatprep.subr.mxu0 0.0
  %3034 = vmatpush1.msra.mxu0 %v67
  %3035 = vmatprep.subr.mxu0 0.0
  %3036 = vmatpush1.msra.mxu0 %v68
  %3037 = vmatprep.subr.mxu0 0.0
  %3038 = vmatpush1.msra.mxu0 0.0
  %3039 = vmatprep.subr.mxu0 0.0
  %3040 = vmatpush1.msra.mxu0 0.0
  %3041 = vmatprep.subr.mxu0 0.0
  %3042 = vmatpush1.msra.mxu0 0.0
  %3043 = vmatprep.subr.mxu0 0.0
  %3044 = vmatpush1.msra.mxu0 0.0
  %3045 = vmatprep.subr.mxu0 0.0
  %3046 = vmatpush1.msra.mxu0 0.0
  %3047 = vmatprep.subr.mxu0 0.0
  %3048 = vmatpush1.msra.mxu0 0.0
  %3049 = vmatprep.subr.mxu0 0.0
  %3050 = vmatpush1.msra.mxu0 0.0
  %3051 = vmatprep.subr.mxu0 0.0
  %3052 = vmatpush1.msra.mxu0 0.0
  %3053 = vmatprep.subr.mxu0 0.0
  %3054 = vmatpush1.msra.mxu0 0.0
  %3055 = vmatprep.subr.mxu0 0.0
  %3056 = vmatpush1.msra.mxu0 0.0
  %3057 = vmatprep.subr.mxu0 0.0
  %3058 = vmatpush1.msra.mxu0 0.0
  %3059 = vmatprep.subr.mxu0 0.0
  %3060 = vmatpush1.msra.mxu0 0.0
  %3061 = vmatprep.subr.mxu0 0.0
  %3062 = vmatpush1.msra.mxu0 0.0
  %3063 = vmatprep.subr.mxu0 0.0
  %3064 = vmatpush1.msra.mxu0 0.0
  %3065 = vmatprep.subr.mxu0 0.0
  %3066 = vmatpush1.msra.mxu0 0.0
  %3067 = vmatprep.subr.mxu0 0.0
  %3068 = vmatpush1.msra.mxu0 0.0
  %3069 = vmatprep.subr.mxu0 0.0
  %3070 = vmatpush1.msra.mxu0 0.0
  %3071 = vmatprep.subr.mxu0 0.0
  %3072 = vmatpush1.msra.mxu0 0.0
  %3073 = vmatprep.subr.mxu0 0.0
  %3074 = vmatpush1.msra.mxu0 0.0
  %3075 = vmatprep.subr.mxu0 0.0
  %3076 = vmatpush1.msra.mxu0 0.0
  %3077 = vmatprep.subr.mxu0 0.0
  %3078 = vmatpush1.msra.mxu0 0.0
  %3079 = vmatprep.subr.mxu0 0.0
  %3080 = vmatpush1.msra.mxu0 0.0
  %3081 = vmatprep.subr.mxu0 0.0
  %3082 = vmatpush1.msra.mxu0 0.0
  %3083 = vmatprep.subr.mxu0 0.0
  %3084 = vmatpush1.msra.mxu0 0.0
  %3085 = vmatprep.subr.mxu0 0.0
  %3086 = vmatpush1.msra.mxu0 0.0
  %3087 = vmatprep.subr.mxu0 0.0
  %3088 = vmatpush1.msra.mxu0 0.0
  %3089 = vmatprep.subr.mxu0 0.0
  %3090 = vmatpush1.msra.mxu0 0.0
  %3091 = vmatprep.subr.mxu0 0.0
  %3092 = vmatpush1.msra.mxu0 0.0
  %3093 = vmatprep.mubr.f32.mxu0 0.0
  %3094 = vmatmul.mubr.f32.gmra.mrb[0].mxu0 %v3024
  %v3095 = vpop.f32.mrb[0].mxu0
  %v3096 = vadd.f32 %v251, %v3095
  %v3097 = vpop.f32.mrb[0].mxu0
  %3098 = vmatprep.mubr.f32.mxu0 0.0
  %3099 = vmatmul.mubr.f32.gmra.mrb[0].mxu0 %v3027
  %v3100 = vpop.f32.mrb[0].mxu0
  %v3101 = vadd.f32 %v251, %v3100
  %v3102 = vpop.f32.mrb[0].mxu0
  %3103 = vdwg.mxu0
  %v3104 = vadd.f32 %v3016, %v336
  %v3105 = vmax.f32 %v3104, 0.0
  %v3107 = vsel %vm85, %v3105, 0
  %3109 = vmatprep.subr.mxu0 0.0
  %3110 = vmatpush1.msra.mxu0 %v69
  %3111 = vmatprep.subr.mxu0 0.0
  %3112 = vmatpush1.msra.mxu0 %v70
  %3113 = vmatprep.subr.mxu0 0.0
  %3114 = vmatpush1.msra.mxu0 %v71
  %3115 = vmatprep.subr.mxu0 0.0
  %3116 = vmatpush1.msra.mxu0 %v72
  %3117 = vmatprep.subr.mxu0 0.0
  %3118 = vmatpush1.msra.mxu0 0.0
  %3119 = vmatprep.subr.mxu0 0.0
  %3120 = vmatpush1.msra.mxu0 0.0
  %3121 = vmatprep.subr.mxu0 0.0
  %3122 = vmatpush1.msra.mxu0 0.0
  %3123 = vmatprep.subr.mxu0 0.0
  %3124 = vmatpush1.msra.mxu0 0.0
  %3125 = vmatprep.subr.mxu0 0.0
  %3126 = vmatpush1.msra.mxu0 0.0
  %3127 = vmatprep.subr.mxu0 0.0
  %3128 = vmatpush1.msra.mxu0 0.0
  %3129 = vmatprep.subr.mxu0 0.0
  %3130 = vmatpush1.msra.mxu0 0.0
  %3131 = vmatprep.subr.mxu0 0.0
  %3132 = vmatpush1.msra.mxu0 0.0
  %3133 = vmatprep.subr.mxu0 0.0
  %3134 = vmatpush1.msra.mxu0 0.0
  %3135 = vmatprep.subr.mxu0 0.0
  %3136 = vmatpush1.msra.mxu0 0.0
  %3137 = vmatprep.subr.mxu0 0.0
  %3138 = vmatpush1.msra.mxu0 0.0
  %3139 = vmatprep.subr.mxu0 0.0
  %3140 = vmatpush1.msra.mxu0 0.0
  %3141 = vmatprep.subr.mxu0 0.0
  %3142 = vmatpush1.msra.mxu0 0.0
  %3143 = vmatprep.subr.mxu0 0.0
  %3144 = vmatpush1.msra.mxu0 0.0
  %3145 = vmatprep.subr.mxu0 0.0
  %3146 = vmatpush1.msra.mxu0 0.0
  %3147 = vmatprep.subr.mxu0 0.0
  %3148 = vmatpush1.msra.mxu0 0.0
  %3149 = vmatprep.subr.mxu0 0.0
  %3150 = vmatpush1.msra.mxu0 0.0
  %3151 = vmatprep.subr.mxu0 0.0
  %3152 = vmatpush1.msra.mxu0 0.0
  %3153 = vmatprep.subr.mxu0 0.0
  %3154 = vmatpush1.msra.mxu0 0.0
  %3155 = vmatprep.subr.mxu0 0.0
  %3156 = vmatpush1.msra.mxu0 0.0
  %3157 = vmatprep.subr.mxu0 0.0
  %3158 = vmatpush1.msra.mxu0 0.0
  %3159 = vmatprep.subr.mxu0 0.0
  %3160 = vmatpush1.msra.mxu0 0.0
  %3161 = vmatprep.subr.mxu0 0.0
  %3162 = vmatpush1.msra.mxu0 0.0
  %3163 = vmatprep.subr.mxu0 0.0
  %3164 = vmatpush1.msra.mxu0 0.0
  %3165 = vmatprep.subr.mxu0 0.0
  %3166 = vmatpush1.msra.mxu0 0.0
  %3167 = vmatprep.subr.mxu0 0.0
  %3168 = vmatpush1.msra.mxu0 0.0
  %3169 = vmatprep.subr.mxu0 0.0
  %3170 = vmatpush1.msra.mxu0 0.0
  %3171 = vmatprep.subr.mxu0 0.0
  %3172 = vmatpush1.msra.mxu0 0.0
  %3173 = vmatprep.mubr.f32.mxu0 0.0
  %3174 = vmatmul.mubr.f32.gmra.mrb[0].mxu0 %v3107
  %v3175 = vpop.f32.mrb[0].mxu0
  %v3176 = vadd.f32 %v342, %v3175
  %v3177 = vpop.f32.mrb[0].mxu0
  %3178 = vdwg.mxu0
  %3179 = vmatprep.subr.mxu0 0.0
  %3180 = vmatpush1.msra.mxu0 %v3096
  %3181 = vmatprep.subr.mxu0 0.0
  %3182 = vmatpush1.msra.mxu0 %v3101
  %3183 = vmatprep.subr.mxu0 0.0
  %3184 = vmatpush1.msra.mxu0 0.0
  %3185 = vmatprep.subr.mxu0 0.0
  %3186 = vmatpush1.msra.mxu0 0.0
  %3187 = vmatprep.subr.mxu0 0.0
  %3188 = vmatpush1.msra.mxu0 0.0
  %3189 = vmatprep.subr.mxu0 0.0
  %3190 = vmatpush1.msra.mxu0 0.0
  %3191 = vmatprep.subr.mxu0 0.0
  %3192 = vmatpush1.msra.mxu0 0.0
  %3193 = vmatprep.subr.mxu0 0.0
  %3194 = vmatpush1.msra.mxu0 0.0
  %3195 = vmatprep.subr.mxu0 0.0
  %3196 = vmatpush1.msra.mxu0 0.0
  %3197 = vmatprep.subr.mxu0 0.0
  %3198 = vmatpush1.msra.mxu0 0.0
  %3199 = vmatprep.subr.mxu0 0.0
  %3200 = vmatpush1.msra.mxu0 0.0
  %3201 = vmatprep.subr.mxu0 0.0
  %3202 = vmatpush1.msra.mxu0 0.0
  %3203 = vmatprep.subr.mxu0 0.0
  %3204 = vmatpush1.msra.mxu0 0.0
  %3205 = vmatprep.subr.mxu0 0.0
  %3206 = vmatpush1.msra.mxu0 0.0
  %3207 = vmatprep.subr.mxu0 0.0
  %3208 = vmatpush1.msra.mxu0 0.0
  %3209 = vmatprep.subr.mxu0 0.0
  %3210 = vmatpush1.msra.mxu0 0.0
  %3211 = vmatprep.subr.mxu0 0.0
  %3212 = vmatpush1.msra.mxu0 0.0
  %3213 = vmatprep.subr.mxu0 0.0
  %3214 = vmatpush1.msra.mxu0 0.0
  %3215 = vmatprep.subr.mxu0 0.0
  %3216 = vmatpush1.msra.mxu0 0.0
  %3217 = vmatprep.subr.mxu0 0.0
  %3218 = vmatpush1.msra.mxu0 0.0
  %3219 = vmatprep.subr.mxu0 0.0
  %3220 = vmatpush1.msra.mxu0 0.0
  %3221 = vmatprep.subr.mxu0 0.0
  %3222 = vmatpush1.msra.mxu0 0.0
  %3223 = vmatprep.subr.mxu0 0.0
  %3224 = vmatpush1.msra.mxu0 0.0
  %3225 = vmatprep.subr.mxu0 0.0
  %3226 = vmatpush1.msra.mxu0 0.0
  %3227 = vmatprep.subr.mxu0 0.0
  %3228 = vmatpush1.msra.mxu0 0.0
  %3229 = vmatprep.subr.mxu0 0.0
  %3230 = vmatpush1.msra.mxu0 0.0
  %3231 = vmatprep.subr.mxu0 0.0
  %3232 = vmatpush1.msra.mxu0 0.0
  %3233 = vmatprep.subr.mxu0 0.0
  %3234 = vmatpush1.msra.mxu0 0.0
  %3235 = vmatprep.subr.mxu0 0.0
  %3236 = vmatpush1.msra.mxu0 0.0
  %3237 = vmatprep.subr.mxu0 0.0
  %3238 = vmatpush1.msra.mxu0 0.0
  %3239 = vmatprep.subr.mxu0 0.0
  %3240 = vmatpush1.msra.mxu0 0.0
  %3241 = vmatprep.subr.mxu0 0.0
  %3242 = vmatpush1.msra.mxu0 0.0
  %3243 = vmatprep.mubr.f32.mxu0 0.0
  %3244 = vmatmul.mubr.f32.gmra.mrb[0].mxu0 %v418
  %v3245 = vpop.f32.mrb[0].mxu0
  %v3246 = vadd.f32 0.0, %v3245
  %v3247 = vpop.f32.mrb[0].mxu0
  %3248 = vdwg.mxu0
  %3249 = vmatprep.subr.mxu0 0.0
  %3250 = vmatpush1.msra.mxu0 %v3176
  %3251 = vmatprep.subr.mxu0 0.0
  %3252 = vmatpush1.msra.mxu0 0.0
  %3253 = vmatprep.subr.mxu0 0.0
  %3254 = vmatpush1.msra.mxu0 0.0
  %3255 = vmatprep.subr.mxu0 0.0
  %3256 = vmatpush1.msra.mxu0 0.0
  %3257 = vmatprep.subr.mxu0 0.0
  %3258 = vmatpush1.msra.mxu0 0.0
  %3259 = vmatprep.subr.mxu0 0.0
  %3260 = vmatpush1.msra.mxu0 0.0
  %3261 = vmatprep.subr.mxu0 0.0
  %3262 = vmatpush1.msra.mxu0 0.0
  %3263 = vmatprep.subr.mxu0 0.0
  %3264 = vmatpush1.msra.mxu0 0.0
  %3265 = vmatprep.subr.mxu0 0.0
  %3266 = vmatpush1.msra.mxu0 0.0
  %3267 = vmatprep.subr.mxu0 0.0
  %3268 = vmatpush1.msra.mxu0 0.0
  %3269 = vmatprep.subr.mxu0 0.0
  %3270 = vmatpush1.msra.mxu0 0.0
  %3271 = vmatprep.subr.mxu0 0.0
  %3272 = vmatpush1.msra.mxu0 0.0
  %3273 = vmatprep.subr.mxu0 0.0
  %3274 = vmatpush1.msra.mxu0 0.0
  %3275 = vmatprep.subr.mxu0 0.0
  %3276 = vmatpush1.msra.mxu0 0.0
  %3277 = vmatprep.subr.mxu0 0.0
  %3278 = vmatpush1.msra.mxu0 0.0
  %3279 = vmatprep.subr.mxu0 0.0
  %3280 = vmatpush1.msra.mxu0 0.0
  %3281 = vmatprep.subr.mxu0 0.0
  %3282 = vmatpush1.msra.mxu0 0.0
  %3283 = vmatprep.subr.mxu0 0.0
  %3284 = vmatpush1.msra.mxu0 0.0
  %3285 = vmatprep.subr.mxu0 0.0
  %3286 = vmatpush1.msra.mxu0 0.0
  %3287 = vmatprep.subr.mxu0 0.0
  %3288 = vmatpush1.msra.mxu0 0.0
  %3289 = vmatprep.subr.mxu0 0.0
  %3290 = vmatpush1.msra.mxu0 0.0
  %3291 = vmatprep.subr.mxu0 0.0
  %3292 = vmatpush1.msra.mxu0 0.0
  %3293 = vmatprep.subr.mxu0 0.0
  %3294 = vmatpush1.msra.mxu0 0.0
  %3295 = vmatprep.subr.mxu0 0.0
  %3296 = vmatpush1.msra.mxu0 0.0
  %3297 = vmatprep.subr.mxu0 0.0
  %3298 = vmatpush1.msra.mxu0 0.0
  %3299 = vmatprep.subr.mxu0 0.0
  %3300 = vmatpush1.msra.mxu0 0.0
  %3301 = vmatprep.subr.mxu0 0.0
  %3302 = vmatpush1.msra.mxu0 0.0
  %3303 = vmatprep.subr.mxu0 0.0
  %3304 = vmatpush1.msra.mxu0 0.0
  %3305 = vmatprep.subr.mxu0 0.0
  %3306 = vmatpush1.msra.mxu0 0.0
  %3307 = vmatprep.subr.mxu0 0.0
  %3308 = vmatpush1.msra.mxu0 0.0
  %3309 = vmatprep.subr.mxu0 0.0
  %3310 = vmatpush1.msra.mxu0 0.0
  %3311 = vmatprep.subr.mxu0 0.0
  %3312 = vmatpush1.msra.mxu0 0.0
  %3313 = vmatprep.mubr.f32.mxu0 0.0
  %3314 = vmatmul.mubr.f32.gmra.mrb[0].mxu0 %v524
  %v3315 = vpop.f32.mrb[0].mxu0
  %v3316 = vadd.f32 0.0, %v3315
  %v3317 = vpop.f32.mrb[0].mxu0
  %3318 = vmatprep.mubr.f32.mxu0 0.0
  %3319 = vmatmul.mubr.f32.gmra.mrb[0].mxu0 %v527
  %v3320 = vpop.f32.mrb[0].mxu0
  %v3321 = vadd.f32 0.0, %v3320
  %v3322 = vpop.f32.mrb[0].mxu0
  %3323 = vdwg.mxu0
  %v3325 = vsel %vm85, %v3246, 0
  %3327 = vmatprep.subr.mxu0 0.0
  %3328 = vmatpush1.msra.mxu0 %v57
  %3329 = vmatprep.subr.mxu0 0.0
  %3330 = vmatpush1.msra.mxu0 %v58
  %3331 = vmatprep.subr.mxu0 0.0
  %3332 = vmatpush1.msra.mxu0 %v59
  %3333 = vmatprep.subr.mxu0 0.0
  %3334 = vmatpush1.msra.mxu0 %v60
  %3335 = vmatprep.subr.mxu0 0.0
  %3336 = vmatpush1.msra.mxu0 0.0
  %3337 = vmatprep.subr.mxu0 0.0
  %3338 = vmatpush1.msra.mxu0 0.0
  %3339 = vmatprep.subr.mxu0 0.0
  %3340 = vmatpush1.msra.mxu0 0.0
  %3341 = vmatprep.subr.mxu0 0.0
  %3342 = vmatpush1.msra.mxu0 0.0
  %3343 = vmatprep.subr.mxu0 0.0
  %3344 = vmatpush1.msra.mxu0 0.0
  %3345 = vmatprep.subr.mxu0 0.0
  %3346 = vmatpush1.msra.mxu0 0.0
  %3347 = vmatprep.subr.mxu0 0.0
  %3348 = vmatpush1.msra.mxu0 0.0
  %3349 = vmatprep.subr.mxu0 0.0
  %3350 = vmatpush1.msra.mxu0 0.0
  %3351 = vmatprep.subr.mxu0 0.0
  %3352 = vmatpush1.msra.mxu0 0.0
  %3353 = vmatprep.subr.mxu0 0.0
  %3354 = vmatpush1.msra.mxu0 0.0
  %3355 = vmatprep.subr.mxu0 0.0
  %3356 = vmatpush1.msra.mxu0 0.0
  %3357 = vmatprep.subr.mxu0 0.0
  %3358 = vmatpush1.msra.mxu0 0.0
  %3359 = vmatprep.subr.mxu0 0.0
  %3360 = vmatpush1.msra.mxu0 0.0
  %3361 = vmatprep.subr.mxu0 0.0
  %3362 = vmatpush1.msra.mxu0 0.0
  %3363 = vmatprep.subr.mxu0 0.0
  %3364 = vmatpush1.msra.mxu0 0.0
  %3365 = vmatprep.subr.mxu0 0.0
  %3366 = vmatpush1.msra.mxu0 0.0
  %3367 = vmatprep.subr.mxu0 0.0
  %3368 = vmatpush1.msra.mxu0 0.0
  %3369 = vmatprep.subr.mxu0 0.0
  %3370 = vmatpush1.msra.mxu0 0.0
  %3371 = vmatprep.subr.mxu0 0.0
  %3372 = vmatpush1.msra.mxu0 0.0
  %3373 = vmatprep.subr.mxu0 0.0
  %3374 = vmatpush1.msra.mxu0 0.0
  %3375 = vmatprep.subr.mxu0 0.0
  %3376 = vmatpush1.msra.mxu0 0.0
  %3377 = vmatprep.subr.mxu0 0.0
  %3378 = vmatpush1.msra.mxu0 0.0
  %3379 = vmatprep.subr.mxu0 0.0
  %3380 = vmatpush1.msra.mxu0 0.0
  %3381 = vmatprep.subr.mxu0 0.0
  %3382 = vmatpush1.msra.mxu0 0.0
  %3383 = vmatprep.subr.mxu0 0.0
  %3384 = vmatpush1.msra.mxu0 0.0
  %3385 = vmatprep.subr.mxu0 0.0
  %3386 = vmatpush1.msra.mxu0 0.0
  %3387 = vmatprep.subr.mxu0 0.0
  %3388 = vmatpush1.msra.mxu0 0.0
  %3389 = vmatprep.subr.mxu0 0.0
  %3390 = vmatpush1.msra.mxu0 0.0
  %3391 = vmatprep.mubr.f32.mxu0 0.0
  %3392 = vmatmul.mubr.f32.gmra.mrb[0].mxu0 %v3325
  %v3393 = vpop.f32.mrb[0].mxu0
  %v3394 = vadd.f32 0.0, %v3393
  %v3395 = vpop.f32.mrb[0].mxu0
  %3396 = vdwg.mxu0
  %3398 = vrot.lane.b32.xlu0 %v3394, 32
  %v3399 = vpop.permute.xlu0 %3398
  %v3401 = vadd.f32 %v3016, %v3399
  %v3402 = vadd.f32 %v3401, %v688
  %v3403 = vmax.f32 %v3402, 0.0
  %3405 = vrot.lane.b32.xlu0 %v3403, 96
  %v3406 = vpop.permute.xlu0 %3405
  %v3407 = vsel %vm85, %v3406, 0
  %3409 = vmatprep.subr.mxu0 0.0
  %3410 = vmatpush1.msra.mxu0 %v73
  %3411 = vmatprep.subr.mxu0 0.0
  %3412 = vmatpush1.msra.mxu0 %v74
  %3413 = vmatprep.subr.mxu0 0.0
  %3414 = vmatpush1.msra.mxu0 %v75
  %3415 = vmatprep.subr.mxu0 0.0
  %3416 = vmatpush1.msra.mxu0 %v76
  %3417 = vmatprep.subr.mxu0 0.0
  %3418 = vmatpush1.msra.mxu0 0.0
  %3419 = vmatprep.subr.mxu0 0.0
  %3420 = vmatpush1.msra.mxu0 0.0
  %3421 = vmatprep.subr.mxu0 0.0
  %3422 = vmatpush1.msra.mxu0 0.0
  %3423 = vmatprep.subr.mxu0 0.0
  %3424 = vmatpush1.msra.mxu0 0.0
  %3425 = vmatprep.subr.mxu0 0.0
  %3426 = vmatpush1.msra.mxu0 0.0
  %3427 = vmatprep.subr.mxu0 0.0
  %3428 = vmatpush1.msra.mxu0 0.0
  %3429 = vmatprep.subr.mxu0 0.0
  %3430 = vmatpush1.msra.mxu0 0.0
  %3431 = vmatprep.subr.mxu0 0.0
  %3432 = vmatpush1.msra.mxu0 0.0
  %3433 = vmatprep.subr.mxu0 0.0
  %3434 = vmatpush1.msra.mxu0 0.0
  %3435 = vmatprep.subr.mxu0 0.0
  %3436 = vmatpush1.msra.mxu0 0.0
  %3437 = vmatprep.subr.mxu0 0.0
  %3438 = vmatpush1.msra.mxu0 0.0
  %3439 = vmatprep.subr.mxu0 0.0
  %3440 = vmatpush1.msra.mxu0 0.0
  %3441 = vmatprep.subr.mxu0 0.0
  %3442 = vmatpush1.msra.mxu0 0.0
  %3443 = vmatprep.subr.mxu0 0.0
  %3444 = vmatpush1.msra.mxu0 0.0
  %3445 = vmatprep.subr.mxu0 0.0
  %3446 = vmatpush1.msra.mxu0 0.0
  %3447 = vmatprep.subr.mxu0 0.0
  %3448 = vmatpush1.msra.mxu0 0.0
  %3449 = vmatprep.subr.mxu0 0.0
  %3450 = vmatpush1.msra.mxu0 0.0
  %3451 = vmatprep.subr.mxu0 0.0
  %3452 = vmatpush1.msra.mxu0 0.0
  %3453 = vmatprep.subr.mxu0 0.0
  %3454 = vmatpush1.msra.mxu0 0.0
  %3455 = vmatprep.subr.mxu0 0.0
  %3456 = vmatpush1.msra.mxu0 0.0
  %3457 = vmatprep.subr.mxu0 0.0
  %3458 = vmatpush1.msra.mxu0 0.0
  %3459 = vmatprep.subr.mxu0 0.0
  %3460 = vmatpush1.msra.mxu0 0.0
  %3461 = vmatprep.subr.mxu0 0.0
  %3462 = vmatpush1.msra.mxu0 0.0
  %3463 = vmatprep.subr.mxu0 0.0
  %3464 = vmatpush1.msra.mxu0 0.0
  %3465 = vmatprep.subr.mxu0 0.0
  %3466 = vmatpush1.msra.mxu0 0.0
  %3467 = vmatprep.subr.mxu0 0.0
  %3468 = vmatpush1.msra.mxu0 0.0
  %3469 = vmatprep.subr.mxu0 0.0
  %3470 = vmatpush1.msra.mxu0 0.0
  %3471 = vmatprep.subr.mxu0 0.0
  %3472 = vmatpush1.msra.mxu0 0.0
  %3473 = vmatprep.mubr.f32.mxu0 0.0
  %3474 = vmatmul.mubr.f32.gmra.mrb[0].mxu0 %v3407
  %v3475 = vpop.f32.mrb[0].mxu0
  %v3476 = vadd.f32 %v695, %v3475
  %v3477 = vpop.f32.mrb[0].mxu0
  %3478 = vdwg.mxu0
  %3481 = vrot.lane.b32.xlu0 %v2939, 64
  %v3482 = vpop.permute.xlu0 %3481
  %3483 = vrot.lane.b32.xlu0 %v2944, 64
  %v3484 = vpop.permute.xlu0 %3483
  %3487 = vmatprep.subr.mxu0 0.0
  %3488 = vmatpush1.msra.mxu0 %v3482
  %3489 = vmatprep.subr.mxu0 0.0
  %3490 = vmatpush1.msra.mxu0 %v3484
  %3491 = vmatprep.subr.mxu0 0.0
  %3492 = vmatpush1.msra.mxu0 0.0
  %3493 = vmatprep.subr.mxu0 0.0
  %3494 = vmatpush1.msra.mxu0 0.0
  %3495 = vmatprep.subr.mxu0 0.0
  %3496 = vmatpush1.msra.mxu0 0.0
  %3497 = vmatprep.subr.mxu0 0.0
  %3498 = vmatpush1.msra.mxu0 0.0
  %3499 = vmatprep.subr.mxu0 0.0
  %3500 = vmatpush1.msra.mxu0 0.0
  %3501 = vmatprep.subr.mxu0 0.0
  %3502 = vmatpush1.msra.mxu0 0.0
  %3503 = vmatprep.subr.mxu0 0.0
  %3504 = vmatpush1.msra.mxu0 0.0
  %3505 = vmatprep.subr.mxu0 0.0
  %3506 = vmatpush1.msra.mxu0 0.0
  %3507 = vmatprep.subr.mxu0 0.0
  %3508 = vmatpush1.msra.mxu0 0.0
  %3509 = vmatprep.subr.mxu0 0.0
  %3510 = vmatpush1.msra.mxu0 0.0
  %3511 = vmatprep.subr.mxu0 0.0
  %3512 = vmatpush1.msra.mxu0 0.0
  %3513 = vmatprep.subr.mxu0 0.0
  %3514 = vmatpush1.msra.mxu0 0.0
  %3515 = vmatprep.subr.mxu0 0.0
  %3516 = vmatpush1.msra.mxu0 0.0
  %3517 = vmatprep.subr.mxu0 0.0
  %3518 = vmatpush1.msra.mxu0 0.0
  %3519 = vmatprep.subr.mxu0 0.0
  %3520 = vmatpush1.msra.mxu0 0.0
  %3521 = vmatprep.subr.mxu0 0.0
  %3522 = vmatpush1.msra.mxu0 0.0
  %3523 = vmatprep.subr.mxu0 0.0
  %3524 = vmatpush1.msra.mxu0 0.0
  %3525 = vmatprep.subr.mxu0 0.0
  %3526 = vmatpush1.msra.mxu0 0.0
  %3527 = vmatprep.subr.mxu0 0.0
  %3528 = vmatpush1.msra.mxu0 0.0
  %3529 = vmatprep.subr.mxu0 0.0
  %3530 = vmatpush1.msra.mxu0 0.0
  %3531 = vmatprep.subr.mxu0 0.0
  %3532 = vmatpush1.msra.mxu0 0.0
  %3533 = vmatprep.subr.mxu0 0.0
  %3534 = vmatpush1.msra.mxu0 0.0
  %3535 = vmatprep.subr.mxu0 0.0
  %3536 = vmatpush1.msra.mxu0 0.0
  %3537 = vmatprep.subr.mxu0 0.0
  %3538 = vmatpush1.msra.mxu0 0.0
  %3539 = vmatprep.subr.mxu0 0.0
  %3540 = vmatpush1.msra.mxu0 0.0
  %3541 = vmatprep.subr.mxu0 0.0
  %3542 = vmatpush1.msra.mxu0 0.0
  %3543 = vmatprep.subr.mxu0 0.0
  %3544 = vmatpush1.msra.mxu0 0.0
  %3545 = vmatprep.subr.mxu0 0.0
  %3546 = vmatpush1.msra.mxu0 0.0
  %3547 = vmatprep.subr.mxu0 0.0
  %3548 = vmatpush1.msra.mxu0 0.0
  %3549 = vmatprep.subr.mxu0 0.0
  %3550 = vmatpush1.msra.mxu0 0.0
  %3551 = vmatprep.mubr.f32.mxu0 0.0
  %3552 = vmatmul.mubr.f32.gmra.mrb[0].mxu0 %v780
  %v3553 = vpop.f32.mrb[0].mxu0
  %v3554 = vadd.f32 0.0, %v3553
  %v3555 = vpop.f32.mrb[0].mxu0
  %3556 = vmatprep.mubr.f32.mxu0 0.0
  %3557 = vmatmul.mubr.f32.gmra.mrb[0].mxu0 %v783
  %v3558 = vpop.f32.mrb[0].mxu0
  %v3559 = vadd.f32 0.0, %v3558
  %v3560 = vpop.f32.mrb[0].mxu0
  %3561 = vdwg.mxu0
  %v3563 = vsel %vm85, %v3316, 0
  %v3566 = vsel %vm85, %v3321, 0
  %3568 = vmatprep.subr.mxu0 0.0
  %3569 = vmatpush1.msra.mxu0 %v61
  %3570 = vmatprep.subr.mxu0 0.0
  %3571 = vmatpush1.msra.mxu0 %v62
  %3572 = vmatprep.subr.mxu0 0.0
  %3573 = vmatpush1.msra.mxu0 %v63
  %3574 = vmatprep.subr.mxu0 0.0
  %3575 = vmatpush1.msra.mxu0 %v64
  %3576 = vmatprep.subr.mxu0 0.0
  %3577 = vmatpush1.msra.mxu0 0.0
  %3578 = vmatprep.subr.mxu0 0.0
  %3579 = vmatpush1.msra.mxu0 0.0
  %3580 = vmatprep.subr.mxu0 0.0
  %3581 = vmatpush1.msra.mxu0 0.0
  %3582 = vmatprep.subr.mxu0 0.0
  %3583 = vmatpush1.msra.mxu0 0.0
  %3584 = vmatprep.subr.mxu0 0.0
  %3585 = vmatpush1.msra.mxu0 0.0
  %3586 = vmatprep.subr.mxu0 0.0
  %3587 = vmatpush1.msra.mxu0 0.0
  %3588 = vmatprep.subr.mxu0 0.0
  %3589 = vmatpush1.msra.mxu0 0.0
  %3590 = vmatprep.subr.mxu0 0.0
  %3591 = vmatpush1.msra.mxu0 0.0
  %3592 = vmatprep.subr.mxu0 0.0
  %3593 = vmatpush1.msra.mxu0 0.0
  %3594 = vmatprep.subr.mxu0 0.0
  %3595 = vmatpush1.msra.mxu0 0.0
  %3596 = vmatprep.subr.mxu0 0.0
  %3597 = vmatpush1.msra.mxu0 0.0
  %3598 = vmatprep.subr.mxu0 0.0
  %3599 = vmatpush1.msra.mxu0 0.0
  %3600 = vmatprep.subr.mxu0 0.0
  %3601 = vmatpush1.msra.mxu0 0.0
  %3602 = vmatprep.subr.mxu0 0.0
  %3603 = vmatpush1.msra.mxu0 0.0
  %3604 = vmatprep.subr.mxu0 0.0
  %3605 = vmatpush1.msra.mxu0 0.0
  %3606 = vmatprep.subr.mxu0 0.0
  %3607 = vmatpush1.msra.mxu0 0.0
  %3608 = vmatprep.subr.mxu0 0.0
  %3609 = vmatpush1.msra.mxu0 0.0
  %3610 = vmatprep.subr.mxu0 0.0
  %3611 = vmatpush1.msra.mxu0 0.0
  %3612 = vmatprep.subr.mxu0 0.0
  %3613 = vmatpush1.msra.mxu0 0.0
  %3614 = vmatprep.subr.mxu0 0.0
  %3615 = vmatpush1.msra.mxu0 0.0
  %3616 = vmatprep.subr.mxu0 0.0
  %3617 = vmatpush1.msra.mxu0 0.0
  %3618 = vmatprep.subr.mxu0 0.0
  %3619 = vmatpush1.msra.mxu0 0.0
  %3620 = vmatprep.subr.mxu0 0.0
  %3621 = vmatpush1.msra.mxu0 0.0
  %3622 = vmatprep.subr.mxu0 0.0
  %3623 = vmatpush1.msra.mxu0 0.0
  %3624 = vmatprep.subr.mxu0 0.0
  %3625 = vmatpush1.msra.mxu0 0.0
  %3626 = vmatprep.subr.mxu0 0.0
  %3627 = vmatpush1.msra.mxu0 0.0
  %3628 = vmatprep.subr.mxu0 0.0
  %3629 = vmatpush1.msra.mxu0 0.0
  %3630 = vmatprep.subr.mxu0 0.0
  %3631 = vmatpush1.msra.mxu0 0.0
  %3632 = vmatprep.mubr.f32.mxu0 0.0
  %3633 = vmatmul.mubr.f32.gmra.mrb[0].mxu0 %v3563
  %v3634 = vpop.f32.mrb[0].mxu0
  %v3635 = vadd.f32 0.0, %v3634
  %v3636 = vpop.f32.mrb[0].mxu0
  %3637 = vmatprep.mubr.f32.mxu0 0.0
  %3638 = vmatmul.mubr.f32.gmra.mrb[0].mxu0 %v3566
  %v3639 = vpop.f32.mrb[0].mxu0
  %v3640 = vadd.f32 0.0, %v3639
  %v3641 = vpop.f32.mrb[0].mxu0
  %3642 = vdwg.mxu0
  %3645 = vrot.lane.b32.xlu0 %v3635, 32
  %v3646 = vpop.permute.xlu0 %3645
  %3647 = vrot.lane.b32.xlu0 %v3640, 32
  %v3648 = vpop.permute.xlu0 %3647
  %v3651 = vadd.f32 %v2939, %v3646
  %v3652 = vadd.f32 %v2944, %v3648
  %3655 = vrot.lane.b32.xlu0 %v3554, 32
  %v3656 = vpop.permute.xlu0 %3655
  %3657 = vrot.lane.b32.xlu0 %v3559, 32
  %v3658 = vpop.permute.xlu0 %3657
  %v3661 = vadd.f32 %v3651, %v3656
  %v3662 = vadd.f32 %v3652, %v3658
  %v3663 = vadd.f32 %v3661, %v967
  %v3664 = vadd.f32 %v3662, %v967
  %v3665 = vmax.f32 %v3663, 0.0
  %v3666 = vmax.f32 %v3664, 0.0
  %3669 = vrot.lane.b32.xlu0 %v3665, 96
  %v3670 = vpop.permute.xlu0 %3669
  %3671 = vrot.lane.b32.xlu0 %v3666, 96
  %v3672 = vpop.permute.xlu0 %3671
  %v3673 = vsel %vm85, %v3670, 0
  %v3675 = vsel %vm85, %v3672, 0
  %3677 = vmatprep.subr.mxu0 0.0
  %3678 = vmatpush1.msra.mxu0 %v77
  %3679 = vmatprep.subr.mxu0 0.0
  %3680 = vmatpush1.msra.mxu0 %v78
  %3681 = vmatprep.subr.mxu0 0.0
  %3682 = vmatpush1.msra.mxu0 %v79
  %3683 = vmatprep.subr.mxu0 0.0
  %3684 = vmatpush1.msra.mxu0 %v80
  %3685 = vmatprep.subr.mxu0 0.0
  %3686 = vmatpush1.msra.mxu0 0.0
  %3687 = vmatprep.subr.mxu0 0.0
  %3688 = vmatpush1.msra.mxu0 0.0
  %3689 = vmatprep.subr.mxu0 0.0
  %3690 = vmatpush1.msra.mxu0 0.0
  %3691 = vmatprep.subr.mxu0 0.0
  %3692 = vmatpush1.msra.mxu0 0.0
  %3693 = vmatprep.subr.mxu0 0.0
  %3694 = vmatpush1.msra.mxu0 0.0
  %3695 = vmatprep.subr.mxu0 0.0
  %3696 = vmatpush1.msra.mxu0 0.0
  %3697 = vmatprep.subr.mxu0 0.0
  %3698 = vmatpush1.msra.mxu0 0.0
  %3699 = vmatprep.subr.mxu0 0.0
  %3700 = vmatpush1.msra.mxu0 0.0
  %3701 = vmatprep.subr.mxu0 0.0
  %3702 = vmatpush1.msra.mxu0 0.0
  %3703 = vmatprep.subr.mxu0 0.0
  %3704 = vmatpush1.msra.mxu0 0.0
  %3705 = vmatprep.subr.mxu0 0.0
  %3706 = vmatpush1.msra.mxu0 0.0
  %3707 = vmatprep.subr.mxu0 0.0
  %3708 = vmatpush1.msra.mxu0 0.0
  %3709 = vmatprep.subr.mxu0 0.0
  %3710 = vmatpush1.msra.mxu0 0.0
  %3711 = vmatprep.subr.mxu0 0.0
  %3712 = vmatpush1.msra.mxu0 0.0
  %3713 = vmatprep.subr.mxu0 0.0
  %3714 = vmatpush1.msra.mxu0 0.0
  %3715 = vmatprep.subr.mxu0 0.0
  %3716 = vmatpush1.msra.mxu0 0.0
  %3717 = vmatprep.subr.mxu0 0.0
  %3718 = vmatpush1.msra.mxu0 0.0
  %3719 = vmatprep.subr.mxu0 0.0
  %3720 = vmatpush1.msra.mxu0 0.0
  %3721 = vmatprep.subr.mxu0 0.0
  %3722 = vmatpush1.msra.mxu0 0.0
  %3723 = vmatprep.subr.mxu0 0.0
  %3724 = vmatpush1.msra.mxu0 0.0
  %3725 = vmatprep.subr.mxu0 0.0
  %3726 = vmatpush1.msra.mxu0 0.0
  %3727 = vmatprep.subr.mxu0 0.0
  %3728 = vmatpush1.msra.mxu0 0.0
  %3729 = vmatprep.subr.mxu0 0.0
  %3730 = vmatpush1.msra.mxu0 0.0
  %3731 = vmatprep.subr.mxu0 0.0
  %3732 = vmatpush1.msra.mxu0 0.0
  %3733 = vmatprep.subr.mxu0 0.0
  %3734 = vmatpush1.msra.mxu0 0.0
  %3735 = vmatprep.subr.mxu0 0.0
  %3736 = vmatpush1.msra.mxu0 0.0
  %3737 = vmatprep.subr.mxu0 0.0
  %3738 = vmatpush1.msra.mxu0 0.0
  %3739 = vmatprep.subr.mxu0 0.0
  %3740 = vmatpush1.msra.mxu0 0.0
  %3741 = vmatprep.mubr.f32.mxu0 0.0
  %3742 = vmatmul.mubr.f32.gmra.mrb[0].mxu0 %v3673
  %v3743 = vpop.f32.mrb[0].mxu0
  %v3744 = vadd.f32 %v976, %v3743
  %v3745 = vpop.f32.mrb[0].mxu0
  %3746 = vmatprep.mubr.f32.mxu0 0.0
  %3747 = vmatmul.mubr.f32.gmra.mrb[0].mxu0 %v3675
  %v3748 = vpop.f32.mrb[0].mxu0
  %v3749 = vadd.f32 %v976, %v3748
  %v3750 = vpop.f32.mrb[0].mxu0
  %3751 = vdwg.mxu0
  %3754 = vrot.lane.b32.xlu0 %v3744, 96
  %v3755 = vpop.permute.xlu0 %3754
  %3756 = vrot.lane.b32.xlu0 %v3749, 96
  %v3757 = vpop.permute.xlu0 %3756
  %vm3760 = vcmask 1048320
  %3761 = vst.msk [vmem:[%s13] sm:$0xff] %vm3760, %v3755
  %3762 = vst.msk [vmem:[%s13 + $0x8] sm:$0xff] %vm3760, %v3757
  %3764 = vrot.lane.b32.xlu0 %v3476, 96
  %v3765 = vpop.permute.xlu0 %3764
  %3767 = vst.msk [vmem:[%s14] sm:$0xff] %vm3760, %v3765
  // Predicated region
  $region54: #{gin_lcg_forward.1} parent=0 // pred_check
    _
  $region55: #{gin_lcg_forward.1} parent=0 // pred_check_branch
    %3769 = sbr.rel (0) target = $region57
  $region56: #{gin_lcg_forward.1} parent=0 // pred_region
    _
  $region57: #{gin_lcg_forward.1} parent=0 // pred_fallthru
    _
  // Predicated region
  $region58: #{gin_lcg_forward.1} parent=0 // pred_check
    _
  $region59: #{gin_lcg_forward.1} parent=0 // pred_check_branch
    %3771 = sbr.rel (0) target = $region61
  $region60: #{gin_lcg_forward.1} parent=0 // pred_region
    _
  $region61: #{gin_lcg_forward.1} parent=0 // pred_fallthru
    _
  // Predicated region
  $region62: #{gin_lcg_forward.1} parent=0 // pred_check
    _
  $region63: #{gin_lcg_forward.1} parent=0 // pred_check_branch
    %3773 = sbr.rel (0) target = $region65
  $region64: #{gin_lcg_forward.1} parent=0 // pred_region
    _
  $region65: #{gin_lcg_forward.1} parent=0 // pred_fallthru
    _
  // Predicated region
  $region66: #{gin_lcg_forward.1} parent=0 // pred_check
    _
  $region67: #{gin_lcg_forward.1} parent=0 // pred_check_branch
    %3775 = sbr.rel (0) target = $region69
  $region68: #{gin_lcg_forward.1} parent=0 // pred_region
    _
  $region69: #{gin_lcg_forward.1} parent=0 // pred_fallthru
    _

</llo_original>
